<compile_context>
chip_gen: v7x
topology: tpu7x:2x2x1
jax: 0.10.0
libtpu: 0.0.40
codegen_flags: <defaults>
</compile_context>

<pallas_src>
import jax
import jax.numpy as jnp
from jax import lax
from jax.experimental import pallas as pl
from jax.experimental.pallas import tpu as pltpu

LANE = 128


def _round_up(x, m):
    return (x + m - 1) // m * m


def _fused_encoding_block_kernel(p_ref, w1_ref, b1_ref, w2_ref, b2_ref, o_ref,
                                 xpad_ref):
    # p_ref:    (1, H, W, K1)  bf16  layer-1 im2col patches (9*Cin packed, lane-padded)
    # w1_ref:   (K1, C2)       bf16  conv1 weights (BN1 scale folded), packed rows
    # b1_ref:   (1, C2)        f32   folded BN1 bias
    # w2_ref:   (9*C2, C2)     bf16  conv2 weights (BN2 scale folded), row = tap*C2 + ci
    # b2_ref:   (1, C2)        f32   folded BN2 bias
    # o_ref:    (1, H, W, C2)  f32   lane-dense output (padded out-channels)
    # xpad_ref: VMEM (H+2, W+2, C2) bf16 zero-halo buffer for layer 2 only
    _, H, W, C2 = o_ref.shape
    K1 = p_ref.shape[-1]

    # ---- layer 1: single MXU contraction over the wrapper-packed patches ----
    acc1 = jnp.dot(p_ref[0].reshape(H * W, K1), w1_ref[...],
                   preferred_element_type=jnp.float32)            # (H*W, C2) f32
    y1 = jnp.maximum(acc1 + b1_ref[...], 0.0)                     # BN bias + ReLU
    # Dropout #1: identity in eval mode.

    # ---- layer 2: intermediate stays in VMEM; zero only the 1-px border ----
    zrow = jnp.zeros((1, W + 2, C2), xpad_ref.dtype)
    xpad_ref[0:1, :, :] = zrow
    xpad_ref[H + 1:H + 2, :, :] = zrow
    zcol = jnp.zeros((H + 2, 1, C2), xpad_ref.dtype)
    xpad_ref[:, 0:1, :] = zcol
    xpad_ref[:, W + 1:W + 2, :] = zcol
    xpad_ref[1:H + 1, 1:W + 1, :] = y1.reshape(H, W, C2).astype(xpad_ref.dtype)

    # 9 accumulating per-tap dots over aligned weight row-slices (no im2col slab).
    acc2 = jnp.zeros((H * W, C2), jnp.float32)
    for tap in range(9):
        dy, dx = tap // 3, tap % 3
        lhs = xpad_ref[dy:dy + H, dx:dx + W, :].reshape(H * W, C2)
        acc2 = acc2 + jnp.dot(lhs, w2_ref[tap * C2:(tap + 1) * C2, :],
                              preferred_element_type=jnp.float32)
    y2 = jnp.maximum(acc2 + b2_ref[...], 0.0)                     # BN bias + ReLU
    # Dropout #2: identity in eval mode.

    # Lane-dense store (C2 is a multiple of 128); wrapper slices back to Cout.
    o_ref[0] = y2.reshape(H, W, C2).astype(o_ref.dtype)


def _fold_bn_into_conv(w_hwio, gamma, beta, mean, var, eps):
    """Eval-mode BN fold: bf16 folded HWIO weights + f32 bias (shared with reference)."""
    scale = gamma / jnp.sqrt(var + eps)
    w = (w_hwio * scale).astype(jnp.bfloat16)        # scale broadcasts over out-channel
    b = (beta - mean * scale).astype(jnp.float32)
    return w, b


def encoding_block_forward(x_nchw, params, eps=1e-5):
    """Forward pass of encoding_block (eval mode). Input/output in NCHW, f32."""
    N, Cin, H, W = x_nchw.shape
    Cout = params["w1"].shape[-1]
    K1 = _round_up(9 * Cin, LANE)          # layer-1 packed im2col lane width
    C2 = _round_up(Cout, LANE)             # lane-padded out-channel width

    w1, b1 = _fold_bn_into_conv(params["w1"], params["gamma1"], params["beta1"],
                                params["mean1"], params["var1"], eps)
    w2, b2 = _fold_bn_into_conv(params["w2"], params["gamma2"], params["beta2"],
                                params["mean2"], params["var2"], eps)

    # Layer-1 weights: (3,3,Cin,Cout) -> packed (9*Cin, Cout), row = (dy*3+dx)*Cin + ci,
    # padded to (K1, C2).  Padded rows/columns are exactly zero.
    w1p = jnp.pad(w1.reshape(9 * Cin, Cout), ((0, K1 - 9 * Cin), (0, C2 - Cout)))
    b1p = jnp.pad(b1, (0, C2 - Cout)).reshape(1, C2)
    # Layer-2 weights: pad in-channels to C2 *per tap* (row = tap*C2 + ci) so the
    # kernel's aligned w2[tap*C2:(tap+1)*C2] slices match the C2-wide halo buffer.
    w2p = jnp.pad(w2, ((0, 0), (0, 0), (0, C2 - Cout), (0, C2 - Cout))).reshape(9 * C2, C2)
    b2p = jnp.pad(b2, (0, C2 - Cout)).reshape(1, C2)

    # NCHW -> NHWC, bf16, and the layer-1 packed im2col (9 shifted views, tap-major /
    # channel-minor, matching the w1 reshape above).
    # TODO(synk): for Cin >= ~64 this 9x im2col HBM blow-up should move in-kernel
    #             (halo scratch like layer 2); fine at UNet first-block channel counts.
    x = jnp.transpose(x_nchw, (0, 2, 3, 1)).astype(jnp.bfloat16)
    xsp = jnp.pad(x, ((0, 0), (1, 1), (1, 1), (0, 0)))
    patches = jnp.concatenate(
        [xsp[:, dy:dy + H, dx:dx + W, :] for dy in range(3) for dx in range(3)],
        axis=-1)                                                   # (N, H, W, 9*Cin)
    patches = jnp.pad(patches, ((0, 0), (0, 0), (0, 0), (0, K1 - 9 * Cin)))

    out = pl.pallas_call(
        _fused_encoding_block_kernel,
        out_shape=jax.ShapeDtypeStruct((N, H, W, C2), jnp.float32),
        grid_spec=pltpu.PrefetchScalarGridSpec(
            num_scalar_prefetch=0,
            grid=(N,),
            in_specs=[
                pl.BlockSpec((1, H, W, K1), lambda n: (n, 0, 0, 0)),
                # Constant index_maps: weights/biases are not re-copied across steps.
                pl.BlockSpec((K1, C2), lambda n: (0, 0)),
                pl.BlockSpec((1, C2), lambda n: (0, 0)),
                pl.BlockSpec((9 * C2, C2), lambda n: (0, 0)),
                pl.BlockSpec((1, C2), lambda n: (0, 0)),
            ],
            out_specs=pl.BlockSpec((1, H, W, C2), lambda n: (n, 0, 0, 0)),
            scratch_shapes=[pltpu.VMEM((H + 2, W + 2, C2), jnp.bfloat16)],
        ),
        compiler_params=pltpu.CompilerParams(
            dimension_semantics=("parallel",),
            # Plenty at these shapes; re-derive per generation when scaling H/W/C
            # (<= ~56 MiB on v7x, up to ~96-112 MiB on v5e/v6e).
            vmem_limit_bytes=32 * 1024 * 1024,
        ),
    )(patches, w1p, b1p, w2p, b2p)

    # TODO(synk): at real UNet resolutions, emit NHWC and fold this slice + transpose
    #             into the consumer instead of an extra HBM pass.
    out = out[..., :Cout]                      # drop lane padding
    return jnp.transpose(out, (0, 3, 1, 2))    # NHWC -> NCHW


def init_encoding_block_params(key, in_channels, out_channels):
    """Deterministic synthetic parameters matching nn.Conv2d/BatchNorm2d shapes."""
    ks = jax.random.split(key, 10)

    def conv_w(k, cin, cout):
        fan_in = cin * 9
        return jax.random.normal(k, (3, 3, cin, cout), jnp.float32) * (2.0 / fan_in) ** 0.5

    return {
        "w1": conv_w(ks[0], in_channels, out_channels),
        "gamma1": 1.0 + 0.1 * jax.random.normal(ks[1], (out_channels,), jnp.float32),
        "beta1": 0.1 * jax.random.normal(ks[2], (out_channels,), jnp.float32),
        "mean1": 0.1 * jax.random.normal(ks[3], (out_channels,), jnp.float32),
        "var1": jax.random.uniform(ks[4], (out_channels,), jnp.float32, 0.5, 1.5),
        "w2": conv_w(ks[5], out_channels, out_channels),
        "gamma2": 1.0 + 0.1 * jax.random.normal(ks[6], (out_channels,), jnp.float32),
        "beta2": 0.1 * jax.random.normal(ks[7], (out_channels,), jnp.float32),
        "mean2": 0.1 * jax.random.normal(ks[8], (out_channels,), jnp.float32),
        "var2": jax.random.uniform(ks[9], (out_channels,), jnp.float32, 0.5, 1.5),
    }


def _reference_forward(x_nchw, params, eps=1e-5):
    """Pure-JAX reference (lax.conv) with the same bf16-operand / f32-accumulate
    precision as the kernel, so only summation order differs."""
    w1, b1 = _fold_bn_into_conv(params["w1"], params["gamma1"], params["beta1"],
                                params["mean1"], params["var1"], eps)
    w2, b2 = _fold_bn_into_conv(params["w2"], params["gamma2"], params["beta2"],
                                params["mean2"], params["var2"], eps)
    dn = ("NHWC", "HWIO", "NHWC")
    x = jnp.transpose(x_nchw, (0, 2, 3, 1)).astype(jnp.bfloat16)
    y = lax.conv_general_dilated(x, w1, (1, 1), "SAME", dimension_numbers=dn,
                                 preferred_element_type=jnp.float32)
    y = jnp.maximum(y + b1, 0.0).astype(jnp.bfloat16)
    y = lax.conv_general_dilated(y, w2, (1, 1), "SAME", dimension_numbers=dn,
                                 preferred_element_type=jnp.float32)
    y = jnp.maximum(y + b2, 0.0)
    return jnp.transpose(y, (0, 3, 1, 2))


if __name__ == "__main__":
    key = jax.random.PRNGKey(0)
    k_x, k_p = jax.random.split(key)

    batch, in_channels, out_channels, H, W = 2, 4, 8, 16, 16
    x = jax.random.normal(k_x, (batch, in_channels, H, W), jnp.float32)
    params = init_encoding_block_params(k_p, in_channels, out_channels)

    out = jax.block_until_ready(encoding_block_forward(x, params))
    ref = jax.block_until_ready(_reference_forward(x, params))

    assert out.shape == (batch, out_channels, H, W)
    assert out.dtype == jnp.float32
    # bf16 MXU operands, f32 accumulation in both kernel and reference.
    assert jnp.allclose(out, ref, atol=1e-2, rtol=1e-2), "mismatch vs. JAX reference"

    print("KERNEL_OK")
</pallas_src>

<mosaic_0001>
module attributes {stable_mosaic.version = 11 : i64} {
  func.func @_fused_encoding_block_kernel(%arg0: i32, %arg1: memref<1x16x16x128xbf16, #tpu.memory_space<vmem>>, %arg2: memref<128x128xbf16, #tpu.memory_space<vmem>>, %arg3: memref<1x128xf32, #tpu.memory_space<vmem>>, %arg4: memref<1152x128xbf16, #tpu.memory_space<vmem>>, %arg5: memref<1x128xf32, #tpu.memory_space<vmem>>, %arg6: memref<1x16x16x128xf32, #tpu.memory_space<vmem>>, %arg7: memref<18x18x128xbf16, #tpu.memory_space<vmem>>) attributes {dimension_semantics = [#tpu.dimension_semantics<parallel>], iteration_bounds = array<i64: 2>, scalar_prefetch = 0 : i64, scratch_operands = 1 : i64, tpu.core_type = #tpu.core_type<tc>, window_params = [{transform_indices = @transform_0, window_bounds = array<i64: 1, 16, 16, 128>}, {pipeline_mode = #tpu.pipeline_mode<synchronous>, transform_indices = @transform_1, window_bounds = array<i64: 128, 128>}, {pipeline_mode = #tpu.pipeline_mode<synchronous>, transform_indices = @transform_2, window_bounds = array<i64: 1, 128>}, {pipeline_mode = #tpu.pipeline_mode<synchronous>, transform_indices = @transform_3, window_bounds = array<i64: 1152, 128>}, {pipeline_mode = #tpu.pipeline_mode<synchronous>, transform_indices = @transform_4, window_bounds = array<i64: 1, 128>}, {transform_indices = @transform_5, window_bounds = array<i64: 1, 16, 16, 128>}]} {
    %c0 = arith.constant 0 : index
    %c0_0 = arith.constant 0 : index
    %c0_1 = arith.constant 0 : index
    %c0_2 = arith.constant 0 : index
    %0 = vector.load %arg1[%c0, %c0_0, %c0_1, %c0_2] : memref<1x16x16x128xbf16, #tpu.memory_space<vmem>>, vector<1x16x16x128xbf16>
    %1 = vector.shape_cast %0 : vector<1x16x16x128xbf16> to vector<16x16x128xbf16>
    %2 = vector.shape_cast %1 : vector<16x16x128xbf16> to vector<256x128xbf16>
    %c0_3 = arith.constant 0 : index
    %c0_4 = arith.constant 0 : index
    %3 = vector.load %arg2[%c0_3, %c0_4] : memref<128x128xbf16, #tpu.memory_space<vmem>>, vector<128x128xbf16>
    %cst = arith.constant dense<0.000000e+00> : vector<256x128xf32>
    %4 = tpu.matmul %2, %3, %cst {dimension_numbers = #tpu.dot_dimension_numbers<[1], [0], [0], [1], [0, 0, 1, 1], [], []>} : vector<256x128xbf16>, vector<128x128xbf16>, vector<256x128xf32> -> vector<256x128xf32>
    %c0_5 = arith.constant 0 : index
    %c0_6 = arith.constant 0 : index
    %5 = vector.load %arg3[%c0_5, %c0_6] : memref<1x128xf32, #tpu.memory_space<vmem>>, vector<1x128xf32>
    %6 = vector.broadcast %5 : vector<1x128xf32> to vector<256x128xf32>
    %7 = arith.addf %4, %6 : vector<256x128xf32>
    %cst_7 = arith.constant 0.000000e+00 : f32
    %8 = vector.broadcast %cst_7 : f32 to vector<256x128xf32>
    %9 = arith.maximumf %7, %8 : vector<256x128xf32>
    %cst_8 = arith.constant 0.000000e+00 : bf16
    %10 = vector.broadcast %cst_8 : bf16 to vector<1x18x128xbf16>
    %c0_9 = arith.constant 0 : index
    %c0_10 = arith.constant 0 : index
    %c0_11 = arith.constant 0 : index
    %11 = vector.load %arg7[%c0_9, %c0_10, %c0_11] : memref<18x18x128xbf16, #tpu.memory_space<vmem>>, vector<1x18x128xbf16>
    tpu.vector_store %arg7[%c0_9, %c0_10, %c0_11], %10 {strides = array<i32>} : memref<18x18x128xbf16, #tpu.memory_space<vmem>>, vector<1x18x128xbf16>,
    %c17 = arith.constant 17 : index
    %c0_12 = arith.constant 0 : index
    %c0_13 = arith.constant 0 : index
    %12 = vector.load %arg7[%c17, %c0_12, %c0_13] : memref<18x18x128xbf16, #tpu.memory_space<vmem>>, vector<1x18x128xbf16>
    tpu.vector_store %arg7[%c17, %c0_12, %c0_13], %10 {strides = array<i32>} : memref<18x18x128xbf16, #tpu.memory_space<vmem>>, vector<1x18x128xbf16>,
    %cst_14 = arith.constant 0.000000e+00 : bf16
    %13 = vector.broadcast %cst_14 : bf16 to vector<18x1x128xbf16>
    %c0_15 = arith.constant 0 : index
    %c0_16 = arith.constant 0 : index
    %c0_17 = arith.constant 0 : index
    %14 = vector.load %arg7[%c0_15, %c0_16, %c0_17] : memref<18x18x128xbf16, #tpu.memory_space<vmem>>, vector<18x1x128xbf16>
    tpu.vector_store %arg7[%c0_15, %c0_16, %c0_17], %13 {strides = array<i32>} : memref<18x18x128xbf16, #tpu.memory_space<vmem>>, vector<18x1x128xbf16>,
    %c0_18 = arith.constant 0 : index
    %c17_19 = arith.constant 17 : index
    %c0_20 = arith.constant 0 : index
    %15 = vector.load %arg7[%c0_18, %c17_19, %c0_20] : memref<18x18x128xbf16, #tpu.memory_space<vmem>>, vector<18x1x128xbf16>
    tpu.vector_store %arg7[%c0_18, %c17_19, %c0_20], %13 {strides = array<i32>} : memref<18x18x128xbf16, #tpu.memory_space<vmem>>, vector<18x1x128xbf16>,
    %16 = vector.shape_cast %9 : vector<256x128xf32> to vector<16x16x128xf32>
    %17 = arith.truncf %16 : vector<16x16x128xf32> to vector<16x16x128xbf16>
    %c1 = arith.constant 1 : index
    %c1_21 = arith.constant 1 : index
    %c0_22 = arith.constant 0 : index
    %18 = vector.load %arg7[%c1, %c1_21, %c0_22] : memref<18x18x128xbf16, #tpu.memory_space<vmem>>, vector<16x16x128xbf16>
    tpu.vector_store %arg7[%c1, %c1_21, %c0_22], %17 {strides = array<i32>} : memref<18x18x128xbf16, #tpu.memory_space<vmem>>, vector<16x16x128xbf16>,
    %cst_23 = arith.constant 0.000000e+00 : f32
    %19 = vector.broadcast %cst_23 : f32 to vector<256x128xf32>
    %c0_24 = arith.constant 0 : index
    %c0_25 = arith.constant 0 : index
    %c0_26 = arith.constant 0 : index
    %20 = vector.load %arg7[%c0_24, %c0_25, %c0_26] : memref<18x18x128xbf16, #tpu.memory_space<vmem>>, vector<16x16x128xbf16>
    %21 = vector.shape_cast %20 : vector<16x16x128xbf16> to vector<256x128xbf16>
    %c0_27 = arith.constant 0 : index
    %c0_28 = arith.constant 0 : index
    %22 = vector.load %arg4[%c0_27, %c0_28] : memref<1152x128xbf16, #tpu.memory_space<vmem>>, vector<128x128xbf16>
    %cst_29 = arith.constant dense<0.000000e+00> : vector<256x128xf32>
    %23 = tpu.matmul %21, %22, %cst_29 {dimension_numbers = #tpu.dot_dimension_numbers<[1], [0], [0], [1], [0, 0, 1, 1], [], []>} : vector<256x128xbf16>, vector<128x128xbf16>, vector<256x128xf32> -> vector<256x128xf32>
    %24 = arith.addf %19, %23 : vector<256x128xf32>
    %c0_30 = arith.constant 0 : index
    %c1_31 = arith.constant 1 : index
    %c0_32 = arith.constant 0 : index
    %25 = vector.load %arg7[%c0_30, %c1_31, %c0_32] : memref<18x18x128xbf16, #tpu.memory_space<vmem>>, vector<16x16x128xbf16>
    %26 = vector.shape_cast %25 : vector<16x16x128xbf16> to vector<256x128xbf16>
    %c128 = arith.constant 128 : index
    %c0_33 = arith.constant 0 : index
    %27 = vector.load %arg4[%c128, %c0_33] : memref<1152x128xbf16, #tpu.memory_space<vmem>>, vector<128x128xbf16>
    %cst_34 = arith.constant dense<0.000000e+00> : vector<256x128xf32>
    %28 = tpu.matmul %26, %27, %cst_34 {dimension_numbers = #tpu.dot_dimension_numbers<[1], [0], [0], [1], [0, 0, 1, 1], [], []>} : vector<256x128xbf16>, vector<128x128xbf16>, vector<256x128xf32> -> vector<256x128xf32>
    %29 = arith.addf %24, %28 : vector<256x128xf32>
    %c0_35 = arith.constant 0 : index
    %c2 = arith.constant 2 : index
    %c0_36 = arith.constant 0 : index
    %30 = vector.load %arg7[%c0_35, %c2, %c0_36] : memref<18x18x128xbf16, #tpu.memory_space<vmem>>, vector<16x16x128xbf16>
    %31 = vector.shape_cast %30 : vector<16x16x128xbf16> to vector<256x128xbf16>
    %c256 = arith.constant 256 : index
    %c0_37 = arith.constant 0 : index
    %32 = vector.load %arg4[%c256, %c0_37] : memref<1152x128xbf16, #tpu.memory_space<vmem>>, vector<128x128xbf16>
    %cst_38 = arith.constant dense<0.000000e+00> : vector<256x128xf32>
    %33 = tpu.matmul %31, %32, %cst_38 {dimension_numbers = #tpu.dot_dimension_numbers<[1], [0], [0], [1], [0, 0, 1, 1], [], []>} : vector<256x128xbf16>, vector<128x128xbf16>, vector<256x128xf32> -> vector<256x128xf32>
    %34 = arith.addf %29, %33 : vector<256x128xf32>
    %c1_39 = arith.constant 1 : index
    %c0_40 = arith.constant 0 : index
    %c0_41 = arith.constant 0 : index
    %35 = vector.load %arg7[%c1_39, %c0_40, %c0_41] : memref<18x18x128xbf16, #tpu.memory_space<vmem>>, vector<16x16x128xbf16>
    %36 = vector.shape_cast %35 : vector<16x16x128xbf16> to vector<256x128xbf16>
    %c384 = arith.constant 384 : index
    %c0_42 = arith.constant 0 : index
    %37 = vector.load %arg4[%c384, %c0_42] : memref<1152x128xbf16, #tpu.memory_space<vmem>>, vector<128x128xbf16>
    %cst_43 = arith.constant dense<0.000000e+00> : vector<256x128xf32>
    %38 = tpu.matmul %36, %37, %cst_43 {dimension_numbers = #tpu.dot_dimension_numbers<[1], [0], [0], [1], [0, 0, 1, 1], [], []>} : vector<256x128xbf16>, vector<128x128xbf16>, vector<256x128xf32> -> vector<256x128xf32>
    %39 = arith.addf %34, %38 : vector<256x128xf32>
    %c1_44 = arith.constant 1 : index
    %c1_45 = arith.constant 1 : index
    %c0_46 = arith.constant 0 : index
    %40 = vector.load %arg7[%c1_44, %c1_45, %c0_46] : memref<18x18x128xbf16, #tpu.memory_space<vmem>>, vector<16x16x128xbf16>
    %41 = vector.shape_cast %40 : vector<16x16x128xbf16> to vector<256x128xbf16>
    %c512 = arith.constant 512 : index
    %c0_47 = arith.constant 0 : index
    %42 = vector.load %arg4[%c512, %c0_47] : memref<1152x128xbf16, #tpu.memory_space<vmem>>, vector<128x128xbf16>
    %cst_48 = arith.constant dense<0.000000e+00> : vector<256x128xf32>
    %43 = tpu.matmul %41, %42, %cst_48 {dimension_numbers = #tpu.dot_dimension_numbers<[1], [0], [0], [1], [0, 0, 1, 1], [], []>} : vector<256x128xbf16>, vector<128x128xbf16>, vector<256x128xf32> -> vector<256x128xf32>
    %44 = arith.addf %39, %43 : vector<256x128xf32>
    %c1_49 = arith.constant 1 : index
    %c2_50 = arith.constant 2 : index
    %c0_51 = arith.constant 0 : index
    %45 = vector.load %arg7[%c1_49, %c2_50, %c0_51] : memref<18x18x128xbf16, #tpu.memory_space<vmem>>, vector<16x16x128xbf16>
    %46 = vector.shape_cast %45 : vector<16x16x128xbf16> to vector<256x128xbf16>
    %c640 = arith.constant 640 : index
    %c0_52 = arith.constant 0 : index
    %47 = vector.load %arg4[%c640, %c0_52] : memref<1152x128xbf16, #tpu.memory_space<vmem>>, vector<128x128xbf16>
    %cst_53 = arith.constant dense<0.000000e+00> : vector<256x128xf32>
    %48 = tpu.matmul %46, %47, %cst_53 {dimension_numbers = #tpu.dot_dimension_numbers<[1], [0], [0], [1], [0, 0, 1, 1], [], []>} : vector<256x128xbf16>, vector<128x128xbf16>, vector<256x128xf32> -> vector<256x128xf32>
    %49 = arith.addf %44, %48 : vector<256x128xf32>
    %c2_54 = arith.constant 2 : index
    %c0_55 = arith.constant 0 : index
    %c0_56 = arith.constant 0 : index
    %50 = vector.load %arg7[%c2_54, %c0_55, %c0_56] : memref<18x18x128xbf16, #tpu.memory_space<vmem>>, vector<16x16x128xbf16>
    %51 = vector.shape_cast %50 : vector<16x16x128xbf16> to vector<256x128xbf16>
    %c768 = arith.constant 768 : index
    %c0_57 = arith.constant 0 : index
    %52 = vector.load %arg4[%c768, %c0_57] : memref<1152x128xbf16, #tpu.memory_space<vmem>>, vector<128x128xbf16>
    %cst_58 = arith.constant dense<0.000000e+00> : vector<256x128xf32>
    %53 = tpu.matmul %51, %52, %cst_58 {dimension_numbers = #tpu.dot_dimension_numbers<[1], [0], [0], [1], [0, 0, 1, 1], [], []>} : vector<256x128xbf16>, vector<128x128xbf16>, vector<256x128xf32> -> vector<256x128xf32>
    %54 = arith.addf %49, %53 : vector<256x128xf32>
    %c2_59 = arith.constant 2 : index
    %c1_60 = arith.constant 1 : index
    %c0_61 = arith.constant 0 : index
    %55 = vector.load %arg7[%c2_59, %c1_60, %c0_61] : memref<18x18x128xbf16, #tpu.memory_space<vmem>>, vector<16x16x128xbf16>
    %56 = vector.shape_cast %55 : vector<16x16x128xbf16> to vector<256x128xbf16>
    %c896 = arith.constant 896 : index
    %c0_62 = arith.constant 0 : index
    %57 = vector.load %arg4[%c896, %c0_62] : memref<1152x128xbf16, #tpu.memory_space<vmem>>, vector<128x128xbf16>
    %cst_63 = arith.constant dense<0.000000e+00> : vector<256x128xf32>
    %58 = tpu.matmul %56, %57, %cst_63 {dimension_numbers = #tpu.dot_dimension_numbers<[1], [0], [0], [1], [0, 0, 1, 1], [], []>} : vector<256x128xbf16>, vector<128x128xbf16>, vector<256x128xf32> -> vector<256x128xf32>
    %59 = arith.addf %54, %58 : vector<256x128xf32>
    %c2_64 = arith.constant 2 : index
    %c2_65 = arith.constant 2 : index
    %c0_66 = arith.constant 0 : index
    %60 = vector.load %arg7[%c2_64, %c2_65, %c0_66] : memref<18x18x128xbf16, #tpu.memory_space<vmem>>, vector<16x16x128xbf16>
    %61 = vector.shape_cast %60 : vector<16x16x128xbf16> to vector<256x128xbf16>
    %c1024 = arith.constant 1024 : index
    %c0_67 = arith.constant 0 : index
    %62 = vector.load %arg4[%c1024, %c0_67] : memref<1152x128xbf16, #tpu.memory_space<vmem>>, vector<128x128xbf16>
    %cst_68 = arith.constant dense<0.000000e+00> : vector<256x128xf32>
    %63 = tpu.matmul %61, %62, %cst_68 {dimension_numbers = #tpu.dot_dimension_numbers<[1], [0], [0], [1], [0, 0, 1, 1], [], []>} : vector<256x128xbf16>, vector<128x128xbf16>, vector<256x128xf32> -> vector<256x128xf32>
    %64 = arith.addf %59, %63 : vector<256x128xf32>
    %c0_69 = arith.constant 0 : index
    %c0_70 = arith.constant 0 : index
    %65 = vector.load %arg5[%c0_69, %c0_70] : memref<1x128xf32, #tpu.memory_space<vmem>>, vector<1x128xf32>
    %66 = vector.broadcast %65 : vector<1x128xf32> to vector<256x128xf32>
    %67 = arith.addf %64, %66 : vector<256x128xf32>
    %cst_71 = arith.constant 0.000000e+00 : f32
    %68 = vector.broadcast %cst_71 : f32 to vector<256x128xf32>
    %69 = arith.maximumf %67, %68 : vector<256x128xf32>
    %70 = vector.shape_cast %69 : vector<256x128xf32> to vector<16x16x128xf32>
    %c0_72 = arith.constant 0 : index
    %c0_73 = arith.constant 0 : index
    %c0_74 = arith.constant 0 : index
    %c0_75 = arith.constant 0 : index
    %71 = vector.load %arg6[%c0_72, %c0_73, %c0_74, %c0_75] : memref<1x16x16x128xf32, #tpu.memory_space<vmem>>, vector<1x16x16x128xf32>
    %72 = vector.shape_cast %71 : vector<1x16x16x128xf32> to vector<16x16x128xf32>
    %73 = vector.shape_cast %70 : vector<16x16x128xf32> to vector<1x16x16x128xf32>
    tpu.vector_store %arg6[%c0_72, %c0_73, %c0_74, %c0_75], %73 {strides = array<i32>} : memref<1x16x16x128xf32, #tpu.memory_space<vmem>>, vector<1x16x16x128xf32>,
    return
  }
  func.func @transform_0(%arg0: i32) -> (i32, i32, i32, i32) {
    %c0_i32 = arith.constant 0 : i32
    %c0_i32_0 = arith.constant 0 : i32
    %c0_i32_1 = arith.constant 0 : i32
    %c0_i32_2 = arith.constant 0 : i32
    return %arg0, %c0_i32, %c0_i32_0, %c0_i32_1 : i32, i32, i32, i32
  }
  func.func @transform_1(%arg0: i32) -> (i32, i32) {
    %c0_i32 = arith.constant 0 : i32
    %c0_i32_0 = arith.constant 0 : i32
    %c0_i32_1 = arith.constant 0 : i32
    return %c0_i32, %c0_i32_0 : i32, i32
  }
  func.func @transform_2(%arg0: i32) -> (i32, i32) {
    %c0_i32 = arith.constant 0 : i32
    %c0_i32_0 = arith.constant 0 : i32
    %c0_i32_1 = arith.constant 0 : i32
    return %c0_i32, %c0_i32_0 : i32, i32
  }
  func.func @transform_3(%arg0: i32) -> (i32, i32) {
    %c0_i32 = arith.constant 0 : i32
    %c0_i32_0 = arith.constant 0 : i32
    %c0_i32_1 = arith.constant 0 : i32
    return %c0_i32, %c0_i32_0 : i32, i32
  }
  func.func @transform_4(%arg0: i32) -> (i32, i32) {
    %c0_i32 = arith.constant 0 : i32
    %c0_i32_0 = arith.constant 0 : i32
    %c0_i32_1 = arith.constant 0 : i32
    return %c0_i32, %c0_i32_0 : i32, i32
  }
  func.func @transform_5(%arg0: i32) -> (i32, i32, i32, i32) {
    %c0_i32 = arith.constant 0 : i32
    %c0_i32_0 = arith.constant 0 : i32
    %c0_i32_1 = arith.constant 0 : i32
    %c0_i32_2 = arith.constant 0 : i32
    return %arg0, %c0_i32, %c0_i32_0, %c0_i32_1 : i32, i32, i32, i32
  }
}

</mosaic_0001>

<llo_original>
// kernel: tpu_custom_call.1
$region0: #{tpu_custom_call.1}
  #allocation0 [shape = 'u32[]', space=smem, size = 0x4, offset = 0x4, fixed_abs, tag = 'smem constant byte address 0x4 - core index']
  #allocation1 [shape = 'u32[144,128]{1,0:T(1,128)}', space=vmem, size = 0x12000, scoped, tag = 'internal scratch']
  #allocation2 [shape = 'bf16[18,18,128]{2,1,0:T(8,128)(2,1)}', space=vmem, size = 0x1b000, scoped, tag = 'scratch operand']
  %s0 = inlined_call_operand.hbm [shape: bf16[2,16,16,128], index: 0, kind: input, shape index: {}]
  %s1 = inlined_call_operand.hbm [shape: bf16[128,128], index: 1, kind: input, shape index: {}]
  %s2 = inlined_call_operand.vmem [shape: f32[1,128], index: 2, kind: input, shape index: {}]
  %s3 = inlined_call_operand.hbm [shape: bf16[1152,128], index: 3, kind: input, shape index: {}]
  %s4 = inlined_call_operand.vmem [shape: f32[1,128], index: 4, kind: input, shape index: {}]
  %s5 = inlined_call_operand.hbm [shape: f32[2,16,16,128], index: 5, kind: output, shape index: {}]
  %s6 = sld [smem:[#allocation0]]
  $region65: #{tpu_custom_call.1} parent=0
    _
  %s8 = ssub.s32 1, %s6
  %s9 = scalar_select 0, %s8, %s6
  $region1: #{tpu_custom_call.1} parent=0
    #allocation3 [shape = 'u8[131072]{0}', space=vmem, size = 0x20000, scoped, tag = 'input window, operand 0']
    #allocation4 [shape = 's32[2]{0}', space=sflag, size = 0x8, scoped, tag = 'scoped memory for tpu_custom_call.1']
    #allocation5 [shape = 's32[2]{0}', space=sflag, size = 0x8, scoped, tag = 'scoped memory for tpu_custom_call.1']
    #allocation6 [shape = 'u8[32768]{0}', space=vmem, size = 0x8000, scoped, tag = 'input window, operand 1, single buffered']
    #allocation7 [shape = 's32[1]{0}', space=sflag, size = 0x4, scoped, tag = 'scoped memory for tpu_custom_call.1']
    #allocation8 [shape = 'u8[294912]{0}', space=vmem, size = 0x48000, scoped, tag = 'input window, operand 3, single buffered']
    #allocation9 [shape = 'u8[262144]{0}', space=vmem, size = 0x40000, scoped, tag = 'output window, operand 0']
    %10 = vsyncpa [#allocation4], 0
    %s11 = scalar_lea.sflag [#allocation4], 1
    %12 = vsyncpa %s11, 0
    %13 = vsyncpa [#allocation7], 0
    %14 = vsyncpa [#allocation5], 0
    %s15 = scalar_lea.sflag [#allocation5], 1
    %16 = vsyncpa %s15, 0
    loop: start=0, step=1, limit=4
    $region2: #{tpu_custom_call.1} parent=1 // loop_pre_header
      _
    $region3: #{tpu_custom_call.1} parent=1 // loop_header
      %s18 = sphi 0, %s22
      %p19 = scmp.ge.s32.totalorder %s18, 4
      %s28 = sphi 0, %s30
      %s31 = sphi 0, %s28
      %s32 = sphi 0, %s31
      %s48 = sphi 0, %s32
      %s52 = sphi 0, %s52
      %s54 = sphi 0, %s52
      %s55 = sphi 0, %s54
      %s69 = sphi 0, %s55
      %s73 = sphi 0, %s73
      %s75 = sphi 0, %s73
      %s76 = sphi 0, %s75
      %s90 = sphi 0, %s76
      %s94 = sphi 0, %s94
      %s96 = sphi 0, %s94
      %s97 = sphi 0, %s96
      %s111 = sphi 0, %s97
      %s115 = sphi 0, %s115
      %s117 = sphi 0, %s115
      %s118 = sphi 0, %s117
      %s132 = sphi 0, %s118
      %s138 = sphi 0, %s140
      %s141 = sphi 0, %s138
      %s142 = sphi 0, %s141
      %s158 = sphi 0, %s142
    $region4: #{tpu_custom_call.1} parent=1 // loop_header_branch
      %21 = sbr.rel (%p19) target = $region8
    $region5: #{tpu_custom_call.1} parent=1 // loop_body
      %s23 = ssub.s32 %s18, 1
      %s24 = ssub.s32 %s18, 2
      %s25 = sadd.s32 %s18, 1
      %s26 = ssub.s32 %s18, %s25
      %p27 = scmp.eq.s32.totalorder %s26, 0
      %s29 = sadd.s32 %s28, 1
      %s30 = scalar_select %p27, %s28, %s29
      %p33 = pneg %p27
      %p34 = scmp.eq.s32.totalorder %s18, 1
      %p35 = por %p33, %p34
      %p36 = scmp.ne.s32.totalorder %s28, %s31
      %p37 = scmp.eq.s32.totalorder %s18, 0
      %p38 = por %p36, %p37
      %p39 = scmp.ne.s32.totalorder %s28, %s31
      %p40 = scmp.eq.s32.totalorder %s23, 1
      %p41 = por %p39, %p40
      %p42 = scmp.ne.s32.totalorder %s31, %s32
      %p43 = scmp.eq.s32.totalorder %s23, 0
      %p44 = por %p42, %p43
      %p45 = scmp.ne.s32.totalorder %s31, %s32
      %p46 = scmp.eq.s32.totalorder %s24, 1
      %p47 = por %p45, %p46
      %p49 = scmp.ne.s32.totalorder %s32, %s48
      %p50 = scmp.eq.s32.totalorder %s24, 0
      %p51 = por %p49, %p50
      %s53 = sadd.s32 %s52, 1
      %p56 = scmp.eq.s32.totalorder %s18, 1
      %p57 = scmp.ne.s32.totalorder %s52, %s54
      %p58 = scmp.eq.s32.totalorder %s18, 0
      %p59 = por %p57, %p58
      %p60 = scmp.ne.s32.totalorder %s52, %s54
      %p61 = scmp.eq.s32.totalorder %s23, 1
      %p62 = por %p60, %p61
      %p63 = scmp.ne.s32.totalorder %s54, %s55
      %p64 = scmp.eq.s32.totalorder %s23, 0
      %p65 = por %p63, %p64
      %p66 = scmp.ne.s32.totalorder %s54, %s55
      %p67 = scmp.eq.s32.totalorder %s24, 1
      %p68 = por %p66, %p67
      %p70 = scmp.ne.s32.totalorder %s55, %s69
      %p71 = scmp.eq.s32.totalorder %s24, 0
      %p72 = por %p70, %p71
      %s74 = sadd.s32 %s73, 1
      %p77 = scmp.eq.s32.totalorder %s18, 1
      %p78 = scmp.ne.s32.totalorder %s73, %s75
      %p79 = scmp.eq.s32.totalorder %s18, 0
      %p80 = por %p78, %p79
      %p81 = scmp.ne.s32.totalorder %s73, %s75
      %p82 = scmp.eq.s32.totalorder %s23, 1
      %p83 = por %p81, %p82
      %p84 = scmp.ne.s32.totalorder %s75, %s76
      %p85 = scmp.eq.s32.totalorder %s23, 0
      %p86 = por %p84, %p85
      %p87 = scmp.ne.s32.totalorder %s75, %s76
      %p88 = scmp.eq.s32.totalorder %s24, 1
      %p89 = por %p87, %p88
      %p91 = scmp.ne.s32.totalorder %s76, %s90
      %p92 = scmp.eq.s32.totalorder %s24, 0
      %p93 = por %p91, %p92
      %s95 = sadd.s32 %s94, 1
      %p98 = scmp.eq.s32.totalorder %s18, 1
      %p99 = scmp.ne.s32.totalorder %s94, %s96
      %p100 = scmp.eq.s32.totalorder %s18, 0
      %p101 = por %p99, %p100
      %p102 = scmp.ne.s32.totalorder %s94, %s96
      %p103 = scmp.eq.s32.totalorder %s23, 1
      %p104 = por %p102, %p103
      %p105 = scmp.ne.s32.totalorder %s96, %s97
      %p106 = scmp.eq.s32.totalorder %s23, 0
      %p107 = por %p105, %p106
      %p108 = scmp.ne.s32.totalorder %s96, %s97
      %p109 = scmp.eq.s32.totalorder %s24, 1
      %p110 = por %p108, %p109
      %p112 = scmp.ne.s32.totalorder %s97, %s111
      %p113 = scmp.eq.s32.totalorder %s24, 0
      %p114 = por %p112, %p113
      %s116 = sadd.s32 %s115, 1
      %p119 = scmp.eq.s32.totalorder %s18, 1
      %p120 = scmp.ne.s32.totalorder %s115, %s117
      %p121 = scmp.eq.s32.totalorder %s18, 0
      %p122 = por %p120, %p121
      %p123 = scmp.ne.s32.totalorder %s115, %s117
      %p124 = scmp.eq.s32.totalorder %s23, 1
      %p125 = por %p123, %p124
      %p126 = scmp.ne.s32.totalorder %s117, %s118
      %p127 = scmp.eq.s32.totalorder %s23, 0
      %p128 = por %p126, %p127
      %p129 = scmp.ne.s32.totalorder %s117, %s118
      %p130 = scmp.eq.s32.totalorder %s24, 1
      %p131 = por %p129, %p130
      %p133 = scmp.ne.s32.totalorder %s118, %s132
      %p134 = scmp.eq.s32.totalorder %s24, 0
      %p135 = por %p133, %p134
      %s136 = ssub.s32 %s18, %s25
      %p137 = scmp.eq.s32.totalorder %s136, 0
      %s139 = sadd.s32 %s138, 1
      %s140 = scalar_select %p137, %s138, %s139
      %p143 = pneg %p137
      %p144 = scmp.eq.s32.totalorder %s18, 1
      %p145 = por %p143, %p144
      %p146 = scmp.ne.s32.totalorder %s138, %s141
      %p147 = scmp.eq.s32.totalorder %s18, 0
      %p148 = por %p146, %p147
      %p149 = scmp.ne.s32.totalorder %s138, %s141
      %p150 = scmp.eq.s32.totalorder %s23, 1
      %p151 = por %p149, %p150
      %p152 = scmp.ne.s32.totalorder %s141, %s142
      %p153 = scmp.eq.s32.totalorder %s23, 0
      %p154 = por %p152, %p153
      %p155 = scmp.ne.s32.totalorder %s141, %s142
      %p156 = scmp.eq.s32.totalorder %s24, 1
      %p157 = por %p155, %p156
      %p159 = scmp.ne.s32.totalorder %s142, %s158
      %p160 = scmp.eq.s32.totalorder %s24, 0
      %p161 = por %p159, %p160
      %p162 = scmp.le.s32.totalorder 1, %s18
      %p163 = scmp.lt.s32.totalorder %s18, 3
      %p164 = pnand %p162, %p163
      %p165 = pneg %p164
      // Predicated region
      $region9: #{tpu_custom_call.1} parent=5 // pred_check
        _
      $region10: #{tpu_custom_call.1} parent=5 // pred_check_branch
        %167 = sbr.rel (%p164) target = $region12
      $region11: #{tpu_custom_call.1} parent=5 // pred_region
        %s168 = ssub.s32 %s18, 1
        // Predicated region
        $region13: #{tpu_custom_call.1} parent=11 // pred_check
          %p169 = pneg %p65
        $region14: #{tpu_custom_call.1} parent=11 // pred_check_branch
          %171 = sbr.rel (%p169) target = $region16
        $region15: #{tpu_custom_call.1} parent=11 // pred_region
          %s173 = ssub.s32 1024, 1024
          %174 = vsyncadd [#allocation7], %s173
          %s175 = sshll.u32 [#allocation6], 4
          %s176 = int_to_ptr.vmem [resolvable:$true] %s175
          %181 = dma.hbm_to_vmem [thread:$0]  %s1, 1024, %s176, [#allocation7], 64, 64, 4
        $region16: #{tpu_custom_call.1} parent=11 // pred_fallthru
          _
        // Predicated region
        $region17: #{tpu_custom_call.1} parent=11 // pred_check
          %p182 = pneg %p86
        $region18: #{tpu_custom_call.1} parent=11 // pred_check_branch
          %184 = sbr.rel (%p182) target = $region20
        $region19: #{tpu_custom_call.1} parent=11 // pred_region
          _
        $region20: #{tpu_custom_call.1} parent=11 // pred_fallthru
          _
        // Predicated region
        $region21: #{tpu_custom_call.1} parent=11 // pred_check
          %p185 = pneg %p107
        $region22: #{tpu_custom_call.1} parent=11 // pred_check_branch
          %187 = sbr.rel (%p185) target = $region24
        $region23: #{tpu_custom_call.1} parent=11 // pred_region
          %s189 = ssub.s32 9216, 9216
          %190 = vsyncadd [#allocation7], %s189
          %s191 = sshll.u32 [#allocation8], 4
          %s192 = int_to_ptr.vmem [resolvable:$true] %s191
          %197 = dma.hbm_to_vmem [thread:$0]  %s3, 9216, %s192, [#allocation7], 64, 64, 4
        $region24: #{tpu_custom_call.1} parent=11 // pred_fallthru
          _
        // Predicated region
        $region25: #{tpu_custom_call.1} parent=11 // pred_check
          %p198 = pneg %p128
        $region26: #{tpu_custom_call.1} parent=11 // pred_check_branch
          %200 = sbr.rel (%p198) target = $region28
        $region27: #{tpu_custom_call.1} parent=11 // pred_region
          _
        $region28: #{tpu_custom_call.1} parent=11 // pred_fallthru
          _
      $region12: #{tpu_custom_call.1} parent=5 // pred_fallthru
        _
      %p201 = scmp.lt.s32.totalorder %s18, 2
      // Predicated region
      $region29: #{tpu_custom_call.1} parent=5 // pred_check
        %p202 = pneg %p201
      $region30: #{tpu_custom_call.1} parent=5 // pred_check_branch
        %204 = sbr.rel (%p202) target = $region32
      $region31: #{tpu_custom_call.1} parent=5 // pred_region
        // Predicated region
        $region33: #{tpu_custom_call.1} parent=31 // pred_check
          %p205 = pneg %p38
        $region34: #{tpu_custom_call.1} parent=31 // pred_check_branch
          %207 = sbr.rel (%p205) target = $region36
        $region35: #{tpu_custom_call.1} parent=31 // pred_region
          %s208 = sand.u32 %s28, 1
          %s209 = scalar_lea.sflag [#allocation4], %s208
          %s210 = sand.u32 %s28, 1
          %s211 = smul.addr %s210, 128
          %s212 = scalar_lea.vmem [#allocation3], %s211
          %s214 = ssub.s32 2048, 2048
          %215 = vsyncadd %s209, %s214
          %s216 = smul.addr %s18, 32
          %s217 = smul.addr %s216, 64
          %s218 = scalar_lea.hbm %s0, %s217
          %s219 = sshll.u32 %s212, 4
          %s220 = int_to_ptr.vmem [resolvable:$true] %s219
          %225 = dma.hbm_to_vmem [thread:$0]  %s218, 2048, %s220, %s209, 64, 64, 4
        $region36: #{tpu_custom_call.1} parent=31 // pred_fallthru
          _
      $region32: #{tpu_custom_call.1} parent=5 // pred_fallthru
        _
      %p226 = scmp.le.s32.totalorder 1, %s18
      %p227 = scmp.lt.s32.totalorder %s18, 3
      %p228 = pnand %p226, %p227
      %p229 = pneg %p228
      // Predicated region
      $region37: #{tpu_custom_call.1} parent=5 // pred_check
        _
      $region38: #{tpu_custom_call.1} parent=5 // pred_check_branch
        %231 = sbr.rel (%p228) target = $region40
      $region39: #{tpu_custom_call.1} parent=5 // pred_region
        %s232 = ssub.s32 %s18, 1
        %s233 = sand.u32 %s31, 1
        %s234 = scalar_lea.sflag [#allocation4], %s233
        %s235 = sand.u32 %s31, 1
        %s236 = smul.addr %s235, 128
        %s237 = scalar_lea.vmem [#allocation3], %s236
        // Predicated region
        $region41: #{tpu_custom_call.1} parent=39 // pred_check
          %p238 = pneg %p44
        $region42: #{tpu_custom_call.1} parent=39 // pred_check_branch
          %240 = sbr.rel (%p238) target = $region44
        $region43: #{tpu_custom_call.1} parent=39 // pred_region
          %241 = dma.done %s234, 2048
        $region44: #{tpu_custom_call.1} parent=39 // pred_fallthru
          _
        // Predicated region
        $region45: #{tpu_custom_call.1} parent=39 // pred_check
          %p242 = pneg %p65
        $region46: #{tpu_custom_call.1} parent=39 // pred_check_branch
          %244 = sbr.rel (%p242) target = $region48
        $region47: #{tpu_custom_call.1} parent=39 // pred_region
          %245 = dma.done [#allocation7], 1024
        $region48: #{tpu_custom_call.1} parent=39 // pred_fallthru
          _
        // Predicated region
        $region49: #{tpu_custom_call.1} parent=39 // pred_check
          %p246 = pneg %p107
        $region50: #{tpu_custom_call.1} parent=39 // pred_check_branch
          %248 = sbr.rel (%p246) target = $region52
        $region51: #{tpu_custom_call.1} parent=39 // pred_region
          %249 = dma.done [#allocation7], 9216
        $region52: #{tpu_custom_call.1} parent=39 // pred_fallthru
          _
        %s250 = sand.u32 %s31, 1
        %s251 = scalar_lea.sflag [#allocation4], %s250
        %s252 = sand.u32 %s31, 1
        %s253 = smul.addr %s252, 128
        %s254 = scalar_lea.vmem [#allocation3], %s253
        %p255 = pneg %p44
        %p256 = pneg %p41
        %p257 = pneg %p65
        %p258 = pneg %p62
        %p259 = pneg %p86
        %p260 = pneg %p83
        %p261 = pneg %p107
        %p262 = pneg %p104
        %p263 = pneg %p128
        %p264 = pneg %p125
        %p265 = pneg %p154
        %p266 = pneg %p151
        %s267 = sand.u32 %s141, 1
        %s268 = scalar_lea.sflag [#allocation5], %s267
        %s269 = sand.u32 %s141, 1
        %s270 = smul.addr %s269, 256
        %s271 = scalar_lea.vmem [#allocation9], %s270
        %v273 = vld [vmem:[%s237] sm:$0xf]
        %v274 = vld [vmem:[%s237 + $0x4] sm:$0xf]
        %v275 = vld [vmem:[%s237 + $0x8] sm:$0xf]
        %v276 = vld [vmem:[%s237 + $0xc] sm:$0xf]
        %v277 = vld [vmem:[%s237 + $0x10] sm:$0xf]
        %v278 = vld [vmem:[%s237 + $0x14] sm:$0xf]
        %v279 = vld [vmem:[%s237 + $0x18] sm:$0xf]
        %v280 = vld [vmem:[%s237 + $0x1c] sm:$0xf]
        %v281 = vld [vmem:[%s237 + $0x20] sm:$0xf]
        %v282 = vld [vmem:[%s237 + $0x24] sm:$0xf]
        %v283 = vld [vmem:[%s237 + $0x28] sm:$0xf]
        %v284 = vld [vmem:[%s237 + $0x2c] sm:$0xf]
        %v285 = vld [vmem:[%s237 + $0x30] sm:$0xf]
        %v286 = vld [vmem:[%s237 + $0x34] sm:$0xf]
        %v287 = vld [vmem:[%s237 + $0x38] sm:$0xf]
        %v288 = vld [vmem:[%s237 + $0x3c] sm:$0xf]
        %v289 = vld [vmem:[%s237 + $0x40] sm:$0xf]
        %v290 = vld [vmem:[%s237 + $0x44] sm:$0xf]
        %v291 = vld [vmem:[%s237 + $0x48] sm:$0xf]
        %v292 = vld [vmem:[%s237 + $0x4c] sm:$0xf]
        %v293 = vld [vmem:[%s237 + $0x50] sm:$0xf]
        %v294 = vld [vmem:[%s237 + $0x54] sm:$0xf]
        %v295 = vld [vmem:[%s237 + $0x58] sm:$0xf]
        %v296 = vld [vmem:[%s237 + $0x5c] sm:$0xf]
        %v297 = vld [vmem:[%s237 + $0x60] sm:$0xf]
        %v298 = vld [vmem:[%s237 + $0x64] sm:$0xf]
        %v299 = vld [vmem:[%s237 + $0x68] sm:$0xf]
        %v300 = vld [vmem:[%s237 + $0x6c] sm:$0xf]
        %v301 = vld [vmem:[%s237 + $0x70] sm:$0xf]
        %v302 = vld [vmem:[%s237 + $0x74] sm:$0xf]
        %v303 = vld [vmem:[%s237 + $0x78] sm:$0xf]
        %v304 = vld [vmem:[%s237 + $0x7c] sm:$0xf]
        %v305 = vld [vmem:[#allocation6] sm:$0xf]
        %v306 = vld [vmem:[#allocation6 + $0x4] sm:$0xf]
        %v307 = vld [vmem:[#allocation6 + $0x8] sm:$0xf]
        %v308 = vld [vmem:[#allocation6 + $0xc] sm:$0xf]
        %v309 = vld [vmem:[#allocation6 + $0x10] sm:$0xf]
        %v310 = vld [vmem:[#allocation6 + $0x14] sm:$0xf]
        %v311 = vld [vmem:[#allocation6 + $0x18] sm:$0xf]
        %v312 = vld [vmem:[#allocation6 + $0x1c] sm:$0xf]
        %v313 = vld [vmem:[#allocation6 + $0x20] sm:$0xf]
        %v314 = vld [vmem:[#allocation6 + $0x24] sm:$0xf]
        %v315 = vld [vmem:[#allocation6 + $0x28] sm:$0xf]
        %v316 = vld [vmem:[#allocation6 + $0x2c] sm:$0xf]
        %v317 = vld [vmem:[#allocation6 + $0x30] sm:$0xf]
        %v318 = vld [vmem:[#allocation6 + $0x34] sm:$0xf]
        %v319 = vld [vmem:[#allocation6 + $0x38] sm:$0xf]
        %v320 = vld [vmem:[#allocation6 + $0x3c] sm:$0xf]
        %v321 = vld [vmem:[%s2] sm:$0x1]
        %v323 = vlaneseq
        %v324 = vshrl.u32 %v323, 7
        %v325 = vsub.s32 0, %v324
        %v326 = vrot.slane %v321, %v325
        %v360 = vunpack.c.l.b16 %v273
        %v361 = vunpack.c.l.b16 %v274
        %v362 = vunpack.c.l.b16 %v275
        %v363 = vunpack.c.l.b16 %v276
        %v364 = vunpack.c.l.b16 %v277
        %v365 = vunpack.c.l.b16 %v278
        %v366 = vunpack.c.l.b16 %v279
        %v367 = vunpack.c.l.b16 %v280
        %v368 = vunpack.c.l.b16 %v281
        %v369 = vunpack.c.l.b16 %v282
        %v370 = vunpack.c.l.b16 %v283
        %v371 = vunpack.c.l.b16 %v284
        %v372 = vunpack.c.l.b16 %v285
        %v373 = vunpack.c.l.b16 %v286
        %v374 = vunpack.c.l.b16 %v287
        %v375 = vunpack.c.l.b16 %v288
        %v376 = vunpack.c.l.b16 %v289
        %v377 = vunpack.c.l.b16 %v290
        %v378 = vunpack.c.l.b16 %v291
        %v379 = vunpack.c.l.b16 %v292
        %v380 = vunpack.c.l.b16 %v293
        %v381 = vunpack.c.l.b16 %v294
        %v382 = vunpack.c.l.b16 %v295
        %v383 = vunpack.c.l.b16 %v296
        %v384 = vunpack.c.l.b16 %v297
        %v385 = vunpack.c.l.b16 %v298
        %v386 = vunpack.c.l.b16 %v299
        %v387 = vunpack.c.l.b16 %v300
        %v388 = vunpack.c.l.b16 %v301
        %v389 = vunpack.c.l.b16 %v302
        %v390 = vunpack.c.l.b16 %v303
        %v391 = vunpack.c.l.b16 %v304
        %v392 = vpack.c.b16 %v361, %v360
        %v393 = vpack.c.b16 %v363, %v362
        %v394 = vpack.c.b16 %v365, %v364
        %v395 = vpack.c.b16 %v367, %v366
        %v396 = vpack.c.b16 %v369, %v368
        %v397 = vpack.c.b16 %v371, %v370
        %v398 = vpack.c.b16 %v373, %v372
        %v399 = vpack.c.b16 %v375, %v374
        %v400 = vpack.c.b16 %v377, %v376
        %v401 = vpack.c.b16 %v379, %v378
        %v402 = vpack.c.b16 %v381, %v380
        %v403 = vpack.c.b16 %v383, %v382
        %v404 = vpack.c.b16 %v385, %v384
        %v405 = vpack.c.b16 %v387, %v386
        %v406 = vpack.c.b16 %v389, %v388
        %v407 = vpack.c.b16 %v391, %v390
        %v440 = vunpack.c.l.b16 %v305
        %v441 = vunpack.c.l.b16 %v306
        %v442 = vunpack.c.l.b16 %v307
        %v443 = vunpack.c.l.b16 %v308
        %v444 = vunpack.c.l.b16 %v309
        %v445 = vunpack.c.l.b16 %v310
        %v446 = vunpack.c.l.b16 %v311
        %v447 = vunpack.c.l.b16 %v312
        %v448 = vunpack.c.l.b16 %v313
        %v449 = vunpack.c.l.b16 %v314
        %v450 = vunpack.c.l.b16 %v315
        %v451 = vunpack.c.l.b16 %v316
        %v452 = vunpack.c.l.b16 %v317
        %v453 = vunpack.c.l.b16 %v318
        %v454 = vunpack.c.l.b16 %v319
        %v455 = vunpack.c.l.b16 %v320
        %v456 = vpack.c.b16 %v441, %v440
        %v457 = vpack.c.b16 %v443, %v442
        %v458 = vpack.c.b16 %v445, %v444
        %v459 = vpack.c.b16 %v447, %v446
        %v460 = vpack.c.b16 %v449, %v448
        %v461 = vpack.c.b16 %v451, %v450
        %v462 = vpack.c.b16 %v453, %v452
        %v463 = vpack.c.b16 %v455, %v454
        %472 = vmatprep.subr.bf16.mxu0 0
        %473 = vmatpush1.bf16.msra.mxu0 %v456
        %474 = vmatprep.subr.bf16.mxu0 0
        %475 = vmatpush1.bf16.msra.mxu0 %v457
        %476 = vmatprep.subr.bf16.mxu0 0
        %477 = vmatpush1.bf16.msra.mxu0 %v458
        %478 = vmatprep.subr.bf16.mxu0 0
        %479 = vmatpush1.bf16.msra.mxu0 %v459
        %480 = vmatprep.subr.bf16.mxu0 0
        %481 = vmatpush1.bf16.msra.mxu0 %v460
        %482 = vmatprep.subr.bf16.mxu0 0
        %483 = vmatpush1.bf16.msra.mxu0 %v461
        %484 = vmatprep.subr.bf16.mxu0 0
        %485 = vmatpush1.bf16.msra.mxu0 %v462
        %486 = vmatprep.subr.bf16.mxu0 0
        %487 = vmatpush1.bf16.msra.mxu0 %v463
        %488 = vmatprep.subr.bf16.mxu0 0
        %489 = vmatpush1.bf16.msra.mxu0 0
        %490 = vmatprep.subr.bf16.mxu0 0
        %491 = vmatpush1.bf16.msra.mxu0 0
        %492 = vmatprep.subr.bf16.mxu0 0
        %493 = vmatpush1.bf16.msra.mxu0 0
        %494 = vmatprep.subr.bf16.mxu0 0
        %495 = vmatpush1.bf16.msra.mxu0 0
        %496 = vmatprep.subr.bf16.mxu0 0
        %497 = vmatpush1.bf16.msra.mxu0 0
        %498 = vmatprep.subr.bf16.mxu0 0
        %499 = vmatpush1.bf16.msra.mxu0 0
        %500 = vmatprep.subr.bf16.mxu0 0
        %501 = vmatpush1.bf16.msra.mxu0 0
        %502 = vmatprep.subr.bf16.mxu0 0
        %503 = vmatpush1.bf16.msra.mxu0 0
        %504 = vmatprep.mubr.bf16.mxu0 0
        %505 = vmatmul.mubr.bf16.gmra.mrb[0].mxu0 %v392
        %v506 = vpop.f32.mrb[0].mxu0
        %v507 = vadd.f32 %v326, %v506
        %v508 = vpop.f32.mrb[0].mxu0
        %v509 = vpop.f32.mrb[0].mxu0
        %v510 = vadd.f32 %v326, %v509
        %v511 = vpop.f32.mrb[0].mxu0
        %512 = vmatprep.mubr.bf16.mxu0 0
        %513 = vmatmul.mubr.bf16.gmra.mrb[0].mxu0 %v393
        %v514 = vpop.f32.mrb[0].mxu0
        %v515 = vadd.f32 %v326, %v514
        %v516 = vpop.f32.mrb[0].mxu0
        %v517 = vpop.f32.mrb[0].mxu0
        %v518 = vadd.f32 %v326, %v517
        %v519 = vpop.f32.mrb[0].mxu0
        %520 = vmatprep.mubr.bf16.mxu0 0
        %521 = vmatmul.mubr.bf16.gmra.mrb[0].mxu0 %v394
        %v522 = vpop.f32.mrb[0].mxu0
        %v523 = vadd.f32 %v326, %v522
        %v524 = vpop.f32.mrb[0].mxu0
        %v525 = vpop.f32.mrb[0].mxu0
        %v526 = vadd.f32 %v326, %v525
        %v527 = vpop.f32.mrb[0].mxu0
        %528 = vmatprep.mubr.bf16.mxu0 0
        %529 = vmatmul.mubr.bf16.gmra.mrb[0].mxu0 %v395
        %v530 = vpop.f32.mrb[0].mxu0
        %v531 = vadd.f32 %v326, %v530
        %v532 = vpop.f32.mrb[0].mxu0
        %v533 = vpop.f32.mrb[0].mxu0
        %v534 = vadd.f32 %v326, %v533
        %v535 = vpop.f32.mrb[0].mxu0
        %536 = vmatprep.mubr.bf16.mxu0 0
        %537 = vmatmul.mubr.bf16.gmra.mrb[0].mxu0 %v396
        %v538 = vpop.f32.mrb[0].mxu0
        %v539 = vadd.f32 %v326, %v538
        %v540 = vpop.f32.mrb[0].mxu0
        %v541 = vpop.f32.mrb[0].mxu0
        %v542 = vadd.f32 %v326, %v541
        %v543 = vpop.f32.mrb[0].mxu0
        %544 = vmatprep.mubr.bf16.mxu0 0
        %545 = vmatmul.mubr.bf16.gmra.mrb[0].mxu0 %v397
        %v546 = vpop.f32.mrb[0].mxu0
        %v547 = vadd.f32 %v326, %v546
        %v548 = vpop.f32.mrb[0].mxu0
        %v549 = vpop.f32.mrb[0].mxu0
        %v550 = vadd.f32 %v326, %v549
        %v551 = vpop.f32.mrb[0].mxu0
        %552 = vmatprep.mubr.bf16.mxu0 0
        %553 = vmatmul.mubr.bf16.gmra.mrb[0].mxu0 %v398
        %v554 = vpop.f32.mrb[0].mxu0
        %v555 = vadd.f32 %v326, %v554
        %v556 = vpop.f32.mrb[0].mxu0
        %v557 = vpop.f32.mrb[0].mxu0
        %v558 = vadd.f32 %v326, %v557
        %v559 = vpop.f32.mrb[0].mxu0
        %560 = vmatprep.mubr.bf16.mxu0 0
        %561 = vmatmul.mubr.bf16.gmra.mrb[0].mxu0 %v399
        %v562 = vpop.f32.mrb[0].mxu0
        %v563 = vadd.f32 %v326, %v562
        %v564 = vpop.f32.mrb[0].mxu0
        %v565 = vpop.f32.mrb[0].mxu0
        %v566 = vadd.f32 %v326, %v565
        %v567 = vpop.f32.mrb[0].mxu0
        %568 = vmatprep.mubr.bf16.mxu0 0
        %569 = vmatmul.mubr.bf16.gmra.mrb[0].mxu0 %v400
        %v570 = vpop.f32.mrb[0].mxu0
        %v571 = vadd.f32 %v326, %v570
        %v572 = vpop.f32.mrb[0].mxu0
        %v573 = vpop.f32.mrb[0].mxu0
        %v574 = vadd.f32 %v326, %v573
        %v575 = vpop.f32.mrb[0].mxu0
        %576 = vmatprep.mubr.bf16.mxu0 0
        %577 = vmatmul.mubr.bf16.gmra.mrb[0].mxu0 %v401
        %v578 = vpop.f32.mrb[0].mxu0
        %v579 = vadd.f32 %v326, %v578
        %v580 = vpop.f32.mrb[0].mxu0
        %v581 = vpop.f32.mrb[0].mxu0
        %v582 = vadd.f32 %v326, %v581
        %v583 = vpop.f32.mrb[0].mxu0
        %584 = vmatprep.mubr.bf16.mxu0 0
        %585 = vmatmul.mubr.bf16.gmra.mrb[0].mxu0 %v402
        %v586 = vpop.f32.mrb[0].mxu0
        %v587 = vadd.f32 %v326, %v586
        %v588 = vpop.f32.mrb[0].mxu0
        %v589 = vpop.f32.mrb[0].mxu0
        %v590 = vadd.f32 %v326, %v589
        %v591 = vpop.f32.mrb[0].mxu0
        %592 = vmatprep.mubr.bf16.mxu0 0
        %593 = vmatmul.mubr.bf16.gmra.mrb[0].mxu0 %v403
        %v594 = vpop.f32.mrb[0].mxu0
        %v595 = vadd.f32 %v326, %v594
        %v596 = vpop.f32.mrb[0].mxu0
        %v597 = vpop.f32.mrb[0].mxu0
        %v598 = vadd.f32 %v326, %v597
        %v599 = vpop.f32.mrb[0].mxu0
        %600 = vmatprep.mubr.bf16.mxu0 0
        %601 = vmatmul.mubr.bf16.gmra.mrb[0].mxu0 %v404
        %v602 = vpop.f32.mrb[0].mxu0
        %v603 = vadd.f32 %v326, %v602
        %v604 = vpop.f32.mrb[0].mxu0
        %v605 = vpop.f32.mrb[0].mxu0
        %v606 = vadd.f32 %v326, %v605
        %v607 = vpop.f32.mrb[0].mxu0
        %608 = vmatprep.mubr.bf16.mxu0 0
        %609 = vmatmul.mubr.bf16.gmra.mrb[0].mxu0 %v405
        %v610 = vpop.f32.mrb[0].mxu0
        %v611 = vadd.f32 %v326, %v610
        %v612 = vpop.f32.mrb[0].mxu0
        %v613 = vpop.f32.mrb[0].mxu0
        %v614 = vadd.f32 %v326, %v613
        %v615 = vpop.f32.mrb[0].mxu0
        %616 = vmatprep.mubr.bf16.mxu0 0
        %617 = vmatmul.mubr.bf16.gmra.mrb[0].mxu0 %v406
        %v618 = vpop.f32.mrb[0].mxu0
        %v619 = vadd.f32 %v326, %v618
        %v620 = vpop.f32.mrb[0].mxu0
        %v621 = vpop.f32.mrb[0].mxu0
        %v622 = vadd.f32 %v326, %v621
        %v623 = vpop.f32.mrb[0].mxu0
        %624 = vmatprep.mubr.bf16.mxu0 0
        %625 = vmatmul.mubr.bf16.gmra.mrb[0].mxu0 %v407
        %v626 = vpop.f32.mrb[0].mxu0
        %v627 = vadd.f32 %v326, %v626
        %v628 = vpop.f32.mrb[0].mxu0
        %v629 = vpop.f32.mrb[0].mxu0
        %v630 = vadd.f32 %v326, %v629
        %v631 = vpop.f32.mrb[0].mxu0
        %632 = vdwg.mxu0
        %v633 = vmax.f32 %v507, 0.0
        %v634 = vmax.f32 %v510, 0.0
        %v635 = vmax.f32 %v515, 0.0
        %v636 = vmax.f32 %v518, 0.0
        %v637 = vmax.f32 %v523, 0.0
        %v638 = vmax.f32 %v526, 0.0
        %v639 = vmax.f32 %v531, 0.0
        %v640 = vmax.f32 %v534, 0.0
        %v641 = vmax.f32 %v539, 0.0
        %v642 = vmax.f32 %v542, 0.0
        %v643 = vmax.f32 %v547, 0.0
        %v644 = vmax.f32 %v550, 0.0
        %v645 = vmax.f32 %v555, 0.0
        %v646 = vmax.f32 %v558, 0.0
        %v647 = vmax.f32 %v563, 0.0
        %v648 = vmax.f32 %v566, 0.0
        %v649 = vmax.f32 %v571, 0.0
        %v650 = vmax.f32 %v574, 0.0
        %v651 = vmax.f32 %v579, 0.0
        %v652 = vmax.f32 %v582, 0.0
        %v653 = vmax.f32 %v587, 0.0
        %v654 = vmax.f32 %v590, 0.0
        %v655 = vmax.f32 %v595, 0.0
        %v656 = vmax.f32 %v598, 0.0
        %v657 = vmax.f32 %v603, 0.0
        %v658 = vmax.f32 %v606, 0.0
        %v659 = vmax.f32 %v611, 0.0
        %v660 = vmax.f32 %v614, 0.0
        %v661 = vmax.f32 %v619, 0.0
        %v662 = vmax.f32 %v622, 0.0
        %v663 = vmax.f32 %v627, 0.0
        %v664 = vmax.f32 %v630, 0.0
        %665 = vst [vmem:[#allocation2] sm:$0xf] 0
        %666 = vst [vmem:[#allocation2 + $0x4] sm:$0xf] 0
        %667 = vst [vmem:[#allocation2 + $0x8] sm:$0x1] 0
        %s668 = scalar_lea.vmem [#allocation2], 204
        %669 = vst [vmem:[%s668] sm:$0xf] 0
        %670 = vst [vmem:[%s668 + $0x4] sm:$0xf] 0
        %671 = vst [vmem:[%s668 + $0x8] sm:$0x1] 0
        %vm672 = vcmask 1040384
        %vm673 = vsmask.f32 256
        %vm674 = vmand %vm672, %vm673
        %v675 = vld [vmem:[#allocation2] sm:$0x1]
        %v676 = vsel %vm674, 0, %v675
        %677 = vst [vmem:[#allocation2] sm:$0x1] %v676
        %v678 = vld [vmem:[#allocation2 + $0xc] sm:$0x1]
        %v679 = vsel %vm674, 0, %v678
        %680 = vst [vmem:[#allocation2 + $0xc] sm:$0x1] %v679
        %v681 = vld [vmem:[#allocation2 + $0x18] sm:$0x1]
        %v682 = vsel %vm674, 0, %v681
        %683 = vst [vmem:[#allocation2 + $0x18] sm:$0x1] %v682
        %v684 = vld [vmem:[#allocation2 + $0x24] sm:$0x1]
        %v685 = vsel %vm674, 0, %v684
        %686 = vst [vmem:[#allocation2 + $0x24] sm:$0x1] %v685
        %v687 = vld [vmem:[#allocation2 + $0x30] sm:$0x1]
        %v688 = vsel %vm674, 0, %v687
        %689 = vst [vmem:[#allocation2 + $0x30] sm:$0x1] %v688
        %v690 = vld [vmem:[#allocation2 + $0x3c] sm:$0x1]
        %v691 = vsel %vm674, 0, %v690
        %692 = vst [vmem:[#allocation2 + $0x3c] sm:$0x1] %v691
        %v693 = vld [vmem:[#allocation2 + $0x48] sm:$0x1]
        %v694 = vsel %vm674, 0, %v693
        %695 = vst [vmem:[#allocation2 + $0x48] sm:$0x1] %v694
        %v696 = vld [vmem:[#allocation2 + $0x54] sm:$0x1]
        %v697 = vsel %vm674, 0, %v696
        %698 = vst [vmem:[#allocation2 + $0x54] sm:$0x1] %v697
        %v699 = vld [vmem:[#allocation2 + $0x60] sm:$0x1]
        %v700 = vsel %vm674, 0, %v699
        %701 = vst [vmem:[#allocation2 + $0x60] sm:$0x1] %v700
        %v702 = vld [vmem:[#allocation2 + $0x6c] sm:$0x1]
        %v703 = vsel %vm674, 0, %v702
        %704 = vst [vmem:[#allocation2 + $0x6c] sm:$0x1] %v703
        %v705 = vld [vmem:[#allocation2 + $0x78] sm:$0x1]
        %v706 = vsel %vm674, 0, %v705
        %707 = vst [vmem:[#allocation2 + $0x78] sm:$0x1] %v706
        %v708 = vld [vmem:[#allocation2 + $0x84] sm:$0x1]
        %v709 = vsel %vm674, 0, %v708
        %710 = vst [vmem:[#allocation2 + $0x84] sm:$0x1] %v709
        %v711 = vld [vmem:[#allocation2 + $0x90] sm:$0x1]
        %v712 = vsel %vm674, 0, %v711
        %713 = vst [vmem:[#allocation2 + $0x90] sm:$0x1] %v712
        %v714 = vld [vmem:[#allocation2 + $0x9c] sm:$0x1]
        %v715 = vsel %vm674, 0, %v714
        %716 = vst [vmem:[#allocation2 + $0x9c] sm:$0x1] %v715
        %v717 = vld [vmem:[#allocation2 + $0xa8] sm:$0x1]
        %v718 = vsel %vm674, 0, %v717
        %719 = vst [vmem:[#allocation2 + $0xa8] sm:$0x1] %v718
        %v720 = vld [vmem:[#allocation2 + $0xb4] sm:$0x1]
        %v721 = vsel %vm674, 0, %v720
        %722 = vst [vmem:[#allocation2 + $0xb4] sm:$0x1] %v721
        %v723 = vld [vmem:[#allocation2 + $0xc0] sm:$0x1]
        %v724 = vsel %vm674, 0, %v723
        %725 = vst [vmem:[#allocation2 + $0xc0] sm:$0x1] %v724
        %v726 = vld [vmem:[#allocation2 + $0xcc] sm:$0x1]
        %v727 = vsel %vm674, 0, %v726
        %728 = vst [vmem:[#allocation2 + $0xcc] sm:$0x1] %v727
        %vm729 = vsmask.f32 7938
        %vm730 = vmand %vm672, %vm729
        %v731 = vld [vmem:[#allocation2 + $0x8] sm:$0x1]
        %v732 = vsel %vm730, 0, %v731
        %733 = vst [vmem:[#allocation2 + $0x8] sm:$0x1] %v732
        %v734 = vld [vmem:[#allocation2 + $0x14] sm:$0x1]
        %v735 = vsel %vm730, 0, %v734
        %736 = vst [vmem:[#allocation2 + $0x14] sm:$0x1] %v735
        %v737 = vld [vmem:[#allocation2 + $0x20] sm:$0x1]
        %v738 = vsel %vm730, 0, %v737
        %739 = vst [vmem:[#allocation2 + $0x20] sm:$0x1] %v738
        %v740 = vld [vmem:[#allocation2 + $0x2c] sm:$0x1]
        %v741 = vsel %vm730, 0, %v740
        %742 = vst [vmem:[#allocation2 + $0x2c] sm:$0x1] %v741
        %v743 = vld [vmem:[#allocation2 + $0x38] sm:$0x1]
        %v744 = vsel %vm730, 0, %v743
        %745 = vst [vmem:[#allocation2 + $0x38] sm:$0x1] %v744
        %v746 = vld [vmem:[#allocation2 + $0x44] sm:$0x1]
        %v747 = vsel %vm730, 0, %v746
        %748 = vst [vmem:[#allocation2 + $0x44] sm:$0x1] %v747
        %v749 = vld [vmem:[#allocation2 + $0x50] sm:$0x1]
        %v750 = vsel %vm730, 0, %v749
        %751 = vst [vmem:[#allocation2 + $0x50] sm:$0x1] %v750
        %v752 = vld [vmem:[#allocation2 + $0x5c] sm:$0x1]
        %v753 = vsel %vm730, 0, %v752
        %754 = vst [vmem:[#allocation2 + $0x5c] sm:$0x1] %v753
        %v755 = vld [vmem:[#allocation2 + $0x68] sm:$0x1]
        %v756 = vsel %vm730, 0, %v755
        %757 = vst [vmem:[#allocation2 + $0x68] sm:$0x1] %v756
        %v758 = vld [vmem:[#allocation2 + $0x74] sm:$0x1]
        %v759 = vsel %vm730, 0, %v758
        %760 = vst [vmem:[#allocation2 + $0x74] sm:$0x1] %v759
        %v761 = vld [vmem:[#allocation2 + $0x80] sm:$0x1]
        %v762 = vsel %vm730, 0, %v761
        %763 = vst [vmem:[#allocation2 + $0x80] sm:$0x1] %v762
        %v764 = vld [vmem:[#allocation2 + $0x8c] sm:$0x1]
        %v765 = vsel %vm730, 0, %v764
        %766 = vst [vmem:[#allocation2 + $0x8c] sm:$0x1] %v765
        %v767 = vld [vmem:[#allocation2 + $0x98] sm:$0x1]
        %v768 = vsel %vm730, 0, %v767
        %769 = vst [vmem:[#allocation2 + $0x98] sm:$0x1] %v768
        %v770 = vld [vmem:[#allocation2 + $0xa4] sm:$0x1]
        %v771 = vsel %vm730, 0, %v770
        %772 = vst [vmem:[#allocation2 + $0xa4] sm:$0x1] %v771
        %v773 = vld [vmem:[#allocation2 + $0xb0] sm:$0x1]
        %v774 = vsel %vm730, 0, %v773
        %775 = vst [vmem:[#allocation2 + $0xb0] sm:$0x1] %v774
        %v776 = vld [vmem:[#allocation2 + $0xbc] sm:$0x1]
        %v777 = vsel %vm730, 0, %v776
        %778 = vst [vmem:[#allocation2 + $0xbc] sm:$0x1] %v777
        %v779 = vld [vmem:[#allocation2 + $0xc8] sm:$0x1]
        %v780 = vsel %vm730, 0, %v779
        %781 = vst [vmem:[#allocation2 + $0xc8] sm:$0x1] %v780
        %v782 = vld [vmem:[#allocation2 + $0xd4] sm:$0x1]
        %v783 = vsel %vm730, 0, %v782
        %784 = vst [vmem:[#allocation2 + $0xd4] sm:$0x1] %v783
        %v785 = vpack.c.bf16 %v634, %v633
        %v786 = vpack.c.bf16 %v636, %v635
        %v787 = vpack.c.bf16 %v638, %v637
        %v788 = vpack.c.bf16 %v640, %v639
        %v789 = vpack.c.bf16 %v642, %v641
        %v790 = vpack.c.bf16 %v644, %v643
        %v791 = vpack.c.bf16 %v646, %v645
        %v792 = vpack.c.bf16 %v648, %v647
        %v793 = vpack.c.bf16 %v650, %v649
        %v794 = vpack.c.bf16 %v652, %v651
        %v795 = vpack.c.bf16 %v654, %v653
        %v796 = vpack.c.bf16 %v656, %v655
        %v797 = vpack.c.bf16 %v658, %v657
        %v798 = vpack.c.bf16 %v660, %v659
        %v799 = vpack.c.bf16 %v662, %v661
        %v800 = vpack.c.bf16 %v664, %v663
        %v817 = vunpack.c.l.b16 %v785
        %v818 = vunpack.c.h.b16 %v785
        %v819 = vunpack.c.l.b16 %v786
        %v820 = vunpack.c.h.b16 %v786
        %v821 = vunpack.c.l.b16 %v787
        %v822 = vunpack.c.h.b16 %v787
        %v823 = vunpack.c.l.b16 %v788
        %v824 = vunpack.c.h.b16 %v788
        %v825 = vunpack.c.l.b16 %v789
        %v826 = vunpack.c.h.b16 %v789
        %v827 = vunpack.c.l.b16 %v790
        %v828 = vunpack.c.h.b16 %v790
        %v829 = vunpack.c.l.b16 %v791
        %v830 = vunpack.c.h.b16 %v791
        %v831 = vunpack.c.l.b16 %v792
        %v832 = vunpack.c.h.b16 %v792
        %v833 = vunpack.c.l.b16 %v793
        %v834 = vunpack.c.h.b16 %v793
        %v835 = vunpack.c.l.b16 %v794
        %v836 = vunpack.c.h.b16 %v794
        %v837 = vunpack.c.l.b16 %v795
        %v838 = vunpack.c.h.b16 %v795
        %v839 = vunpack.c.l.b16 %v796
        %v840 = vunpack.c.h.b16 %v796
        %v841 = vunpack.c.l.b16 %v797
        %v842 = vunpack.c.h.b16 %v797
        %v843 = vunpack.c.l.b16 %v798
        %v844 = vunpack.c.h.b16 %v798
        %v845 = vunpack.c.l.b16 %v799
        %v846 = vunpack.c.h.b16 %v799
        %v847 = vunpack.c.l.b16 %v800
        %v848 = vunpack.c.h.b16 %v800
        %v849 = vpack.c.b16 %v817, %v817
        %v850 = vpack.c.b16 %v818, %v818
        %v851 = vpack.c.b16 %v819, %v819
        %v852 = vpack.c.b16 %v820, %v820
        %v853 = vpack.c.b16 %v821, %v821
        %v854 = vpack.c.b16 %v822, %v822
        %v855 = vpack.c.b16 %v823, %v823
        %v856 = vpack.c.b16 %v824, %v824
        %v857 = vpack.c.b16 %v825, %v825
        %v858 = vpack.c.b16 %v826, %v826
        %v859 = vpack.c.b16 %v827, %v827
        %v860 = vpack.c.b16 %v828, %v828
        %v861 = vpack.c.b16 %v829, %v829
        %v862 = vpack.c.b16 %v830, %v830
        %v863 = vpack.c.b16 %v831, %v831
        %v864 = vpack.c.b16 %v832, %v832
        %v865 = vpack.c.b16 %v833, %v833
        %v866 = vpack.c.b16 %v834, %v834
        %v867 = vpack.c.b16 %v835, %v835
        %v868 = vpack.c.b16 %v836, %v836
        %v869 = vpack.c.b16 %v837, %v837
        %v870 = vpack.c.b16 %v838, %v838
        %v871 = vpack.c.b16 %v839, %v839
        %v872 = vpack.c.b16 %v840, %v840
        %v873 = vpack.c.b16 %v841, %v841
        %v874 = vpack.c.b16 %v842, %v842
        %v875 = vpack.c.b16 %v843, %v843
        %v876 = vpack.c.b16 %v844, %v844
        %v877 = vpack.c.b16 %v845, %v845
        %v878 = vpack.c.b16 %v846, %v846
        %v879 = vpack.c.b16 %v847, %v847
        %v880 = vpack.c.b16 %v848, %v848
        %vm881 = vsmask.f32 4368
        %vm882 = vmor %vm673, %vm881
        %v884 = vshrl.u32 %v849, 16
        %v886 = vrot.slane %v884, 7
        %v887 = vshll.u32 %v849, 16
        %v889 = vor.u32 %v886, %v887
        %v890 = vrot.slane %v886, 4
        %v892 = vshrl.u32 %v850, 16
        %v894 = vrot.slane %v892, 7
        %v895 = vshll.u32 %v850, 16
        %v897 = vor.u32 %v894, %v895
        %v898 = vsel %vm882, %v890, %v897
        %v899 = vrot.slane %v894, 4
        %v901 = vshrl.u32 %v851, 16
        %v903 = vrot.slane %v901, 7
        %v904 = vshll.u32 %v851, 16
        %v906 = vor.u32 %v903, %v904
        %v907 = vrot.slane %v903, 4
        %v909 = vshrl.u32 %v852, 16
        %v911 = vrot.slane %v909, 7
        %v912 = vshll.u32 %v852, 16
        %v914 = vor.u32 %v911, %v912
        %v915 = vsel %vm882, %v907, %v914
        %v916 = vrot.slane %v911, 4
        %v918 = vshrl.u32 %v853, 16
        %v920 = vrot.slane %v918, 7
        %v921 = vshll.u32 %v853, 16
        %v923 = vor.u32 %v920, %v921
        %v924 = vrot.slane %v920, 4
        %v926 = vshrl.u32 %v854, 16
        %v928 = vrot.slane %v926, 7
        %v929 = vshll.u32 %v854, 16
        %v931 = vor.u32 %v928, %v929
        %v932 = vsel %vm882, %v924, %v931
        %v933 = vrot.slane %v928, 4
        %v935 = vshrl.u32 %v855, 16
        %v937 = vrot.slane %v935, 7
        %v938 = vshll.u32 %v855, 16
        %v940 = vor.u32 %v937, %v938
        %v941 = vrot.slane %v937, 4
        %v943 = vshrl.u32 %v856, 16
        %v945 = vrot.slane %v943, 7
        %v946 = vshll.u32 %v856, 16
        %v948 = vor.u32 %v945, %v946
        %v949 = vsel %vm882, %v941, %v948
        %v950 = vrot.slane %v945, 4
        %v952 = vshrl.u32 %v857, 16
        %v954 = vrot.slane %v952, 7
        %v955 = vshll.u32 %v857, 16
        %v957 = vor.u32 %v954, %v955
        %v958 = vrot.slane %v954, 4
        %v960 = vshrl.u32 %v858, 16
        %v962 = vrot.slane %v960, 7
        %v963 = vshll.u32 %v858, 16
        %v965 = vor.u32 %v962, %v963
        %v966 = vsel %vm882, %v958, %v965
        %v967 = vrot.slane %v962, 4
        %v969 = vshrl.u32 %v859, 16
        %v971 = vrot.slane %v969, 7
        %v972 = vshll.u32 %v859, 16
        %v974 = vor.u32 %v971, %v972
        %v975 = vrot.slane %v971, 4
        %v977 = vshrl.u32 %v860, 16
        %v979 = vrot.slane %v977, 7
        %v980 = vshll.u32 %v860, 16
        %v982 = vor.u32 %v979, %v980
        %v983 = vsel %vm882, %v975, %v982
        %v984 = vrot.slane %v979, 4
        %v986 = vshrl.u32 %v861, 16
        %v988 = vrot.slane %v986, 7
        %v989 = vshll.u32 %v861, 16
        %v991 = vor.u32 %v988, %v989
        %v992 = vrot.slane %v988, 4
        %v994 = vshrl.u32 %v862, 16
        %v996 = vrot.slane %v994, 7
        %v997 = vshll.u32 %v862, 16
        %v999 = vor.u32 %v996, %v997
        %v1000 = vsel %vm882, %v992, %v999
        %v1001 = vrot.slane %v996, 4
        %v1003 = vshrl.u32 %v863, 16
        %v1005 = vrot.slane %v1003, 7
        %v1006 = vshll.u32 %v863, 16
        %v1008 = vor.u32 %v1005, %v1006
        %v1009 = vrot.slane %v1005, 4
        %v1011 = vshrl.u32 %v864, 16
        %v1013 = vrot.slane %v1011, 7
        %v1014 = vshll.u32 %v864, 16
        %v1016 = vor.u32 %v1013, %v1014
        %v1017 = vsel %vm882, %v1009, %v1016
        %v1018 = vrot.slane %v1013, 4
        %v1020 = vshrl.u32 %v865, 16
        %v1022 = vrot.slane %v1020, 7
        %v1023 = vshll.u32 %v865, 16
        %v1025 = vor.u32 %v1022, %v1023
        %v1026 = vrot.slane %v1022, 4
        %v1028 = vshrl.u32 %v866, 16
        %v1030 = vrot.slane %v1028, 7
        %v1031 = vshll.u32 %v866, 16
        %v1033 = vor.u32 %v1030, %v1031
        %v1034 = vsel %vm882, %v1026, %v1033
        %v1035 = vrot.slane %v1030, 4
        %v1037 = vshrl.u32 %v867, 16
        %v1039 = vrot.slane %v1037, 7
        %v1040 = vshll.u32 %v867, 16
        %v1042 = vor.u32 %v1039, %v1040
        %v1043 = vrot.slane %v1039, 4
        %v1045 = vshrl.u32 %v868, 16
        %v1047 = vrot.slane %v1045, 7
        %v1048 = vshll.u32 %v868, 16
        %v1050 = vor.u32 %v1047, %v1048
        %v1051 = vsel %vm882, %v1043, %v1050
        %v1052 = vrot.slane %v1047, 4
        %v1054 = vshrl.u32 %v869, 16
        %v1056 = vrot.slane %v1054, 7
        %v1057 = vshll.u32 %v869, 16
        %v1059 = vor.u32 %v1056, %v1057
        %v1060 = vrot.slane %v1056, 4
        %v1062 = vshrl.u32 %v870, 16
        %v1064 = vrot.slane %v1062, 7
        %v1065 = vshll.u32 %v870, 16
        %v1067 = vor.u32 %v1064, %v1065
        %v1068 = vsel %vm882, %v1060, %v1067
        %v1069 = vrot.slane %v1064, 4
        %v1071 = vshrl.u32 %v871, 16
        %v1073 = vrot.slane %v1071, 7
        %v1074 = vshll.u32 %v871, 16
        %v1076 = vor.u32 %v1073, %v1074
        %v1077 = vrot.slane %v1073, 4
        %v1079 = vshrl.u32 %v872, 16
        %v1081 = vrot.slane %v1079, 7
        %v1082 = vshll.u32 %v872, 16
        %v1084 = vor.u32 %v1081, %v1082
        %v1085 = vsel %vm882, %v1077, %v1084
        %v1086 = vrot.slane %v1081, 4
        %v1088 = vshrl.u32 %v873, 16
        %v1090 = vrot.slane %v1088, 7
        %v1091 = vshll.u32 %v873, 16
        %v1093 = vor.u32 %v1090, %v1091
        %v1094 = vrot.slane %v1090, 4
        %v1096 = vshrl.u32 %v874, 16
        %v1098 = vrot.slane %v1096, 7
        %v1099 = vshll.u32 %v874, 16
        %v1101 = vor.u32 %v1098, %v1099
        %v1102 = vsel %vm882, %v1094, %v1101
        %v1103 = vrot.slane %v1098, 4
        %v1105 = vshrl.u32 %v875, 16
        %v1107 = vrot.slane %v1105, 7
        %v1108 = vshll.u32 %v875, 16
        %v1110 = vor.u32 %v1107, %v1108
        %v1111 = vrot.slane %v1107, 4
        %v1113 = vshrl.u32 %v876, 16
        %v1115 = vrot.slane %v1113, 7
        %v1116 = vshll.u32 %v876, 16
        %v1118 = vor.u32 %v1115, %v1116
        %v1119 = vsel %vm882, %v1111, %v1118
        %v1120 = vrot.slane %v1115, 4
        %v1122 = vshrl.u32 %v877, 16
        %v1124 = vrot.slane %v1122, 7
        %v1125 = vshll.u32 %v877, 16
        %v1127 = vor.u32 %v1124, %v1125
        %v1128 = vrot.slane %v1124, 4
        %v1130 = vshrl.u32 %v878, 16
        %v1132 = vrot.slane %v1130, 7
        %v1133 = vshll.u32 %v878, 16
        %v1135 = vor.u32 %v1132, %v1133
        %v1136 = vsel %vm882, %v1128, %v1135
        %v1137 = vrot.slane %v1132, 4
        %v1139 = vshrl.u32 %v879, 16
        %v1141 = vrot.slane %v1139, 7
        %v1142 = vshll.u32 %v879, 16
        %v1144 = vor.u32 %v1141, %v1142
        %v1145 = vrot.slane %v1141, 4
        %v1147 = vshrl.u32 %v880, 16
        %v1149 = vrot.slane %v1147, 7
        %v1150 = vshll.u32 %v880, 16
        %v1152 = vor.u32 %v1149, %v1150
        %v1153 = vsel %vm882, %v1145, %v1152
        %v1154 = vrot.slane %v1149, 4
        %s1203 = scalar_lea.vmem [#allocation2], 12
        %vm1204 = vcmask 1043456
        %vm1205 = vmand %vm1204, %vm729
        %v1206 = vld [vmem:[%s1203] sm:$0xf]
        %v1207 = vsel %vm1205, %v889, %v1206
        %1208 = vst [vmem:[%s1203] sm:$0xf] %v1207
        %1209 = vst [vmem:[%s1203 + $0x4] sm:$0xf] %v898
        %v1210 = vld [vmem:[%s1203 + $0x8] sm:$0x1]
        %v1211 = vsel %vm674, %v899, %v1210
        %1212 = vst [vmem:[%s1203 + $0x8] sm:$0x1] %v1211
        %v1213 = vld [vmem:[%s1203 + $0xc] sm:$0xf]
        %v1214 = vsel %vm1205, %v906, %v1213
        %1215 = vst [vmem:[%s1203 + $0xc] sm:$0xf] %v1214
        %1216 = vst [vmem:[%s1203 + $0x10] sm:$0xf] %v915
        %v1217 = vld [vmem:[%s1203 + $0x14] sm:$0x1]
        %v1218 = vsel %vm674, %v916, %v1217
        %1219 = vst [vmem:[%s1203 + $0x14] sm:$0x1] %v1218
        %v1220 = vld [vmem:[%s1203 + $0x18] sm:$0xf]
        %v1221 = vsel %vm1205, %v923, %v1220
        %1222 = vst [vmem:[%s1203 + $0x18] sm:$0xf] %v1221
        %1223 = vst [vmem:[%s1203 + $0x1c] sm:$0xf] %v932
        %v1224 = vld [vmem:[%s1203 + $0x20] sm:$0x1]
        %v1225 = vsel %vm674, %v933, %v1224
        %1226 = vst [vmem:[%s1203 + $0x20] sm:$0x1] %v1225
        %v1227 = vld [vmem:[%s1203 + $0x24] sm:$0xf]
        %v1228 = vsel %vm1205, %v940, %v1227
        %1229 = vst [vmem:[%s1203 + $0x24] sm:$0xf] %v1228
        %1230 = vst [vmem:[%s1203 + $0x28] sm:$0xf] %v949
        %v1231 = vld [vmem:[%s1203 + $0x2c] sm:$0x1]
        %v1232 = vsel %vm674, %v950, %v1231
        %1233 = vst [vmem:[%s1203 + $0x2c] sm:$0x1] %v1232
        %v1234 = vld [vmem:[%s1203 + $0x30] sm:$0xf]
        %v1235 = vsel %vm1205, %v957, %v1234
        %1236 = vst [vmem:[%s1203 + $0x30] sm:$0xf] %v1235
        %1237 = vst [vmem:[%s1203 + $0x34] sm:$0xf] %v966
        %v1238 = vld [vmem:[%s1203 + $0x38] sm:$0x1]
        %v1239 = vsel %vm674, %v967, %v1238
        %1240 = vst [vmem:[%s1203 + $0x38] sm:$0x1] %v1239
        %v1241 = vld [vmem:[%s1203 + $0x3c] sm:$0xf]
        %v1242 = vsel %vm1205, %v974, %v1241
        %1243 = vst [vmem:[%s1203 + $0x3c] sm:$0xf] %v1242
        %1244 = vst [vmem:[%s1203 + $0x40] sm:$0xf] %v983
        %v1245 = vld [vmem:[%s1203 + $0x44] sm:$0x1]
        %v1246 = vsel %vm674, %v984, %v1245
        %1247 = vst [vmem:[%s1203 + $0x44] sm:$0x1] %v1246
        %v1248 = vld [vmem:[%s1203 + $0x48] sm:$0xf]
        %v1249 = vsel %vm1205, %v991, %v1248
        %1250 = vst [vmem:[%s1203 + $0x48] sm:$0xf] %v1249
        %1251 = vst [vmem:[%s1203 + $0x4c] sm:$0xf] %v1000
        %v1252 = vld [vmem:[%s1203 + $0x50] sm:$0x1]
        %v1253 = vsel %vm674, %v1001, %v1252
        %1254 = vst [vmem:[%s1203 + $0x50] sm:$0x1] %v1253
        %v1255 = vld [vmem:[%s1203 + $0x54] sm:$0xf]
        %v1256 = vsel %vm1205, %v1008, %v1255
        %1257 = vst [vmem:[%s1203 + $0x54] sm:$0xf] %v1256
        %1258 = vst [vmem:[%s1203 + $0x58] sm:$0xf] %v1017
        %v1259 = vld [vmem:[%s1203 + $0x5c] sm:$0x1]
        %v1260 = vsel %vm674, %v1018, %v1259
        %1261 = vst [vmem:[%s1203 + $0x5c] sm:$0x1] %v1260
        %v1262 = vld [vmem:[%s1203 + $0x60] sm:$0xf]
        %v1263 = vsel %vm1205, %v1025, %v1262
        %1264 = vst [vmem:[%s1203 + $0x60] sm:$0xf] %v1263
        %1265 = vst [vmem:[%s1203 + $0x64] sm:$0xf] %v1034
        %v1266 = vld [vmem:[%s1203 + $0x68] sm:$0x1]
        %v1267 = vsel %vm674, %v1035, %v1266
        %1268 = vst [vmem:[%s1203 + $0x68] sm:$0x1] %v1267
        %v1269 = vld [vmem:[%s1203 + $0x6c] sm:$0xf]
        %v1270 = vsel %vm1205, %v1042, %v1269
        %1271 = vst [vmem:[%s1203 + $0x6c] sm:$0xf] %v1270
        %1272 = vst [vmem:[%s1203 + $0x70] sm:$0xf] %v1051
        %v1273 = vld [vmem:[%s1203 + $0x74] sm:$0x1]
        %v1274 = vsel %vm674, %v1052, %v1273
        %1275 = vst [vmem:[%s1203 + $0x74] sm:$0x1] %v1274
        %v1276 = vld [vmem:[%s1203 + $0x78] sm:$0xf]
        %v1277 = vsel %vm1205, %v1059, %v1276
        %1278 = vst [vmem:[%s1203 + $0x78] sm:$0xf] %v1277
        %1279 = vst [vmem:[%s1203 + $0x7c] sm:$0xf] %v1068
        %v1280 = vld [vmem:[%s1203 + $0x80] sm:$0x1]
        %v1281 = vsel %vm674, %v1069, %v1280
        %1282 = vst [vmem:[%s1203 + $0x80] sm:$0x1] %v1281
        %v1283 = vld [vmem:[%s1203 + $0x84] sm:$0xf]
        %v1284 = vsel %vm1205, %v1076, %v1283
        %1285 = vst [vmem:[%s1203 + $0x84] sm:$0xf] %v1284
        %1286 = vst [vmem:[%s1203 + $0x88] sm:$0xf] %v1085
        %v1287 = vld [vmem:[%s1203 + $0x8c] sm:$0x1]
        %v1288 = vsel %vm674, %v1086, %v1287
        %1289 = vst [vmem:[%s1203 + $0x8c] sm:$0x1] %v1288
        %v1290 = vld [vmem:[%s1203 + $0x90] sm:$0xf]
        %v1291 = vsel %vm1205, %v1093, %v1290
        %1292 = vst [vmem:[%s1203 + $0x90] sm:$0xf] %v1291
        %1293 = vst [vmem:[%s1203 + $0x94] sm:$0xf] %v1102
        %v1294 = vld [vmem:[%s1203 + $0x98] sm:$0x1]
        %v1295 = vsel %vm674, %v1103, %v1294
        %1296 = vst [vmem:[%s1203 + $0x98] sm:$0x1] %v1295
        %v1297 = vld [vmem:[%s1203 + $0x9c] sm:$0xf]
        %v1298 = vsel %vm1205, %v1110, %v1297
        %1299 = vst [vmem:[%s1203 + $0x9c] sm:$0xf] %v1298
        %1300 = vst [vmem:[%s1203 + $0xa0] sm:$0xf] %v1119
        %v1301 = vld [vmem:[%s1203 + $0xa4] sm:$0x1]
        %v1302 = vsel %vm674, %v1120, %v1301
        %1303 = vst [vmem:[%s1203 + $0xa4] sm:$0x1] %v1302
        %v1304 = vld [vmem:[%s1203 + $0xa8] sm:$0xf]
        %v1305 = vsel %vm1205, %v1127, %v1304
        %1306 = vst [vmem:[%s1203 + $0xa8] sm:$0xf] %v1305
        %1307 = vst [vmem:[%s1203 + $0xac] sm:$0xf] %v1136
        %v1308 = vld [vmem:[%s1203 + $0xb0] sm:$0x1]
        %v1309 = vsel %vm674, %v1137, %v1308
        %1310 = vst [vmem:[%s1203 + $0xb0] sm:$0x1] %v1309
        %v1311 = vld [vmem:[%s1203 + $0xb4] sm:$0xf]
        %v1312 = vsel %vm1205, %v1144, %v1311
        %1313 = vst [vmem:[%s1203 + $0xb4] sm:$0xf] %v1312
        %1314 = vst [vmem:[%s1203 + $0xb8] sm:$0xf] %v1153
        %v1315 = vld [vmem:[%s1203 + $0xbc] sm:$0x1]
        %v1316 = vsel %vm674, %v1154, %v1315
        %1317 = vst [vmem:[%s1203 + $0xbc] sm:$0x1] %v1316
        %v1318 = vld [vmem:[#allocation2] sm:$0xf]
        %v1319 = vld [vmem:[#allocation2 + $0x4] sm:$0xf]
        %v1320 = vld [vmem:[#allocation2 + $0xc] sm:$0xf]
        %v1321 = vld [vmem:[#allocation2 + $0x10] sm:$0xf]
        %v1322 = vld [vmem:[#allocation2 + $0x18] sm:$0xf]
        %v1323 = vld [vmem:[#allocation2 + $0x1c] sm:$0xf]
        %v1324 = vld [vmem:[#allocation2 + $0x24] sm:$0xf]
        %v1325 = vld [vmem:[#allocation2 + $0x28] sm:$0xf]
        %v1326 = vld [vmem:[#allocation2 + $0x30] sm:$0xf]
        %v1327 = vld [vmem:[#allocation2 + $0x34] sm:$0xf]
        %v1328 = vld [vmem:[#allocation2 + $0x3c] sm:$0xf]
        %v1329 = vld [vmem:[#allocation2 + $0x40] sm:$0xf]
        %v1330 = vld [vmem:[#allocation2 + $0x48] sm:$0xf]
        %v1331 = vld [vmem:[#allocation2 + $0x4c] sm:$0xf]
        %v1332 = vld [vmem:[#allocation2 + $0x54] sm:$0xf]
        %v1333 = vld [vmem:[#allocation2 + $0x58] sm:$0xf]
        %v1334 = vld [vmem:[#allocation2 + $0x60] sm:$0xf]
        %v1335 = vld [vmem:[#allocation2 + $0x64] sm:$0xf]
        %v1336 = vld [vmem:[#allocation2 + $0x6c] sm:$0xf]
        %v1337 = vld [vmem:[#allocation2 + $0x70] sm:$0xf]
        %v1338 = vld [vmem:[#allocation2 + $0x78] sm:$0xf]
        %v1339 = vld [vmem:[#allocation2 + $0x7c] sm:$0xf]
        %v1340 = vld [vmem:[#allocation2 + $0x84] sm:$0xf]
        %v1341 = vld [vmem:[#allocation2 + $0x88] sm:$0xf]
        %v1342 = vld [vmem:[#allocation2 + $0x90] sm:$0xf]
        %v1343 = vld [vmem:[#allocation2 + $0x94] sm:$0xf]
        %v1344 = vld [vmem:[#allocation2 + $0x9c] sm:$0xf]
        %v1345 = vld [vmem:[#allocation2 + $0xa0] sm:$0xf]
        %v1346 = vld [vmem:[#allocation2 + $0xa8] sm:$0xf]
        %v1347 = vld [vmem:[#allocation2 + $0xac] sm:$0xf]
        %v1348 = vld [vmem:[#allocation2 + $0xb4] sm:$0xf]
        %v1349 = vld [vmem:[#allocation2 + $0xb8] sm:$0xf]
        %v1350 = vld [vmem:[#allocation8] sm:$0xf]
        %v1351 = vld [vmem:[#allocation8 + $0x4] sm:$0xf]
        %v1352 = vld [vmem:[#allocation8 + $0x8] sm:$0xf]
        %v1353 = vld [vmem:[#allocation8 + $0xc] sm:$0xf]
        %v1354 = vld [vmem:[#allocation8 + $0x10] sm:$0xf]
        %v1355 = vld [vmem:[#allocation8 + $0x14] sm:$0xf]
        %v1356 = vld [vmem:[#allocation8 + $0x18] sm:$0xf]
        %v1357 = vld [vmem:[#allocation8 + $0x1c] sm:$0xf]
        %v1358 = vld [vmem:[#allocation8 + $0x20] sm:$0xf]
        %v1359 = vld [vmem:[#allocation8 + $0x24] sm:$0xf]
        %v1360 = vld [vmem:[#allocation8 + $0x28] sm:$0xf]
        %v1361 = vld [vmem:[#allocation8 + $0x2c] sm:$0xf]
        %v1362 = vld [vmem:[#allocation8 + $0x30] sm:$0xf]
        %v1363 = vld [vmem:[#allocation8 + $0x34] sm:$0xf]
        %v1364 = vld [vmem:[#allocation8 + $0x38] sm:$0xf]
        %v1365 = vld [vmem:[#allocation8 + $0x3c] sm:$0xf]
        %v1366 = vld [vmem:[#allocation2 + $0x8] sm:$0x1]
        %v1367 = vld [vmem:[#allocation2 + $0x14] sm:$0x1]
        %v1368 = vld [vmem:[#allocation2 + $0x20] sm:$0x1]
        %v1369 = vld [vmem:[#allocation2 + $0x2c] sm:$0x1]
        %v1370 = vld [vmem:[#allocation2 + $0x38] sm:$0x1]
        %v1371 = vld [vmem:[#allocation2 + $0x44] sm:$0x1]
        %v1372 = vld [vmem:[#allocation2 + $0x50] sm:$0x1]
        %v1373 = vld [vmem:[#allocation2 + $0x5c] sm:$0x1]
        %v1374 = vld [vmem:[#allocation2 + $0x68] sm:$0x1]
        %v1375 = vld [vmem:[#allocation2 + $0x74] sm:$0x1]
        %v1376 = vld [vmem:[#allocation2 + $0x80] sm:$0x1]
        %v1377 = vld [vmem:[#allocation2 + $0x8c] sm:$0x1]
        %v1378 = vld [vmem:[#allocation2 + $0x98] sm:$0x1]
        %v1379 = vld [vmem:[#allocation2 + $0xa4] sm:$0x1]
        %v1380 = vld [vmem:[#allocation2 + $0xb0] sm:$0x1]
        %v1381 = vld [vmem:[#allocation2 + $0xbc] sm:$0x1]
        %vm1382 = vsmask.f32 3328
        %vm1383 = vsmask.f32 7440
        %vm1384 = vmor %vm1382, %vm1383
        %v1386 = vshrl.u32 %v1318, 16
        %v1388 = vrot.slane %v1386, 4
        %v1389 = vshll.u32 %v1318, 16
        %v1391 = vrot.slane %v1389, 5
        %v1392 = vor.u32 %v1388, %v1391
        %v1393 = vrot.slane %v1392, 4
        %v1395 = vshll.u32 %v1319, 16
        %v1397 = vrot.slane %v1395, 5
        %v1398 = vsel %vm1384, %v1393, %v1397
        %v1399 = vshrl.u32 %v1319, 16
        %v1401 = vrot.slane %v1399, 4
        %v1402 = vor.u32 %v1401, %v1397
        %v1403 = vrot.slane %v1402, 4
        %v1405 = vshll.u32 %v1366, 16
        %v1407 = vrot.slane %v1405, 5
        %v1408 = vsel %vm1384, %v1403, %v1407
        %v1410 = vshrl.u32 %v1320, 16
        %v1412 = vrot.slane %v1410, 4
        %v1413 = vshll.u32 %v1320, 16
        %v1415 = vrot.slane %v1413, 5
        %v1416 = vor.u32 %v1412, %v1415
        %v1417 = vrot.slane %v1416, 4
        %v1419 = vshll.u32 %v1321, 16
        %v1421 = vrot.slane %v1419, 5
        %v1422 = vsel %vm1384, %v1417, %v1421
        %v1423 = vshrl.u32 %v1321, 16
        %v1425 = vrot.slane %v1423, 4
        %v1426 = vor.u32 %v1425, %v1421
        %v1427 = vrot.slane %v1426, 4
        %v1429 = vshll.u32 %v1367, 16
        %v1431 = vrot.slane %v1429, 5
        %v1432 = vsel %vm1384, %v1427, %v1431
        %v1434 = vshrl.u32 %v1322, 16
        %v1436 = vrot.slane %v1434, 4
        %v1437 = vshll.u32 %v1322, 16
        %v1439 = vrot.slane %v1437, 5
        %v1440 = vor.u32 %v1436, %v1439
        %v1441 = vrot.slane %v1440, 4
        %v1443 = vshll.u32 %v1323, 16
        %v1445 = vrot.slane %v1443, 5
        %v1446 = vsel %vm1384, %v1441, %v1445
        %v1447 = vshrl.u32 %v1323, 16
        %v1449 = vrot.slane %v1447, 4
        %v1450 = vor.u32 %v1449, %v1445
        %v1451 = vrot.slane %v1450, 4
        %v1453 = vshll.u32 %v1368, 16
        %v1455 = vrot.slane %v1453, 5
        %v1456 = vsel %vm1384, %v1451, %v1455
        %v1458 = vshrl.u32 %v1324, 16
        %v1460 = vrot.slane %v1458, 4
        %v1461 = vshll.u32 %v1324, 16
        %v1463 = vrot.slane %v1461, 5
        %v1464 = vor.u32 %v1460, %v1463
        %v1465 = vrot.slane %v1464, 4
        %v1467 = vshll.u32 %v1325, 16
        %v1469 = vrot.slane %v1467, 5
        %v1470 = vsel %vm1384, %v1465, %v1469
        %v1471 = vshrl.u32 %v1325, 16
        %v1473 = vrot.slane %v1471, 4
        %v1474 = vor.u32 %v1473, %v1469
        %v1475 = vrot.slane %v1474, 4
        %v1477 = vshll.u32 %v1369, 16
        %v1479 = vrot.slane %v1477, 5
        %v1480 = vsel %vm1384, %v1475, %v1479
        %v1482 = vshrl.u32 %v1326, 16
        %v1484 = vrot.slane %v1482, 4
        %v1485 = vshll.u32 %v1326, 16
        %v1487 = vrot.slane %v1485, 5
        %v1488 = vor.u32 %v1484, %v1487
        %v1489 = vrot.slane %v1488, 4
        %v1491 = vshll.u32 %v1327, 16
        %v1493 = vrot.slane %v1491, 5
        %v1494 = vsel %vm1384, %v1489, %v1493
        %v1495 = vshrl.u32 %v1327, 16
        %v1497 = vrot.slane %v1495, 4
        %v1498 = vor.u32 %v1497, %v1493
        %v1499 = vrot.slane %v1498, 4
        %v1501 = vshll.u32 %v1370, 16
        %v1503 = vrot.slane %v1501, 5
        %v1504 = vsel %vm1384, %v1499, %v1503
        %v1506 = vshrl.u32 %v1328, 16
        %v1508 = vrot.slane %v1506, 4
        %v1509 = vshll.u32 %v1328, 16
        %v1511 = vrot.slane %v1509, 5
        %v1512 = vor.u32 %v1508, %v1511
        %v1513 = vrot.slane %v1512, 4
        %v1515 = vshll.u32 %v1329, 16
        %v1517 = vrot.slane %v1515, 5
        %v1518 = vsel %vm1384, %v1513, %v1517
        %v1519 = vshrl.u32 %v1329, 16
        %v1521 = vrot.slane %v1519, 4
        %v1522 = vor.u32 %v1521, %v1517
        %v1523 = vrot.slane %v1522, 4
        %v1525 = vshll.u32 %v1371, 16
        %v1527 = vrot.slane %v1525, 5
        %v1528 = vsel %vm1384, %v1523, %v1527
        %v1530 = vshrl.u32 %v1330, 16
        %v1532 = vrot.slane %v1530, 4
        %v1533 = vshll.u32 %v1330, 16
        %v1535 = vrot.slane %v1533, 5
        %v1536 = vor.u32 %v1532, %v1535
        %v1537 = vrot.slane %v1536, 4
        %v1539 = vshll.u32 %v1331, 16
        %v1541 = vrot.slane %v1539, 5
        %v1542 = vsel %vm1384, %v1537, %v1541
        %v1543 = vshrl.u32 %v1331, 16
        %v1545 = vrot.slane %v1543, 4
        %v1546 = vor.u32 %v1545, %v1541
        %v1547 = vrot.slane %v1546, 4
        %v1549 = vshll.u32 %v1372, 16
        %v1551 = vrot.slane %v1549, 5
        %v1552 = vsel %vm1384, %v1547, %v1551
        %v1554 = vshrl.u32 %v1332, 16
        %v1556 = vrot.slane %v1554, 4
        %v1557 = vshll.u32 %v1332, 16
        %v1559 = vrot.slane %v1557, 5
        %v1560 = vor.u32 %v1556, %v1559
        %v1561 = vrot.slane %v1560, 4
        %v1563 = vshll.u32 %v1333, 16
        %v1565 = vrot.slane %v1563, 5
        %v1566 = vsel %vm1384, %v1561, %v1565
        %v1567 = vshrl.u32 %v1333, 16
        %v1569 = vrot.slane %v1567, 4
        %v1570 = vor.u32 %v1569, %v1565
        %v1571 = vrot.slane %v1570, 4
        %v1573 = vshll.u32 %v1373, 16
        %v1575 = vrot.slane %v1573, 5
        %v1576 = vsel %vm1384, %v1571, %v1575
        %v1578 = vshrl.u32 %v1334, 16
        %v1580 = vrot.slane %v1578, 4
        %v1581 = vshll.u32 %v1334, 16
        %v1583 = vrot.slane %v1581, 5
        %v1584 = vor.u32 %v1580, %v1583
        %v1585 = vrot.slane %v1584, 4
        %v1587 = vshll.u32 %v1335, 16
        %v1589 = vrot.slane %v1587, 5
        %v1590 = vsel %vm1384, %v1585, %v1589
        %v1591 = vshrl.u32 %v1335, 16
        %v1593 = vrot.slane %v1591, 4
        %v1594 = vor.u32 %v1593, %v1589
        %v1595 = vrot.slane %v1594, 4
        %v1597 = vshll.u32 %v1374, 16
        %v1599 = vrot.slane %v1597, 5
        %v1600 = vsel %vm1384, %v1595, %v1599
        %v1602 = vshrl.u32 %v1336, 16
        %v1604 = vrot.slane %v1602, 4
        %v1605 = vshll.u32 %v1336, 16
        %v1607 = vrot.slane %v1605, 5
        %v1608 = vor.u32 %v1604, %v1607
        %v1609 = vrot.slane %v1608, 4
        %v1611 = vshll.u32 %v1337, 16
        %v1613 = vrot.slane %v1611, 5
        %v1614 = vsel %vm1384, %v1609, %v1613
        %v1615 = vshrl.u32 %v1337, 16
        %v1617 = vrot.slane %v1615, 4
        %v1618 = vor.u32 %v1617, %v1613
        %v1619 = vrot.slane %v1618, 4
        %v1621 = vshll.u32 %v1375, 16
        %v1623 = vrot.slane %v1621, 5
        %v1624 = vsel %vm1384, %v1619, %v1623
        %v1626 = vshrl.u32 %v1338, 16
        %v1628 = vrot.slane %v1626, 4
        %v1629 = vshll.u32 %v1338, 16
        %v1631 = vrot.slane %v1629, 5
        %v1632 = vor.u32 %v1628, %v1631
        %v1633 = vrot.slane %v1632, 4
        %v1635 = vshll.u32 %v1339, 16
        %v1637 = vrot.slane %v1635, 5
        %v1638 = vsel %vm1384, %v1633, %v1637
        %v1639 = vshrl.u32 %v1339, 16
        %v1641 = vrot.slane %v1639, 4
        %v1642 = vor.u32 %v1641, %v1637
        %v1643 = vrot.slane %v1642, 4
        %v1645 = vshll.u32 %v1376, 16
        %v1647 = vrot.slane %v1645, 5
        %v1648 = vsel %vm1384, %v1643, %v1647
        %v1650 = vshrl.u32 %v1340, 16
        %v1652 = vrot.slane %v1650, 4
        %v1653 = vshll.u32 %v1340, 16
        %v1655 = vrot.slane %v1653, 5
        %v1656 = vor.u32 %v1652, %v1655
        %v1657 = vrot.slane %v1656, 4
        %v1659 = vshll.u32 %v1341, 16
        %v1661 = vrot.slane %v1659, 5
        %v1662 = vsel %vm1384, %v1657, %v1661
        %v1663 = vshrl.u32 %v1341, 16
        %v1665 = vrot.slane %v1663, 4
        %v1666 = vor.u32 %v1665, %v1661
        %v1667 = vrot.slane %v1666, 4
        %v1669 = vshll.u32 %v1377, 16
        %v1671 = vrot.slane %v1669, 5
        %v1672 = vsel %vm1384, %v1667, %v1671
        %v1674 = vshrl.u32 %v1342, 16
        %v1676 = vrot.slane %v1674, 4
        %v1677 = vshll.u32 %v1342, 16
        %v1679 = vrot.slane %v1677, 5
        %v1680 = vor.u32 %v1676, %v1679
        %v1681 = vrot.slane %v1680, 4
        %v1683 = vshll.u32 %v1343, 16
        %v1685 = vrot.slane %v1683, 5
        %v1686 = vsel %vm1384, %v1681, %v1685
        %v1687 = vshrl.u32 %v1343, 16
        %v1689 = vrot.slane %v1687, 4
        %v1690 = vor.u32 %v1689, %v1685
        %v1691 = vrot.slane %v1690, 4
        %v1693 = vshll.u32 %v1378, 16
        %v1695 = vrot.slane %v1693, 5
        %v1696 = vsel %vm1384, %v1691, %v1695
        %v1698 = vshrl.u32 %v1344, 16
        %v1700 = vrot.slane %v1698, 4
        %v1701 = vshll.u32 %v1344, 16
        %v1703 = vrot.slane %v1701, 5
        %v1704 = vor.u32 %v1700, %v1703
        %v1705 = vrot.slane %v1704, 4
        %v1707 = vshll.u32 %v1345, 16
        %v1709 = vrot.slane %v1707, 5
        %v1710 = vsel %vm1384, %v1705, %v1709
        %v1711 = vshrl.u32 %v1345, 16
        %v1713 = vrot.slane %v1711, 4
        %v1714 = vor.u32 %v1713, %v1709
        %v1715 = vrot.slane %v1714, 4
        %v1717 = vshll.u32 %v1379, 16
        %v1719 = vrot.slane %v1717, 5
        %v1720 = vsel %vm1384, %v1715, %v1719
        %v1722 = vshrl.u32 %v1346, 16
        %v1724 = vrot.slane %v1722, 4
        %v1725 = vshll.u32 %v1346, 16
        %v1727 = vrot.slane %v1725, 5
        %v1728 = vor.u32 %v1724, %v1727
        %v1729 = vrot.slane %v1728, 4
        %v1731 = vshll.u32 %v1347, 16
        %v1733 = vrot.slane %v1731, 5
        %v1734 = vsel %vm1384, %v1729, %v1733
        %v1735 = vshrl.u32 %v1347, 16
        %v1737 = vrot.slane %v1735, 4
        %v1738 = vor.u32 %v1737, %v1733
        %v1739 = vrot.slane %v1738, 4
        %v1741 = vshll.u32 %v1380, 16
        %v1743 = vrot.slane %v1741, 5
        %v1744 = vsel %vm1384, %v1739, %v1743
        %v1746 = vshrl.u32 %v1348, 16
        %v1748 = vrot.slane %v1746, 4
        %v1749 = vshll.u32 %v1348, 16
        %v1751 = vrot.slane %v1749, 5
        %v1752 = vor.u32 %v1748, %v1751
        %v1753 = vrot.slane %v1752, 4
        %v1755 = vshll.u32 %v1349, 16
        %v1757 = vrot.slane %v1755, 5
        %v1758 = vsel %vm1384, %v1753, %v1757
        %v1759 = vshrl.u32 %v1349, 16
        %v1761 = vrot.slane %v1759, 4
        %v1762 = vor.u32 %v1761, %v1757
        %v1763 = vrot.slane %v1762, 4
        %v1765 = vshll.u32 %v1381, 16
        %v1767 = vrot.slane %v1765, 5
        %v1768 = vsel %vm1384, %v1763, %v1767
        %v1769 = vld [vmem:[#allocation8 + $0x40] sm:$0xf]
        %v1770 = vld [vmem:[#allocation8 + $0x44] sm:$0xf]
        %v1771 = vld [vmem:[#allocation8 + $0x48] sm:$0xf]
        %v1772 = vld [vmem:[#allocation8 + $0x4c] sm:$0xf]
        %v1773 = vld [vmem:[#allocation8 + $0x50] sm:$0xf]
        %v1774 = vld [vmem:[#allocation8 + $0x54] sm:$0xf]
        %v1775 = vld [vmem:[#allocation8 + $0x58] sm:$0xf]
        %v1776 = vld [vmem:[#allocation8 + $0x5c] sm:$0xf]
        %v1777 = vld [vmem:[#allocation8 + $0x60] sm:$0xf]
        %v1778 = vld [vmem:[#allocation8 + $0x64] sm:$0xf]
        %v1779 = vld [vmem:[#allocation8 + $0x68] sm:$0xf]
        %v1780 = vld [vmem:[#allocation8 + $0x6c] sm:$0xf]
        %v1781 = vld [vmem:[#allocation8 + $0x70] sm:$0xf]
        %v1782 = vld [vmem:[#allocation8 + $0x74] sm:$0xf]
        %v1783 = vld [vmem:[#allocation8 + $0x78] sm:$0xf]
        %v1784 = vld [vmem:[#allocation8 + $0x7c] sm:$0xf]
        %v1785 = vunpack.c.l.b16 %v1398
        %v1786 = vunpack.c.l.b16 %v1408
        %v1787 = vunpack.c.l.b16 %v1422
        %v1788 = vunpack.c.l.b16 %v1432
        %v1789 = vunpack.c.l.b16 %v1446
        %v1790 = vunpack.c.l.b16 %v1456
        %v1791 = vunpack.c.l.b16 %v1470
        %v1792 = vunpack.c.l.b16 %v1480
        %v1793 = vunpack.c.l.b16 %v1494
        %v1794 = vunpack.c.l.b16 %v1504
        %v1795 = vunpack.c.l.b16 %v1518
        %v1796 = vunpack.c.l.b16 %v1528
        %v1797 = vunpack.c.l.b16 %v1542
        %v1798 = vunpack.c.l.b16 %v1552
        %v1799 = vunpack.c.l.b16 %v1566
        %v1800 = vunpack.c.l.b16 %v1576
        %v1801 = vunpack.c.l.b16 %v1590
        %v1802 = vunpack.c.l.b16 %v1600
        %v1803 = vunpack.c.l.b16 %v1614
        %v1804 = vunpack.c.l.b16 %v1624
        %v1805 = vunpack.c.l.b16 %v1638
        %v1806 = vunpack.c.l.b16 %v1648
        %v1807 = vunpack.c.l.b16 %v1662
        %v1808 = vunpack.c.l.b16 %v1672
        %v1809 = vunpack.c.l.b16 %v1686
        %v1810 = vunpack.c.l.b16 %v1696
        %v1811 = vunpack.c.l.b16 %v1710
        %v1812 = vunpack.c.l.b16 %v1720
        %v1813 = vunpack.c.l.b16 %v1734
        %v1814 = vunpack.c.l.b16 %v1744
        %v1815 = vunpack.c.l.b16 %v1758
        %v1816 = vunpack.c.l.b16 %v1768
        %v1817 = vpack.c.b16 %v1786, %v1785
        %v1818 = vpack.c.b16 %v1788, %v1787
        %v1819 = vpack.c.b16 %v1790, %v1789
        %v1820 = vpack.c.b16 %v1792, %v1791
        %v1821 = vpack.c.b16 %v1794, %v1793
        %v1822 = vpack.c.b16 %v1796, %v1795
        %v1823 = vpack.c.b16 %v1798, %v1797
        %v1824 = vpack.c.b16 %v1800, %v1799
        %v1825 = vpack.c.b16 %v1802, %v1801
        %v1826 = vpack.c.b16 %v1804, %v1803
        %v1827 = vpack.c.b16 %v1806, %v1805
        %v1828 = vpack.c.b16 %v1808, %v1807
        %v1829 = vpack.c.b16 %v1810, %v1809
        %v1830 = vpack.c.b16 %v1812, %v1811
        %v1831 = vpack.c.b16 %v1814, %v1813
        %v1832 = vpack.c.b16 %v1816, %v1815
        %v1865 = vunpack.c.l.b16 %v1769
        %v1866 = vunpack.c.l.b16 %v1770
        %v1867 = vunpack.c.l.b16 %v1771
        %v1868 = vunpack.c.l.b16 %v1772
        %v1869 = vunpack.c.l.b16 %v1773
        %v1870 = vunpack.c.l.b16 %v1774
        %v1871 = vunpack.c.l.b16 %v1775
        %v1872 = vunpack.c.l.b16 %v1776
        %v1873 = vunpack.c.l.b16 %v1777
        %v1874 = vunpack.c.l.b16 %v1778
        %v1875 = vunpack.c.l.b16 %v1779
        %v1876 = vunpack.c.l.b16 %v1780
        %v1877 = vunpack.c.l.b16 %v1781
        %v1878 = vunpack.c.l.b16 %v1782
        %v1879 = vunpack.c.l.b16 %v1783
        %v1880 = vunpack.c.l.b16 %v1784
        %v1881 = vpack.c.b16 %v1866, %v1865
        %v1882 = vpack.c.b16 %v1868, %v1867
        %v1883 = vpack.c.b16 %v1870, %v1869
        %v1884 = vpack.c.b16 %v1872, %v1871
        %v1885 = vpack.c.b16 %v1874, %v1873
        %v1886 = vpack.c.b16 %v1876, %v1875
        %v1887 = vpack.c.b16 %v1878, %v1877
        %v1888 = vpack.c.b16 %v1880, %v1879
        %1897 = vmatprep.subr.bf16.mxu0 0
        %1898 = vmatpush1.bf16.msra.mxu0 %v1881
        %1899 = vmatprep.subr.bf16.mxu0 0
        %1900 = vmatpush1.bf16.msra.mxu0 %v1882
        %1901 = vmatprep.subr.bf16.mxu0 0
        %1902 = vmatpush1.bf16.msra.mxu0 %v1883
        %1903 = vmatprep.subr.bf16.mxu0 0
        %1904 = vmatpush1.bf16.msra.mxu0 %v1884
        %1905 = vmatprep.subr.bf16.mxu0 0
        %1906 = vmatpush1.bf16.msra.mxu0 %v1885
        %1907 = vmatprep.subr.bf16.mxu0 0
        %1908 = vmatpush1.bf16.msra.mxu0 %v1886
        %1909 = vmatprep.subr.bf16.mxu0 0
        %1910 = vmatpush1.bf16.msra.mxu0 %v1887
        %1911 = vmatprep.subr.bf16.mxu0 0
        %1912 = vmatpush1.bf16.msra.mxu0 %v1888
        %1913 = vmatprep.subr.bf16.mxu0 0
        %1914 = vmatpush1.bf16.msra.mxu0 0
        %1915 = vmatprep.subr.bf16.mxu0 0
        %1916 = vmatpush1.bf16.msra.mxu0 0
        %1917 = vmatprep.subr.bf16.mxu0 0
        %1918 = vmatpush1.bf16.msra.mxu0 0
        %1919 = vmatprep.subr.bf16.mxu0 0
        %1920 = vmatpush1.bf16.msra.mxu0 0
        %1921 = vmatprep.subr.bf16.mxu0 0
        %1922 = vmatpush1.bf16.msra.mxu0 0
        %1923 = vmatprep.subr.bf16.mxu0 0
        %1924 = vmatpush1.bf16.msra.mxu0 0
        %1925 = vmatprep.subr.bf16.mxu0 0
        %1926 = vmatpush1.bf16.msra.mxu0 0
        %1927 = vmatprep.subr.bf16.mxu0 0
        %1928 = vmatpush1.bf16.msra.mxu0 0
        %1929 = vmatprep.mubr.bf16.mxu0 0
        %1930 = vmatmul.mubr.bf16.gmra.mrb[0].mxu0 %v1817
        %v1931 = vpop.f32.mrb[0].mxu0
        %v1932 = vadd.f32 0.0, %v1931
        %v1933 = vpop.f32.mrb[0].mxu0
        %v1934 = vpop.f32.mrb[0].mxu0
        %v1935 = vadd.f32 0.0, %v1934
        %v1936 = vpop.f32.mrb[0].mxu0
        %1937 = vmatprep.mubr.bf16.mxu0 0
        %1938 = vmatmul.mubr.bf16.gmra.mrb[0].mxu0 %v1818
        %v1939 = vpop.f32.mrb[0].mxu0
        %v1940 = vadd.f32 0.0, %v1939
        %v1941 = vpop.f32.mrb[0].mxu0
        %v1942 = vpop.f32.mrb[0].mxu0
        %v1943 = vadd.f32 0.0, %v1942
        %v1944 = vpop.f32.mrb[0].mxu0
        %1945 = vmatprep.mubr.bf16.mxu0 0
        %1946 = vmatmul.mubr.bf16.gmra.mrb[0].mxu0 %v1819
        %v1947 = vpop.f32.mrb[0].mxu0
        %v1948 = vadd.f32 0.0, %v1947
        %v1949 = vpop.f32.mrb[0].mxu0
        %v1950 = vpop.f32.mrb[0].mxu0
        %v1951 = vadd.f32 0.0, %v1950
        %v1952 = vpop.f32.mrb[0].mxu0
        %1953 = vmatprep.mubr.bf16.mxu0 0
        %1954 = vmatmul.mubr.bf16.gmra.mrb[0].mxu0 %v1820
        %v1955 = vpop.f32.mrb[0].mxu0
        %v1956 = vadd.f32 0.0, %v1955
        %v1957 = vpop.f32.mrb[0].mxu0
        %v1958 = vpop.f32.mrb[0].mxu0
        %v1959 = vadd.f32 0.0, %v1958
        %v1960 = vpop.f32.mrb[0].mxu0
        %1961 = vmatprep.mubr.bf16.mxu0 0
        %1962 = vmatmul.mubr.bf16.gmra.mrb[0].mxu0 %v1821
        %v1963 = vpop.f32.mrb[0].mxu0
        %v1964 = vadd.f32 0.0, %v1963
        %v1965 = vpop.f32.mrb[0].mxu0
        %v1966 = vpop.f32.mrb[0].mxu0
        %v1967 = vadd.f32 0.0, %v1966
        %v1968 = vpop.f32.mrb[0].mxu0
        %1969 = vmatprep.mubr.bf16.mxu0 0
        %1970 = vmatmul.mubr.bf16.gmra.mrb[0].mxu0 %v1822
        %v1971 = vpop.f32.mrb[0].mxu0
        %v1972 = vadd.f32 0.0, %v1971
        %v1973 = vpop.f32.mrb[0].mxu0
        %v1974 = vpop.f32.mrb[0].mxu0
        %v1975 = vadd.f32 0.0, %v1974
        %v1976 = vpop.f32.mrb[0].mxu0
        %1977 = vmatprep.mubr.bf16.mxu0 0
        %1978 = vmatmul.mubr.bf16.gmra.mrb[0].mxu0 %v1823
        %v1979 = vpop.f32.mrb[0].mxu0
        %v1980 = vadd.f32 0.0, %v1979
        %v1981 = vpop.f32.mrb[0].mxu0
        %v1982 = vpop.f32.mrb[0].mxu0
        %v1983 = vadd.f32 0.0, %v1982
        %v1984 = vpop.f32.mrb[0].mxu0
        %1985 = vmatprep.mubr.bf16.mxu0 0
        %1986 = vmatmul.mubr.bf16.gmra.mrb[0].mxu0 %v1824
        %v1987 = vpop.f32.mrb[0].mxu0
        %v1988 = vadd.f32 0.0, %v1987
        %v1989 = vpop.f32.mrb[0].mxu0
        %v1990 = vpop.f32.mrb[0].mxu0
        %v1991 = vadd.f32 0.0, %v1990
        %v1992 = vpop.f32.mrb[0].mxu0
        %1993 = vmatprep.mubr.bf16.mxu0 0
        %1994 = vmatmul.mubr.bf16.gmra.mrb[0].mxu0 %v1825
        %v1995 = vpop.f32.mrb[0].mxu0
        %v1996 = vadd.f32 0.0, %v1995
        %v1997 = vpop.f32.mrb[0].mxu0
        %v1998 = vpop.f32.mrb[0].mxu0
        %v1999 = vadd.f32 0.0, %v1998
        %v2000 = vpop.f32.mrb[0].mxu0
        %2001 = vmatprep.mubr.bf16.mxu0 0
        %2002 = vmatmul.mubr.bf16.gmra.mrb[0].mxu0 %v1826
        %v2003 = vpop.f32.mrb[0].mxu0
        %v2004 = vadd.f32 0.0, %v2003
        %v2005 = vpop.f32.mrb[0].mxu0
        %v2006 = vpop.f32.mrb[0].mxu0
        %v2007 = vadd.f32 0.0, %v2006
        %v2008 = vpop.f32.mrb[0].mxu0
        %2009 = vmatprep.mubr.bf16.mxu0 0
        %2010 = vmatmul.mubr.bf16.gmra.mrb[0].mxu0 %v1827
        %v2011 = vpop.f32.mrb[0].mxu0
        %v2012 = vadd.f32 0.0, %v2011
        %v2013 = vpop.f32.mrb[0].mxu0
        %v2014 = vpop.f32.mrb[0].mxu0
        %v2015 = vadd.f32 0.0, %v2014
        %v2016 = vpop.f32.mrb[0].mxu0
        %2017 = vmatprep.mubr.bf16.mxu0 0
        %2018 = vmatmul.mubr.bf16.gmra.mrb[0].mxu0 %v1828
        %v2019 = vpop.f32.mrb[0].mxu0
        %v2020 = vadd.f32 0.0, %v2019
        %v2021 = vpop.f32.mrb[0].mxu0
        %v2022 = vpop.f32.mrb[0].mxu0
        %v2023 = vadd.f32 0.0, %v2022
        %v2024 = vpop.f32.mrb[0].mxu0
        %2025 = vmatprep.mubr.bf16.mxu0 0
        %2026 = vmatmul.mubr.bf16.gmra.mrb[0].mxu0 %v1829
        %v2027 = vpop.f32.mrb[0].mxu0
        %v2028 = vadd.f32 0.0, %v2027
        %v2029 = vpop.f32.mrb[0].mxu0
        %v2030 = vpop.f32.mrb[0].mxu0
        %v2031 = vadd.f32 0.0, %v2030
        %v2032 = vpop.f32.mrb[0].mxu0
        %2033 = vmatprep.mubr.bf16.mxu0 0
        %2034 = vmatmul.mubr.bf16.gmra.mrb[0].mxu0 %v1830
        %v2035 = vpop.f32.mrb[0].mxu0
        %v2036 = vadd.f32 0.0, %v2035
        %v2037 = vpop.f32.mrb[0].mxu0
        %v2038 = vpop.f32.mrb[0].mxu0
        %v2039 = vadd.f32 0.0, %v2038
        %v2040 = vpop.f32.mrb[0].mxu0
        %2041 = vmatprep.mubr.bf16.mxu0 0
        %2042 = vmatmul.mubr.bf16.gmra.mrb[0].mxu0 %v1831
        %v2043 = vpop.f32.mrb[0].mxu0
        %v2044 = vadd.f32 0.0, %v2043
        %v2045 = vpop.f32.mrb[0].mxu0
        %v2046 = vpop.f32.mrb[0].mxu0
        %v2047 = vadd.f32 0.0, %v2046
        %v2048 = vpop.f32.mrb[0].mxu0
        %2049 = vmatprep.mubr.bf16.mxu0 0
        %2050 = vmatmul.mubr.bf16.gmra.mrb[0].mxu0 %v1832
        %v2051 = vpop.f32.mrb[0].mxu0
        %v2052 = vadd.f32 0.0, %v2051
        %v2053 = vpop.f32.mrb[0].mxu0
        %v2054 = vpop.f32.mrb[0].mxu0
        %v2055 = vadd.f32 0.0, %v2054
        %v2056 = vpop.f32.mrb[0].mxu0
        %2057 = vdwg.mxu0
        %v2090 = vunpack.c.l.b16 %v1318
        %v2091 = vunpack.c.l.b16 %v1319
        %v2092 = vunpack.c.l.b16 %v1320
        %v2093 = vunpack.c.l.b16 %v1321
        %v2094 = vunpack.c.l.b16 %v1322
        %v2095 = vunpack.c.l.b16 %v1323
        %v2096 = vunpack.c.l.b16 %v1324
        %v2097 = vunpack.c.l.b16 %v1325
        %v2098 = vunpack.c.l.b16 %v1326
        %v2099 = vunpack.c.l.b16 %v1327
        %v2100 = vunpack.c.l.b16 %v1328
        %v2101 = vunpack.c.l.b16 %v1329
        %v2102 = vunpack.c.l.b16 %v1330
        %v2103 = vunpack.c.l.b16 %v1331
        %v2104 = vunpack.c.l.b16 %v1332
        %v2105 = vunpack.c.l.b16 %v1333
        %v2106 = vunpack.c.l.b16 %v1334
        %v2107 = vunpack.c.l.b16 %v1335
        %v2108 = vunpack.c.l.b16 %v1336
        %v2109 = vunpack.c.l.b16 %v1337
        %v2110 = vunpack.c.l.b16 %v1338
        %v2111 = vunpack.c.l.b16 %v1339
        %v2112 = vunpack.c.l.b16 %v1340
        %v2113 = vunpack.c.l.b16 %v1341
        %v2114 = vunpack.c.l.b16 %v1342
        %v2115 = vunpack.c.l.b16 %v1343
        %v2116 = vunpack.c.l.b16 %v1344
        %v2117 = vunpack.c.l.b16 %v1345
        %v2118 = vunpack.c.l.b16 %v1346
        %v2119 = vunpack.c.l.b16 %v1347
        %v2120 = vunpack.c.l.b16 %v1348
        %v2121 = vunpack.c.l.b16 %v1349
        %v2122 = vpack.c.b16 %v2091, %v2090
        %v2123 = vpack.c.b16 %v2093, %v2092
        %v2124 = vpack.c.b16 %v2095, %v2094
        %v2125 = vpack.c.b16 %v2097, %v2096
        %v2126 = vpack.c.b16 %v2099, %v2098
        %v2127 = vpack.c.b16 %v2101, %v2100
        %v2128 = vpack.c.b16 %v2103, %v2102
        %v2129 = vpack.c.b16 %v2105, %v2104
        %v2130 = vpack.c.b16 %v2107, %v2106
        %v2131 = vpack.c.b16 %v2109, %v2108
        %v2132 = vpack.c.b16 %v2111, %v2110
        %v2133 = vpack.c.b16 %v2113, %v2112
        %v2134 = vpack.c.b16 %v2115, %v2114
        %v2135 = vpack.c.b16 %v2117, %v2116
        %v2136 = vpack.c.b16 %v2119, %v2118
        %v2137 = vpack.c.b16 %v2121, %v2120
        %v2170 = vunpack.c.l.b16 %v1350
        %v2171 = vunpack.c.l.b16 %v1351
        %v2172 = vunpack.c.l.b16 %v1352
        %v2173 = vunpack.c.l.b16 %v1353
        %v2174 = vunpack.c.l.b16 %v1354
        %v2175 = vunpack.c.l.b16 %v1355
        %v2176 = vunpack.c.l.b16 %v1356
        %v2177 = vunpack.c.l.b16 %v1357
        %v2178 = vunpack.c.l.b16 %v1358
        %v2179 = vunpack.c.l.b16 %v1359
        %v2180 = vunpack.c.l.b16 %v1360
        %v2181 = vunpack.c.l.b16 %v1361
        %v2182 = vunpack.c.l.b16 %v1362
        %v2183 = vunpack.c.l.b16 %v1363
        %v2184 = vunpack.c.l.b16 %v1364
        %v2185 = vunpack.c.l.b16 %v1365
        %v2186 = vpack.c.b16 %v2171, %v2170
        %v2187 = vpack.c.b16 %v2173, %v2172
        %v2188 = vpack.c.b16 %v2175, %v2174
        %v2189 = vpack.c.b16 %v2177, %v2176
        %v2190 = vpack.c.b16 %v2179, %v2178
        %v2191 = vpack.c.b16 %v2181, %v2180
        %v2192 = vpack.c.b16 %v2183, %v2182
        %v2193 = vpack.c.b16 %v2185, %v2184
        %2202 = vmatprep.subr.bf16.mxu0 0
        %2203 = vmatpush1.bf16.msra.mxu0 %v2186
        %2204 = vmatprep.subr.bf16.mxu0 0
        %2205 = vmatpush1.bf16.msra.mxu0 %v2187
        %2206 = vmatprep.subr.bf16.mxu0 0
        %2207 = vmatpush1.bf16.msra.mxu0 %v2188
        %2208 = vmatprep.subr.bf16.mxu0 0
        %2209 = vmatpush1.bf16.msra.mxu0 %v2189
        %2210 = vmatprep.subr.bf16.mxu0 0
        %2211 = vmatpush1.bf16.msra.mxu0 %v2190
        %2212 = vmatprep.subr.bf16.mxu0 0
        %2213 = vmatpush1.bf16.msra.mxu0 %v2191
        %2214 = vmatprep.subr.bf16.mxu0 0
        %2215 = vmatpush1.bf16.msra.mxu0 %v2192
        %2216 = vmatprep.subr.bf16.mxu0 0
        %2217 = vmatpush1.bf16.msra.mxu0 %v2193
        %2218 = vmatprep.subr.bf16.mxu0 0
        %2219 = vmatpush1.bf16.msra.mxu0 0
        %2220 = vmatprep.subr.bf16.mxu0 0
        %2221 = vmatpush1.bf16.msra.mxu0 0
        %2222 = vmatprep.subr.bf16.mxu0 0
        %2223 = vmatpush1.bf16.msra.mxu0 0
        %2224 = vmatprep.subr.bf16.mxu0 0
        %2225 = vmatpush1.bf16.msra.mxu0 0
        %2226 = vmatprep.subr.bf16.mxu0 0
        %2227 = vmatpush1.bf16.msra.mxu0 0
        %2228 = vmatprep.subr.bf16.mxu0 0
        %2229 = vmatpush1.bf16.msra.mxu0 0
        %2230 = vmatprep.subr.bf16.mxu0 0
        %2231 = vmatpush1.bf16.msra.mxu0 0
        %2232 = vmatprep.subr.bf16.mxu0 0
        %2233 = vmatpush1.bf16.msra.mxu0 0
        %2234 = vmatprep.mubr.bf16.mxu0 0
        %2235 = vmatmul.mubr.bf16.gmra.mrb[0].mxu0 %v2122
        %v2236 = vpop.f32.mrb[0].mxu0
        %v2237 = vadd.f32 %v1932, %v2236
        %v2238 = vpop.f32.mrb[0].mxu0
        %v2239 = vpop.f32.mrb[0].mxu0
        %v2240 = vadd.f32 %v1935, %v2239
        %v2241 = vpop.f32.mrb[0].mxu0
        %2242 = vmatprep.mubr.bf16.mxu0 0
        %2243 = vmatmul.mubr.bf16.gmra.mrb[0].mxu0 %v2123
        %v2244 = vpop.f32.mrb[0].mxu0
        %v2245 = vadd.f32 %v1940, %v2244
        %v2246 = vpop.f32.mrb[0].mxu0
        %v2247 = vpop.f32.mrb[0].mxu0
        %v2248 = vadd.f32 %v1943, %v2247
        %v2249 = vpop.f32.mrb[0].mxu0
        %2250 = vmatprep.mubr.bf16.mxu0 0
        %2251 = vmatmul.mubr.bf16.gmra.mrb[0].mxu0 %v2124
        %v2252 = vpop.f32.mrb[0].mxu0
        %v2253 = vadd.f32 %v1948, %v2252
        %v2254 = vpop.f32.mrb[0].mxu0
        %v2255 = vpop.f32.mrb[0].mxu0
        %v2256 = vadd.f32 %v1951, %v2255
        %v2257 = vpop.f32.mrb[0].mxu0
        %2258 = vmatprep.mubr.bf16.mxu0 0
        %2259 = vmatmul.mubr.bf16.gmra.mrb[0].mxu0 %v2125
        %v2260 = vpop.f32.mrb[0].mxu0
        %v2261 = vadd.f32 %v1956, %v2260
        %v2262 = vpop.f32.mrb[0].mxu0
        %v2263 = vpop.f32.mrb[0].mxu0
        %v2264 = vadd.f32 %v1959, %v2263
        %v2265 = vpop.f32.mrb[0].mxu0
        %2266 = vmatprep.mubr.bf16.mxu0 0
        %2267 = vmatmul.mubr.bf16.gmra.mrb[0].mxu0 %v2126
        %v2268 = vpop.f32.mrb[0].mxu0
        %v2269 = vadd.f32 %v1964, %v2268
        %v2270 = vpop.f32.mrb[0].mxu0
        %v2271 = vpop.f32.mrb[0].mxu0
        %v2272 = vadd.f32 %v1967, %v2271
        %v2273 = vpop.f32.mrb[0].mxu0
        %2274 = vmatprep.mubr.bf16.mxu0 0
        %2275 = vmatmul.mubr.bf16.gmra.mrb[0].mxu0 %v2127
        %v2276 = vpop.f32.mrb[0].mxu0
        %v2277 = vadd.f32 %v1972, %v2276
        %v2278 = vpop.f32.mrb[0].mxu0
        %v2279 = vpop.f32.mrb[0].mxu0
        %v2280 = vadd.f32 %v1975, %v2279
        %v2281 = vpop.f32.mrb[0].mxu0
        %2282 = vmatprep.mubr.bf16.mxu0 0
        %2283 = vmatmul.mubr.bf16.gmra.mrb[0].mxu0 %v2128
        %v2284 = vpop.f32.mrb[0].mxu0
        %v2285 = vadd.f32 %v1980, %v2284
        %v2286 = vpop.f32.mrb[0].mxu0
        %v2287 = vpop.f32.mrb[0].mxu0
        %v2288 = vadd.f32 %v1983, %v2287
        %v2289 = vpop.f32.mrb[0].mxu0
        %2290 = vmatprep.mubr.bf16.mxu0 0
        %2291 = vmatmul.mubr.bf16.gmra.mrb[0].mxu0 %v2129
        %v2292 = vpop.f32.mrb[0].mxu0
        %v2293 = vadd.f32 %v1988, %v2292
        %v2294 = vpop.f32.mrb[0].mxu0
        %v2295 = vpop.f32.mrb[0].mxu0
        %v2296 = vadd.f32 %v1991, %v2295
        %v2297 = vpop.f32.mrb[0].mxu0
        %2298 = vmatprep.mubr.bf16.mxu0 0
        %2299 = vmatmul.mubr.bf16.gmra.mrb[0].mxu0 %v2130
        %v2300 = vpop.f32.mrb[0].mxu0
        %v2301 = vadd.f32 %v1996, %v2300
        %v2302 = vpop.f32.mrb[0].mxu0
        %v2303 = vpop.f32.mrb[0].mxu0
        %v2304 = vadd.f32 %v1999, %v2303
        %v2305 = vpop.f32.mrb[0].mxu0
        %2306 = vmatprep.mubr.bf16.mxu0 0
        %2307 = vmatmul.mubr.bf16.gmra.mrb[0].mxu0 %v2131
        %v2308 = vpop.f32.mrb[0].mxu0
        %v2309 = vadd.f32 %v2004, %v2308
        %v2310 = vpop.f32.mrb[0].mxu0
        %v2311 = vpop.f32.mrb[0].mxu0
        %v2312 = vadd.f32 %v2007, %v2311
        %v2313 = vpop.f32.mrb[0].mxu0
        %2314 = vmatprep.mubr.bf16.mxu0 0
        %2315 = vmatmul.mubr.bf16.gmra.mrb[0].mxu0 %v2132
        %v2316 = vpop.f32.mrb[0].mxu0
        %v2317 = vadd.f32 %v2012, %v2316
        %v2318 = vpop.f32.mrb[0].mxu0
        %v2319 = vpop.f32.mrb[0].mxu0
        %v2320 = vadd.f32 %v2015, %v2319
        %v2321 = vpop.f32.mrb[0].mxu0
        %2322 = vmatprep.mubr.bf16.mxu0 0
        %2323 = vmatmul.mubr.bf16.gmra.mrb[0].mxu0 %v2133
        %v2324 = vpop.f32.mrb[0].mxu0
        %v2325 = vadd.f32 %v2020, %v2324
        %v2326 = vpop.f32.mrb[0].mxu0
        %v2327 = vpop.f32.mrb[0].mxu0
        %v2328 = vadd.f32 %v2023, %v2327
        %v2329 = vpop.f32.mrb[0].mxu0
        %2330 = vmatprep.mubr.bf16.mxu0 0
        %2331 = vmatmul.mubr.bf16.gmra.mrb[0].mxu0 %v2134
        %v2332 = vpop.f32.mrb[0].mxu0
        %v2333 = vadd.f32 %v2028, %v2332
        %v2334 = vpop.f32.mrb[0].mxu0
        %v2335 = vpop.f32.mrb[0].mxu0
        %v2336 = vadd.f32 %v2031, %v2335
        %v2337 = vpop.f32.mrb[0].mxu0
        %2338 = vmatprep.mubr.bf16.mxu0 0
        %2339 = vmatmul.mubr.bf16.gmra.mrb[0].mxu0 %v2135
        %v2340 = vpop.f32.mrb[0].mxu0
        %v2341 = vadd.f32 %v2036, %v2340
        %v2342 = vpop.f32.mrb[0].mxu0
        %v2343 = vpop.f32.mrb[0].mxu0
        %v2344 = vadd.f32 %v2039, %v2343
        %v2345 = vpop.f32.mrb[0].mxu0
        %2346 = vmatprep.mubr.bf16.mxu0 0
        %2347 = vmatmul.mubr.bf16.gmra.mrb[0].mxu0 %v2136
        %v2348 = vpop.f32.mrb[0].mxu0
        %v2349 = vadd.f32 %v2044, %v2348
        %v2350 = vpop.f32.mrb[0].mxu0
        %v2351 = vpop.f32.mrb[0].mxu0
        %v2352 = vadd.f32 %v2047, %v2351
        %v2353 = vpop.f32.mrb[0].mxu0
        %2354 = vmatprep.mubr.bf16.mxu0 0
        %2355 = vmatmul.mubr.bf16.gmra.mrb[0].mxu0 %v2137
        %v2356 = vpop.f32.mrb[0].mxu0
        %v2357 = vadd.f32 %v2052, %v2356
        %v2358 = vpop.f32.mrb[0].mxu0
        %v2359 = vpop.f32.mrb[0].mxu0
        %v2360 = vadd.f32 %v2055, %v2359
        %v2361 = vpop.f32.mrb[0].mxu0
        %2362 = vdwg.mxu0
        %v2363 = vld [vmem:[#allocation2] sm:$0xe]
        %v2364 = vld [vmem:[#allocation2 + $0xc] sm:$0xe]
        %v2365 = vld [vmem:[#allocation2 + $0x18] sm:$0xe]
        %v2366 = vld [vmem:[#allocation2 + $0x24] sm:$0xe]
        %v2367 = vld [vmem:[#allocation2 + $0x30] sm:$0xe]
        %v2368 = vld [vmem:[#allocation2 + $0x3c] sm:$0xe]
        %v2369 = vld [vmem:[#allocation2 + $0x48] sm:$0xe]
        %v2370 = vld [vmem:[#allocation2 + $0x54] sm:$0xe]
        %v2371 = vld [vmem:[#allocation2 + $0x60] sm:$0xe]
        %v2372 = vld [vmem:[#allocation2 + $0x6c] sm:$0xe]
        %v2373 = vld [vmem:[#allocation2 + $0x78] sm:$0xe]
        %v2374 = vld [vmem:[#allocation2 + $0x84] sm:$0xe]
        %v2375 = vld [vmem:[#allocation2 + $0x90] sm:$0xe]
        %v2376 = vld [vmem:[#allocation2 + $0x9c] sm:$0xe]
        %v2377 = vld [vmem:[#allocation2 + $0xa8] sm:$0xe]
        %v2378 = vld [vmem:[#allocation2 + $0xb4] sm:$0xe]
        %vm2411 = vcmask 1042432
        %vm2412 = vcmask 1046532
        %vm2413 = vmor %vm2411, %vm2412
        %v2414 = vrot.slane %v2363, 5
        %v2415 = vrot.slane %v2414, 4
        %v2416 = vrot.slane %v1319, 5
        %v2417 = vsel %vm2413, %v2415, %v2416
        %v2418 = vrot.slane %v2416, 4
        %v2419 = vrot.slane %v1366, 5
        %v2420 = vsel %vm2413, %v2418, %v2419
        %v2421 = vrot.slane %v2364, 5
        %v2422 = vrot.slane %v2421, 4
        %v2423 = vrot.slane %v1321, 5
        %v2424 = vsel %vm2413, %v2422, %v2423
        %v2425 = vrot.slane %v2423, 4
        %v2426 = vrot.slane %v1367, 5
        %v2427 = vsel %vm2413, %v2425, %v2426
        %v2428 = vrot.slane %v2365, 5
        %v2429 = vrot.slane %v2428, 4
        %v2430 = vrot.slane %v1323, 5
        %v2431 = vsel %vm2413, %v2429, %v2430
        %v2432 = vrot.slane %v2430, 4
        %v2433 = vrot.slane %v1368, 5
        %v2434 = vsel %vm2413, %v2432, %v2433
        %v2435 = vrot.slane %v2366, 5
        %v2436 = vrot.slane %v2435, 4
        %v2437 = vrot.slane %v1325, 5
        %v2438 = vsel %vm2413, %v2436, %v2437
        %v2439 = vrot.slane %v2437, 4
        %v2440 = vrot.slane %v1369, 5
        %v2441 = vsel %vm2413, %v2439, %v2440
        %v2442 = vrot.slane %v2367, 5
        %v2443 = vrot.slane %v2442, 4
        %v2444 = vrot.slane %v1327, 5
        %v2445 = vsel %vm2413, %v2443, %v2444
        %v2446 = vrot.slane %v2444, 4
        %v2447 = vrot.slane %v1370, 5
        %v2448 = vsel %vm2413, %v2446, %v2447
        %v2449 = vrot.slane %v2368, 5
        %v2450 = vrot.slane %v2449, 4
        %v2451 = vrot.slane %v1329, 5
        %v2452 = vsel %vm2413, %v2450, %v2451
        %v2453 = vrot.slane %v2451, 4
        %v2454 = vrot.slane %v1371, 5
        %v2455 = vsel %vm2413, %v2453, %v2454
        %v2456 = vrot.slane %v2369, 5
        %v2457 = vrot.slane %v2456, 4
        %v2458 = vrot.slane %v1331, 5
        %v2459 = vsel %vm2413, %v2457, %v2458
        %v2460 = vrot.slane %v2458, 4
        %v2461 = vrot.slane %v1372, 5
        %v2462 = vsel %vm2413, %v2460, %v2461
        %v2463 = vrot.slane %v2370, 5
        %v2464 = vrot.slane %v2463, 4
        %v2465 = vrot.slane %v1333, 5
        %v2466 = vsel %vm2413, %v2464, %v2465
        %v2467 = vrot.slane %v2465, 4
        %v2468 = vrot.slane %v1373, 5
        %v2469 = vsel %vm2413, %v2467, %v2468
        %v2470 = vrot.slane %v2371, 5
        %v2471 = vrot.slane %v2470, 4
        %v2472 = vrot.slane %v1335, 5
        %v2473 = vsel %vm2413, %v2471, %v2472
        %v2474 = vrot.slane %v2472, 4
        %v2475 = vrot.slane %v1374, 5
        %v2476 = vsel %vm2413, %v2474, %v2475
        %v2477 = vrot.slane %v2372, 5
        %v2478 = vrot.slane %v2477, 4
        %v2479 = vrot.slane %v1337, 5
        %v2480 = vsel %vm2413, %v2478, %v2479
        %v2481 = vrot.slane %v2479, 4
        %v2482 = vrot.slane %v1375, 5
        %v2483 = vsel %vm2413, %v2481, %v2482
        %v2484 = vrot.slane %v2373, 5
        %v2485 = vrot.slane %v2484, 4
        %v2486 = vrot.slane %v1339, 5
        %v2487 = vsel %vm2413, %v2485, %v2486
        %v2488 = vrot.slane %v2486, 4
        %v2489 = vrot.slane %v1376, 5
        %v2490 = vsel %vm2413, %v2488, %v2489
        %v2491 = vrot.slane %v2374, 5
        %v2492 = vrot.slane %v2491, 4
        %v2493 = vrot.slane %v1341, 5
        %v2494 = vsel %vm2413, %v2492, %v2493
        %v2495 = vrot.slane %v2493, 4
        %v2496 = vrot.slane %v1377, 5
        %v2497 = vsel %vm2413, %v2495, %v2496
        %v2498 = vrot.slane %v2375, 5
        %v2499 = vrot.slane %v2498, 4
        %v2500 = vrot.slane %v1343, 5
        %v2501 = vsel %vm2413, %v2499, %v2500
        %v2502 = vrot.slane %v2500, 4
        %v2503 = vrot.slane %v1378, 5
        %v2504 = vsel %vm2413, %v2502, %v2503
        %v2505 = vrot.slane %v2376, 5
        %v2506 = vrot.slane %v2505, 4
        %v2507 = vrot.slane %v1345, 5
        %v2508 = vsel %vm2413, %v2506, %v2507
        %v2509 = vrot.slane %v2507, 4
        %v2510 = vrot.slane %v1379, 5
        %v2511 = vsel %vm2413, %v2509, %v2510
        %v2512 = vrot.slane %v2377, 5
        %v2513 = vrot.slane %v2512, 4
        %v2514 = vrot.slane %v1347, 5
        %v2515 = vsel %vm2413, %v2513, %v2514
        %v2516 = vrot.slane %v2514, 4
        %v2517 = vrot.slane %v1380, 5
        %v2518 = vsel %vm2413, %v2516, %v2517
        %v2519 = vrot.slane %v2378, 5
        %v2520 = vrot.slane %v2519, 4
        %v2521 = vrot.slane %v1349, 5
        %v2522 = vsel %vm2413, %v2520, %v2521
        %v2523 = vrot.slane %v2521, 4
        %v2524 = vrot.slane %v1381, 5
        %v2525 = vsel %vm2413, %v2523, %v2524
        %v2526 = vld [vmem:[#allocation8 + $0x80] sm:$0xf]
        %v2527 = vld [vmem:[#allocation8 + $0x84] sm:$0xf]
        %v2528 = vld [vmem:[#allocation8 + $0x88] sm:$0xf]
        %v2529 = vld [vmem:[#allocation8 + $0x8c] sm:$0xf]
        %v2530 = vld [vmem:[#allocation8 + $0x90] sm:$0xf]
        %v2531 = vld [vmem:[#allocation8 + $0x94] sm:$0xf]
        %v2532 = vld [vmem:[#allocation8 + $0x98] sm:$0xf]
        %v2533 = vld [vmem:[#allocation8 + $0x9c] sm:$0xf]
        %v2534 = vld [vmem:[#allocation8 + $0xa0] sm:$0xf]
        %v2535 = vld [vmem:[#allocation8 + $0xa4] sm:$0xf]
        %v2536 = vld [vmem:[#allocation8 + $0xa8] sm:$0xf]
        %v2537 = vld [vmem:[#allocation8 + $0xac] sm:$0xf]
        %v2538 = vld [vmem:[#allocation8 + $0xb0] sm:$0xf]
        %v2539 = vld [vmem:[#allocation8 + $0xb4] sm:$0xf]
        %v2540 = vld [vmem:[#allocation8 + $0xb8] sm:$0xf]
        %v2541 = vld [vmem:[#allocation8 + $0xbc] sm:$0xf]
        %v2542 = vunpack.c.l.b16 %v2417
        %v2543 = vunpack.c.l.b16 %v2420
        %v2544 = vunpack.c.l.b16 %v2424
        %v2545 = vunpack.c.l.b16 %v2427
        %v2546 = vunpack.c.l.b16 %v2431
        %v2547 = vunpack.c.l.b16 %v2434
        %v2548 = vunpack.c.l.b16 %v2438
        %v2549 = vunpack.c.l.b16 %v2441
        %v2550 = vunpack.c.l.b16 %v2445
        %v2551 = vunpack.c.l.b16 %v2448
        %v2552 = vunpack.c.l.b16 %v2452
        %v2553 = vunpack.c.l.b16 %v2455
        %v2554 = vunpack.c.l.b16 %v2459
        %v2555 = vunpack.c.l.b16 %v2462
        %v2556 = vunpack.c.l.b16 %v2466
        %v2557 = vunpack.c.l.b16 %v2469
        %v2558 = vunpack.c.l.b16 %v2473
        %v2559 = vunpack.c.l.b16 %v2476
        %v2560 = vunpack.c.l.b16 %v2480
        %v2561 = vunpack.c.l.b16 %v2483
        %v2562 = vunpack.c.l.b16 %v2487
        %v2563 = vunpack.c.l.b16 %v2490
        %v2564 = vunpack.c.l.b16 %v2494
        %v2565 = vunpack.c.l.b16 %v2497
        %v2566 = vunpack.c.l.b16 %v2501
        %v2567 = vunpack.c.l.b16 %v2504
        %v2568 = vunpack.c.l.b16 %v2508
        %v2569 = vunpack.c.l.b16 %v2511
        %v2570 = vunpack.c.l.b16 %v2515
        %v2571 = vunpack.c.l.b16 %v2518
        %v2572 = vunpack.c.l.b16 %v2522
        %v2573 = vunpack.c.l.b16 %v2525
        %v2574 = vpack.c.b16 %v2543, %v2542
        %v2575 = vpack.c.b16 %v2545, %v2544
        %v2576 = vpack.c.b16 %v2547, %v2546
        %v2577 = vpack.c.b16 %v2549, %v2548
        %v2578 = vpack.c.b16 %v2551, %v2550
        %v2579 = vpack.c.b16 %v2553, %v2552
        %v2580 = vpack.c.b16 %v2555, %v2554
        %v2581 = vpack.c.b16 %v2557, %v2556
        %v2582 = vpack.c.b16 %v2559, %v2558
        %v2583 = vpack.c.b16 %v2561, %v2560
        %v2584 = vpack.c.b16 %v2563, %v2562
        %v2585 = vpack.c.b16 %v2565, %v2564
        %v2586 = vpack.c.b16 %v2567, %v2566
        %v2587 = vpack.c.b16 %v2569, %v2568
        %v2588 = vpack.c.b16 %v2571, %v2570
        %v2589 = vpack.c.b16 %v2573, %v2572
        %v2622 = vunpack.c.l.b16 %v2526
        %v2623 = vunpack.c.l.b16 %v2527
        %v2624 = vunpack.c.l.b16 %v2528
        %v2625 = vunpack.c.l.b16 %v2529
        %v2626 = vunpack.c.l.b16 %v2530
        %v2627 = vunpack.c.l.b16 %v2531
        %v2628 = vunpack.c.l.b16 %v2532
        %v2629 = vunpack.c.l.b16 %v2533
        %v2630 = vunpack.c.l.b16 %v2534
        %v2631 = vunpack.c.l.b16 %v2535
        %v2632 = vunpack.c.l.b16 %v2536
        %v2633 = vunpack.c.l.b16 %v2537
        %v2634 = vunpack.c.l.b16 %v2538
        %v2635 = vunpack.c.l.b16 %v2539
        %v2636 = vunpack.c.l.b16 %v2540
        %v2637 = vunpack.c.l.b16 %v2541
        %v2638 = vpack.c.b16 %v2623, %v2622
        %v2639 = vpack.c.b16 %v2625, %v2624
        %v2640 = vpack.c.b16 %v2627, %v2626
        %v2641 = vpack.c.b16 %v2629, %v2628
        %v2642 = vpack.c.b16 %v2631, %v2630
        %v2643 = vpack.c.b16 %v2633, %v2632
        %v2644 = vpack.c.b16 %v2635, %v2634
        %v2645 = vpack.c.b16 %v2637, %v2636
        %2654 = vmatprep.subr.bf16.mxu0 0
        %2655 = vmatpush1.bf16.msra.mxu0 %v2638
        %2656 = vmatprep.subr.bf16.mxu0 0
        %2657 = vmatpush1.bf16.msra.mxu0 %v2639
        %2658 = vmatprep.subr.bf16.mxu0 0
        %2659 = vmatpush1.bf16.msra.mxu0 %v2640
        %2660 = vmatprep.subr.bf16.mxu0 0
        %2661 = vmatpush1.bf16.msra.mxu0 %v2641
        %2662 = vmatprep.subr.bf16.mxu0 0
        %2663 = vmatpush1.bf16.msra.mxu0 %v2642
        %2664 = vmatprep.subr.bf16.mxu0 0
        %2665 = vmatpush1.bf16.msra.mxu0 %v2643
        %2666 = vmatprep.subr.bf16.mxu0 0
        %2667 = vmatpush1.bf16.msra.mxu0 %v2644
        %2668 = vmatprep.subr.bf16.mxu0 0
        %2669 = vmatpush1.bf16.msra.mxu0 %v2645
        %2670 = vmatprep.subr.bf16.mxu0 0
        %2671 = vmatpush1.bf16.msra.mxu0 0
        %2672 = vmatprep.subr.bf16.mxu0 0
        %2673 = vmatpush1.bf16.msra.mxu0 0
        %2674 = vmatprep.subr.bf16.mxu0 0
        %2675 = vmatpush1.bf16.msra.mxu0 0
        %2676 = vmatprep.subr.bf16.mxu0 0
        %2677 = vmatpush1.bf16.msra.mxu0 0
        %2678 = vmatprep.subr.bf16.mxu0 0
        %2679 = vmatpush1.bf16.msra.mxu0 0
        %2680 = vmatprep.subr.bf16.mxu0 0
        %2681 = vmatpush1.bf16.msra.mxu0 0
        %2682 = vmatprep.subr.bf16.mxu0 0
        %2683 = vmatpush1.bf16.msra.mxu0 0
        %2684 = vmatprep.subr.bf16.mxu0 0
        %2685 = vmatpush1.bf16.msra.mxu0 0
        %2686 = vmatprep.mubr.bf16.mxu0 0
        %2687 = vmatmul.mubr.bf16.gmra.mrb[0].mxu0 %v2574
        %v2688 = vpop.f32.mrb[0].mxu0
        %v2689 = vadd.f32 0.0, %v2688
        %v2690 = vpop.f32.mrb[0].mxu0
        %v2691 = vpop.f32.mrb[0].mxu0
        %v2692 = vadd.f32 0.0, %v2691
        %v2693 = vpop.f32.mrb[0].mxu0
        %2694 = vmatprep.mubr.bf16.mxu0 0
        %2695 = vmatmul.mubr.bf16.gmra.mrb[0].mxu0 %v2575
        %v2696 = vpop.f32.mrb[0].mxu0
        %v2697 = vadd.f32 0.0, %v2696
        %v2698 = vpop.f32.mrb[0].mxu0
        %v2699 = vpop.f32.mrb[0].mxu0
        %v2700 = vadd.f32 0.0, %v2699
        %v2701 = vpop.f32.mrb[0].mxu0
        %2702 = vmatprep.mubr.bf16.mxu0 0
        %2703 = vmatmul.mubr.bf16.gmra.mrb[0].mxu0 %v2576
        %v2704 = vpop.f32.mrb[0].mxu0
        %v2705 = vadd.f32 0.0, %v2704
        %v2706 = vpop.f32.mrb[0].mxu0
        %v2707 = vpop.f32.mrb[0].mxu0
        %v2708 = vadd.f32 0.0, %v2707
        %v2709 = vpop.f32.mrb[0].mxu0
        %2710 = vmatprep.mubr.bf16.mxu0 0
        %2711 = vmatmul.mubr.bf16.gmra.mrb[0].mxu0 %v2577
        %v2712 = vpop.f32.mrb[0].mxu0
        %v2713 = vadd.f32 0.0, %v2712
        %v2714 = vpop.f32.mrb[0].mxu0
        %v2715 = vpop.f32.mrb[0].mxu0
        %v2716 = vadd.f32 0.0, %v2715
        %v2717 = vpop.f32.mrb[0].mxu0
        %2718 = vmatprep.mubr.bf16.mxu0 0
        %2719 = vmatmul.mubr.bf16.gmra.mrb[0].mxu0 %v2578
        %v2720 = vpop.f32.mrb[0].mxu0
        %v2721 = vadd.f32 0.0, %v2720
        %v2722 = vpop.f32.mrb[0].mxu0
        %v2723 = vpop.f32.mrb[0].mxu0
        %v2724 = vadd.f32 0.0, %v2723
        %v2725 = vpop.f32.mrb[0].mxu0
        %2726 = vmatprep.mubr.bf16.mxu0 0
        %2727 = vmatmul.mubr.bf16.gmra.mrb[0].mxu0 %v2579
        %v2728 = vpop.f32.mrb[0].mxu0
        %v2729 = vadd.f32 0.0, %v2728
        %v2730 = vpop.f32.mrb[0].mxu0
        %v2731 = vpop.f32.mrb[0].mxu0
        %v2732 = vadd.f32 0.0, %v2731
        %v2733 = vpop.f32.mrb[0].mxu0
        %2734 = vmatprep.mubr.bf16.mxu0 0
        %2735 = vmatmul.mubr.bf16.gmra.mrb[0].mxu0 %v2580
        %v2736 = vpop.f32.mrb[0].mxu0
        %v2737 = vadd.f32 0.0, %v2736
        %v2738 = vpop.f32.mrb[0].mxu0
        %v2739 = vpop.f32.mrb[0].mxu0
        %v2740 = vadd.f32 0.0, %v2739
        %v2741 = vpop.f32.mrb[0].mxu0
        %2742 = vmatprep.mubr.bf16.mxu0 0
        %2743 = vmatmul.mubr.bf16.gmra.mrb[0].mxu0 %v2581
        %v2744 = vpop.f32.mrb[0].mxu0
        %v2745 = vadd.f32 0.0, %v2744
        %v2746 = vpop.f32.mrb[0].mxu0
        %v2747 = vpop.f32.mrb[0].mxu0
        %v2748 = vadd.f32 0.0, %v2747
        %v2749 = vpop.f32.mrb[0].mxu0
        %2750 = vmatprep.mubr.bf16.mxu0 0
        %2751 = vmatmul.mubr.bf16.gmra.mrb[0].mxu0 %v2582
        %v2752 = vpop.f32.mrb[0].mxu0
        %v2753 = vadd.f32 0.0, %v2752
        %v2754 = vpop.f32.mrb[0].mxu0
        %v2755 = vpop.f32.mrb[0].mxu0
        %v2756 = vadd.f32 0.0, %v2755
        %v2757 = vpop.f32.mrb[0].mxu0
        %2758 = vmatprep.mubr.bf16.mxu0 0
        %2759 = vmatmul.mubr.bf16.gmra.mrb[0].mxu0 %v2583
        %v2760 = vpop.f32.mrb[0].mxu0
        %v2761 = vadd.f32 0.0, %v2760
        %v2762 = vpop.f32.mrb[0].mxu0
        %v2763 = vpop.f32.mrb[0].mxu0
        %v2764 = vadd.f32 0.0, %v2763
        %v2765 = vpop.f32.mrb[0].mxu0
        %2766 = vmatprep.mubr.bf16.mxu0 0
        %2767 = vmatmul.mubr.bf16.gmra.mrb[0].mxu0 %v2584
        %v2768 = vpop.f32.mrb[0].mxu0
        %v2769 = vadd.f32 0.0, %v2768
        %v2770 = vpop.f32.mrb[0].mxu0
        %v2771 = vpop.f32.mrb[0].mxu0
        %v2772 = vadd.f32 0.0, %v2771
        %v2773 = vpop.f32.mrb[0].mxu0
        %2774 = vmatprep.mubr.bf16.mxu0 0
        %2775 = vmatmul.mubr.bf16.gmra.mrb[0].mxu0 %v2585
        %v2776 = vpop.f32.mrb[0].mxu0
        %v2777 = vadd.f32 0.0, %v2776
        %v2778 = vpop.f32.mrb[0].mxu0
        %v2779 = vpop.f32.mrb[0].mxu0
        %v2780 = vadd.f32 0.0, %v2779
        %v2781 = vpop.f32.mrb[0].mxu0
        %2782 = vmatprep.mubr.bf16.mxu0 0
        %2783 = vmatmul.mubr.bf16.gmra.mrb[0].mxu0 %v2586
        %v2784 = vpop.f32.mrb[0].mxu0
        %v2785 = vadd.f32 0.0, %v2784
        %v2786 = vpop.f32.mrb[0].mxu0
        %v2787 = vpop.f32.mrb[0].mxu0
        %v2788 = vadd.f32 0.0, %v2787
        %v2789 = vpop.f32.mrb[0].mxu0
        %2790 = vmatprep.mubr.bf16.mxu0 0
        %2791 = vmatmul.mubr.bf16.gmra.mrb[0].mxu0 %v2587
        %v2792 = vpop.f32.mrb[0].mxu0
        %v2793 = vadd.f32 0.0, %v2792
        %v2794 = vpop.f32.mrb[0].mxu0
        %v2795 = vpop.f32.mrb[0].mxu0
        %v2796 = vadd.f32 0.0, %v2795
        %v2797 = vpop.f32.mrb[0].mxu0
        %2798 = vmatprep.mubr.bf16.mxu0 0
        %2799 = vmatmul.mubr.bf16.gmra.mrb[0].mxu0 %v2588
        %v2800 = vpop.f32.mrb[0].mxu0
        %v2801 = vadd.f32 0.0, %v2800
        %v2802 = vpop.f32.mrb[0].mxu0
        %v2803 = vpop.f32.mrb[0].mxu0
        %v2804 = vadd.f32 0.0, %v2803
        %v2805 = vpop.f32.mrb[0].mxu0
        %2806 = vmatprep.mubr.bf16.mxu0 0
        %2807 = vmatmul.mubr.bf16.gmra.mrb[0].mxu0 %v2589
        %v2808 = vpop.f32.mrb[0].mxu0
        %v2809 = vadd.f32 0.0, %v2808
        %v2810 = vpop.f32.mrb[0].mxu0
        %v2811 = vpop.f32.mrb[0].mxu0
        %v2812 = vadd.f32 0.0, %v2811
        %v2813 = vpop.f32.mrb[0].mxu0
        %2814 = vdwg.mxu0
        %v2815 = vadd.f32 %v2237, %v2689
        %v2816 = vadd.f32 %v2240, %v2692
        %v2817 = vadd.f32 %v2245, %v2697
        %v2818 = vadd.f32 %v2248, %v2700
        %v2819 = vadd.f32 %v2253, %v2705
        %v2820 = vadd.f32 %v2256, %v2708
        %v2821 = vadd.f32 %v2261, %v2713
        %v2822 = vadd.f32 %v2264, %v2716
        %v2823 = vadd.f32 %v2269, %v2721
        %v2824 = vadd.f32 %v2272, %v2724
        %v2825 = vadd.f32 %v2277, %v2729
        %v2826 = vadd.f32 %v2280, %v2732
        %v2827 = vadd.f32 %v2285, %v2737
        %v2828 = vadd.f32 %v2288, %v2740
        %v2829 = vadd.f32 %v2293, %v2745
        %v2830 = vadd.f32 %v2296, %v2748
        %v2831 = vadd.f32 %v2301, %v2753
        %v2832 = vadd.f32 %v2304, %v2756
        %v2833 = vadd.f32 %v2309, %v2761
        %v2834 = vadd.f32 %v2312, %v2764
        %v2835 = vadd.f32 %v2317, %v2769
        %v2836 = vadd.f32 %v2320, %v2772
        %v2837 = vadd.f32 %v2325, %v2777
        %v2838 = vadd.f32 %v2328, %v2780
        %v2839 = vadd.f32 %v2333, %v2785
        %v2840 = vadd.f32 %v2336, %v2788
        %v2841 = vadd.f32 %v2341, %v2793
        %v2842 = vadd.f32 %v2344, %v2796
        %v2843 = vadd.f32 %v2349, %v2801
        %v2844 = vadd.f32 %v2352, %v2804
        %v2845 = vadd.f32 %v2357, %v2809
        %v2846 = vadd.f32 %v2360, %v2812
        %v2847 = vld [vmem:[%s1203] sm:$0xf]
        %v2848 = vld [vmem:[%s1203 + $0x4] sm:$0xf]
        %v2849 = vld [vmem:[%s1203 + $0xc] sm:$0xf]
        %v2850 = vld [vmem:[%s1203 + $0x10] sm:$0xf]
        %v2851 = vld [vmem:[%s1203 + $0x18] sm:$0xf]
        %v2852 = vld [vmem:[%s1203 + $0x1c] sm:$0xf]
        %v2853 = vld [vmem:[%s1203 + $0x24] sm:$0xf]
        %v2854 = vld [vmem:[%s1203 + $0x28] sm:$0xf]
        %v2855 = vld [vmem:[%s1203 + $0x30] sm:$0xf]
        %v2856 = vld [vmem:[%s1203 + $0x34] sm:$0xf]
        %v2857 = vld [vmem:[%s1203 + $0x3c] sm:$0xf]
        %v2858 = vld [vmem:[%s1203 + $0x40] sm:$0xf]
        %v2859 = vld [vmem:[%s1203 + $0x48] sm:$0xf]
        %v2860 = vld [vmem:[%s1203 + $0x4c] sm:$0xf]
        %v2861 = vld [vmem:[%s1203 + $0x54] sm:$0xf]
        %v2862 = vld [vmem:[%s1203 + $0x58] sm:$0xf]
        %v2863 = vld [vmem:[%s1203 + $0x60] sm:$0xf]
        %v2864 = vld [vmem:[%s1203 + $0x64] sm:$0xf]
        %v2865 = vld [vmem:[%s1203 + $0x6c] sm:$0xf]
        %v2866 = vld [vmem:[%s1203 + $0x70] sm:$0xf]
        %v2867 = vld [vmem:[%s1203 + $0x78] sm:$0xf]
        %v2868 = vld [vmem:[%s1203 + $0x7c] sm:$0xf]
        %v2869 = vld [vmem:[%s1203 + $0x84] sm:$0xf]
        %v2870 = vld [vmem:[%s1203 + $0x88] sm:$0xf]
        %v2871 = vld [vmem:[%s1203 + $0x90] sm:$0xf]
        %v2872 = vld [vmem:[%s1203 + $0x94] sm:$0xf]
        %v2873 = vld [vmem:[%s1203 + $0x9c] sm:$0xf]
        %v2874 = vld [vmem:[%s1203 + $0xa0] sm:$0xf]
        %v2875 = vld [vmem:[%s1203 + $0xa8] sm:$0xf]
        %v2876 = vld [vmem:[%s1203 + $0xac] sm:$0xf]
        %v2877 = vld [vmem:[%s1203 + $0xb4] sm:$0xf]
        %v2878 = vld [vmem:[%s1203 + $0xb8] sm:$0xf]
        %v2879 = vld [vmem:[#allocation8 + $0xc0] sm:$0xf]
        %v2880 = vld [vmem:[#allocation8 + $0xc4] sm:$0xf]
        %v2881 = vld [vmem:[#allocation8 + $0xc8] sm:$0xf]
        %v2882 = vld [vmem:[#allocation8 + $0xcc] sm:$0xf]
        %v2883 = vld [vmem:[#allocation8 + $0xd0] sm:$0xf]
        %v2884 = vld [vmem:[#allocation8 + $0xd4] sm:$0xf]
        %v2885 = vld [vmem:[#allocation8 + $0xd8] sm:$0xf]
        %v2886 = vld [vmem:[#allocation8 + $0xdc] sm:$0xf]
        %v2887 = vld [vmem:[#allocation8 + $0xe0] sm:$0xf]
        %v2888 = vld [vmem:[#allocation8 + $0xe4] sm:$0xf]
        %v2889 = vld [vmem:[#allocation8 + $0xe8] sm:$0xf]
        %v2890 = vld [vmem:[#allocation8 + $0xec] sm:$0xf]
        %v2891 = vld [vmem:[#allocation8 + $0xf0] sm:$0xf]
        %v2892 = vld [vmem:[#allocation8 + $0xf4] sm:$0xf]
        %v2893 = vld [vmem:[#allocation8 + $0xf8] sm:$0xf]
        %v2894 = vld [vmem:[#allocation8 + $0xfc] sm:$0xf]
        %v2927 = vunpack.c.l.b16 %v2847
        %v2928 = vunpack.c.l.b16 %v2848
        %v2929 = vunpack.c.l.b16 %v2849
        %v2930 = vunpack.c.l.b16 %v2850
        %v2931 = vunpack.c.l.b16 %v2851
        %v2932 = vunpack.c.l.b16 %v2852
        %v2933 = vunpack.c.l.b16 %v2853
        %v2934 = vunpack.c.l.b16 %v2854
        %v2935 = vunpack.c.l.b16 %v2855
        %v2936 = vunpack.c.l.b16 %v2856
        %v2937 = vunpack.c.l.b16 %v2857
        %v2938 = vunpack.c.l.b16 %v2858
        %v2939 = vunpack.c.l.b16 %v2859
        %v2940 = vunpack.c.l.b16 %v2860
        %v2941 = vunpack.c.l.b16 %v2861
        %v2942 = vunpack.c.l.b16 %v2862
        %v2943 = vunpack.c.l.b16 %v2863
        %v2944 = vunpack.c.l.b16 %v2864
        %v2945 = vunpack.c.l.b16 %v2865
        %v2946 = vunpack.c.l.b16 %v2866
        %v2947 = vunpack.c.l.b16 %v2867
        %v2948 = vunpack.c.l.b16 %v2868
        %v2949 = vunpack.c.l.b16 %v2869
        %v2950 = vunpack.c.l.b16 %v2870
        %v2951 = vunpack.c.l.b16 %v2871
        %v2952 = vunpack.c.l.b16 %v2872
        %v2953 = vunpack.c.l.b16 %v2873
        %v2954 = vunpack.c.l.b16 %v2874
        %v2955 = vunpack.c.l.b16 %v2875
        %v2956 = vunpack.c.l.b16 %v2876
        %v2957 = vunpack.c.l.b16 %v2877
        %v2958 = vunpack.c.l.b16 %v2878
        %v2959 = vpack.c.b16 %v2928, %v2927
        %v2960 = vpack.c.b16 %v2930, %v2929
        %v2961 = vpack.c.b16 %v2932, %v2931
        %v2962 = vpack.c.b16 %v2934, %v2933
        %v2963 = vpack.c.b16 %v2936, %v2935
        %v2964 = vpack.c.b16 %v2938, %v2937
        %v2965 = vpack.c.b16 %v2940, %v2939
        %v2966 = vpack.c.b16 %v2942, %v2941
        %v2967 = vpack.c.b16 %v2944, %v2943
        %v2968 = vpack.c.b16 %v2946, %v2945
        %v2969 = vpack.c.b16 %v2948, %v2947
        %v2970 = vpack.c.b16 %v2950, %v2949
        %v2971 = vpack.c.b16 %v2952, %v2951
        %v2972 = vpack.c.b16 %v2954, %v2953
        %v2973 = vpack.c.b16 %v2956, %v2955
        %v2974 = vpack.c.b16 %v2958, %v2957
        %v3007 = vunpack.c.l.b16 %v2879
        %v3008 = vunpack.c.l.b16 %v2880
        %v3009 = vunpack.c.l.b16 %v2881
        %v3010 = vunpack.c.l.b16 %v2882
        %v3011 = vunpack.c.l.b16 %v2883
        %v3012 = vunpack.c.l.b16 %v2884
        %v3013 = vunpack.c.l.b16 %v2885
        %v3014 = vunpack.c.l.b16 %v2886
        %v3015 = vunpack.c.l.b16 %v2887
        %v3016 = vunpack.c.l.b16 %v2888
        %v3017 = vunpack.c.l.b16 %v2889
        %v3018 = vunpack.c.l.b16 %v2890
        %v3019 = vunpack.c.l.b16 %v2891
        %v3020 = vunpack.c.l.b16 %v2892
        %v3021 = vunpack.c.l.b16 %v2893
        %v3022 = vunpack.c.l.b16 %v2894
        %v3023 = vpack.c.b16 %v3008, %v3007
        %v3024 = vpack.c.b16 %v3010, %v3009
        %v3025 = vpack.c.b16 %v3012, %v3011
        %v3026 = vpack.c.b16 %v3014, %v3013
        %v3027 = vpack.c.b16 %v3016, %v3015
        %v3028 = vpack.c.b16 %v3018, %v3017
        %v3029 = vpack.c.b16 %v3020, %v3019
        %v3030 = vpack.c.b16 %v3022, %v3021
        %3039 = vmatprep.subr.bf16.mxu0 0
        %3040 = vmatpush1.bf16.msra.mxu0 %v3023
        %3041 = vmatprep.subr.bf16.mxu0 0
        %3042 = vmatpush1.bf16.msra.mxu0 %v3024
        %3043 = vmatprep.subr.bf16.mxu0 0
        %3044 = vmatpush1.bf16.msra.mxu0 %v3025
        %3045 = vmatprep.subr.bf16.mxu0 0
        %3046 = vmatpush1.bf16.msra.mxu0 %v3026
        %3047 = vmatprep.subr.bf16.mxu0 0
        %3048 = vmatpush1.bf16.msra.mxu0 %v3027
        %3049 = vmatprep.subr.bf16.mxu0 0
        %3050 = vmatpush1.bf16.msra.mxu0 %v3028
        %3051 = vmatprep.subr.bf16.mxu0 0
        %3052 = vmatpush1.bf16.msra.mxu0 %v3029
        %3053 = vmatprep.subr.bf16.mxu0 0
        %3054 = vmatpush1.bf16.msra.mxu0 %v3030
        %3055 = vmatprep.subr.bf16.mxu0 0
        %3056 = vmatpush1.bf16.msra.mxu0 0
        %3057 = vmatprep.subr.bf16.mxu0 0
        %3058 = vmatpush1.bf16.msra.mxu0 0
        %3059 = vmatprep.subr.bf16.mxu0 0
        %3060 = vmatpush1.bf16.msra.mxu0 0
        %3061 = vmatprep.subr.bf16.mxu0 0
        %3062 = vmatpush1.bf16.msra.mxu0 0
        %3063 = vmatprep.subr.bf16.mxu0 0
        %3064 = vmatpush1.bf16.msra.mxu0 0
        %3065 = vmatprep.subr.bf16.mxu0 0
        %3066 = vmatpush1.bf16.msra.mxu0 0
        %3067 = vmatprep.subr.bf16.mxu0 0
        %3068 = vmatpush1.bf16.msra.mxu0 0
        %3069 = vmatprep.subr.bf16.mxu0 0
        %3070 = vmatpush1.bf16.msra.mxu0 0
        %3071 = vmatprep.mubr.bf16.mxu0 0
        %3072 = vmatmul.mubr.bf16.gmra.mrb[0].mxu0 %v2959
        %v3073 = vpop.f32.mrb[0].mxu0
        %v3074 = vadd.f32 0.0, %v3073
        %v3075 = vpop.f32.mrb[0].mxu0
        %v3076 = vpop.f32.mrb[0].mxu0
        %v3077 = vadd.f32 0.0, %v3076
        %v3078 = vpop.f32.mrb[0].mxu0
        %3079 = vmatprep.mubr.bf16.mxu0 0
        %3080 = vmatmul.mubr.bf16.gmra.mrb[0].mxu0 %v2960
        %v3081 = vpop.f32.mrb[0].mxu0
        %v3082 = vadd.f32 0.0, %v3081
        %v3083 = vpop.f32.mrb[0].mxu0
        %v3084 = vpop.f32.mrb[0].mxu0
        %v3085 = vadd.f32 0.0, %v3084
        %v3086 = vpop.f32.mrb[0].mxu0
        %3087 = vmatprep.mubr.bf16.mxu0 0
        %3088 = vmatmul.mubr.bf16.gmra.mrb[0].mxu0 %v2961
        %v3089 = vpop.f32.mrb[0].mxu0
        %v3090 = vadd.f32 0.0, %v3089
        %v3091 = vpop.f32.mrb[0].mxu0
        %v3092 = vpop.f32.mrb[0].mxu0
        %v3093 = vadd.f32 0.0, %v3092
        %v3094 = vpop.f32.mrb[0].mxu0
        %3095 = vmatprep.mubr.bf16.mxu0 0
        %3096 = vmatmul.mubr.bf16.gmra.mrb[0].mxu0 %v2962
        %v3097 = vpop.f32.mrb[0].mxu0
        %v3098 = vadd.f32 0.0, %v3097
        %v3099 = vpop.f32.mrb[0].mxu0
        %v3100 = vpop.f32.mrb[0].mxu0
        %v3101 = vadd.f32 0.0, %v3100
        %v3102 = vpop.f32.mrb[0].mxu0
        %3103 = vmatprep.mubr.bf16.mxu0 0
        %3104 = vmatmul.mubr.bf16.gmra.mrb[0].mxu0 %v2963
        %v3105 = vpop.f32.mrb[0].mxu0
        %v3106 = vadd.f32 0.0, %v3105
        %v3107 = vpop.f32.mrb[0].mxu0
        %v3108 = vpop.f32.mrb[0].mxu0
        %v3109 = vadd.f32 0.0, %v3108
        %v3110 = vpop.f32.mrb[0].mxu0
        %3111 = vmatprep.mubr.bf16.mxu0 0
        %3112 = vmatmul.mubr.bf16.gmra.mrb[0].mxu0 %v2964
        %v3113 = vpop.f32.mrb[0].mxu0
        %v3114 = vadd.f32 0.0, %v3113
        %v3115 = vpop.f32.mrb[0].mxu0
        %v3116 = vpop.f32.mrb[0].mxu0
        %v3117 = vadd.f32 0.0, %v3116
        %v3118 = vpop.f32.mrb[0].mxu0
        %3119 = vmatprep.mubr.bf16.mxu0 0
        %3120 = vmatmul.mubr.bf16.gmra.mrb[0].mxu0 %v2965
        %v3121 = vpop.f32.mrb[0].mxu0
        %v3122 = vadd.f32 0.0, %v3121
        %v3123 = vpop.f32.mrb[0].mxu0
        %v3124 = vpop.f32.mrb[0].mxu0
        %v3125 = vadd.f32 0.0, %v3124
        %v3126 = vpop.f32.mrb[0].mxu0
        %3127 = vmatprep.mubr.bf16.mxu0 0
        %3128 = vmatmul.mubr.bf16.gmra.mrb[0].mxu0 %v2966
        %v3129 = vpop.f32.mrb[0].mxu0
        %v3130 = vadd.f32 0.0, %v3129
        %v3131 = vpop.f32.mrb[0].mxu0
        %v3132 = vpop.f32.mrb[0].mxu0
        %v3133 = vadd.f32 0.0, %v3132
        %v3134 = vpop.f32.mrb[0].mxu0
        %3135 = vmatprep.mubr.bf16.mxu0 0
        %3136 = vmatmul.mubr.bf16.gmra.mrb[0].mxu0 %v2967
        %v3137 = vpop.f32.mrb[0].mxu0
        %v3138 = vadd.f32 0.0, %v3137
        %v3139 = vpop.f32.mrb[0].mxu0
        %v3140 = vpop.f32.mrb[0].mxu0
        %v3141 = vadd.f32 0.0, %v3140
        %v3142 = vpop.f32.mrb[0].mxu0
        %3143 = vmatprep.mubr.bf16.mxu0 0
        %3144 = vmatmul.mubr.bf16.gmra.mrb[0].mxu0 %v2968
        %v3145 = vpop.f32.mrb[0].mxu0
        %v3146 = vadd.f32 0.0, %v3145
        %v3147 = vpop.f32.mrb[0].mxu0
        %v3148 = vpop.f32.mrb[0].mxu0
        %v3149 = vadd.f32 0.0, %v3148
        %v3150 = vpop.f32.mrb[0].mxu0
        %3151 = vmatprep.mubr.bf16.mxu0 0
        %3152 = vmatmul.mubr.bf16.gmra.mrb[0].mxu0 %v2969
        %v3153 = vpop.f32.mrb[0].mxu0
        %v3154 = vadd.f32 0.0, %v3153
        %v3155 = vpop.f32.mrb[0].mxu0
        %v3156 = vpop.f32.mrb[0].mxu0
        %v3157 = vadd.f32 0.0, %v3156
        %v3158 = vpop.f32.mrb[0].mxu0
        %3159 = vmatprep.mubr.bf16.mxu0 0
        %3160 = vmatmul.mubr.bf16.gmra.mrb[0].mxu0 %v2970
        %v3161 = vpop.f32.mrb[0].mxu0
        %v3162 = vadd.f32 0.0, %v3161
        %v3163 = vpop.f32.mrb[0].mxu0
        %v3164 = vpop.f32.mrb[0].mxu0
        %v3165 = vadd.f32 0.0, %v3164
        %v3166 = vpop.f32.mrb[0].mxu0
        %3167 = vmatprep.mubr.bf16.mxu0 0
        %3168 = vmatmul.mubr.bf16.gmra.mrb[0].mxu0 %v2971
        %v3169 = vpop.f32.mrb[0].mxu0
        %v3170 = vadd.f32 0.0, %v3169
        %v3171 = vpop.f32.mrb[0].mxu0
        %v3172 = vpop.f32.mrb[0].mxu0
        %v3173 = vadd.f32 0.0, %v3172
        %v3174 = vpop.f32.mrb[0].mxu0
        %3175 = vmatprep.mubr.bf16.mxu0 0
        %3176 = vmatmul.mubr.bf16.gmra.mrb[0].mxu0 %v2972
        %v3177 = vpop.f32.mrb[0].mxu0
        %v3178 = vadd.f32 0.0, %v3177
        %v3179 = vpop.f32.mrb[0].mxu0
        %v3180 = vpop.f32.mrb[0].mxu0
        %v3181 = vadd.f32 0.0, %v3180
        %v3182 = vpop.f32.mrb[0].mxu0
        %3183 = vmatprep.mubr.bf16.mxu0 0
        %3184 = vmatmul.mubr.bf16.gmra.mrb[0].mxu0 %v2973
        %v3185 = vpop.f32.mrb[0].mxu0
        %v3186 = vadd.f32 0.0, %v3185
        %v3187 = vpop.f32.mrb[0].mxu0
        %v3188 = vpop.f32.mrb[0].mxu0
        %v3189 = vadd.f32 0.0, %v3188
        %v3190 = vpop.f32.mrb[0].mxu0
        %3191 = vmatprep.mubr.bf16.mxu0 0
        %3192 = vmatmul.mubr.bf16.gmra.mrb[0].mxu0 %v2974
        %v3193 = vpop.f32.mrb[0].mxu0
        %v3194 = vadd.f32 0.0, %v3193
        %v3195 = vpop.f32.mrb[0].mxu0
        %v3196 = vpop.f32.mrb[0].mxu0
        %v3197 = vadd.f32 0.0, %v3196
        %v3198 = vpop.f32.mrb[0].mxu0
        %3199 = vdwg.mxu0
        %v3200 = vadd.f32 %v2815, %v3074
        %v3201 = vadd.f32 %v2816, %v3077
        %v3202 = vadd.f32 %v2817, %v3082
        %v3203 = vadd.f32 %v2818, %v3085
        %v3204 = vadd.f32 %v2819, %v3090
        %v3205 = vadd.f32 %v2820, %v3093
        %v3206 = vadd.f32 %v2821, %v3098
        %v3207 = vadd.f32 %v2822, %v3101
        %v3208 = vadd.f32 %v2823, %v3106
        %v3209 = vadd.f32 %v2824, %v3109
        %v3210 = vadd.f32 %v2825, %v3114
        %v3211 = vadd.f32 %v2826, %v3117
        %v3212 = vadd.f32 %v2827, %v3122
        %v3213 = vadd.f32 %v2828, %v3125
        %v3214 = vadd.f32 %v2829, %v3130
        %v3215 = vadd.f32 %v2830, %v3133
        %v3216 = vadd.f32 %v2831, %v3138
        %v3217 = vadd.f32 %v2832, %v3141
        %v3218 = vadd.f32 %v2833, %v3146
        %v3219 = vadd.f32 %v2834, %v3149
        %v3220 = vadd.f32 %v2835, %v3154
        %v3221 = vadd.f32 %v2836, %v3157
        %v3222 = vadd.f32 %v2837, %v3162
        %v3223 = vadd.f32 %v2838, %v3165
        %v3224 = vadd.f32 %v2839, %v3170
        %v3225 = vadd.f32 %v2840, %v3173
        %v3226 = vadd.f32 %v2841, %v3178
        %v3227 = vadd.f32 %v2842, %v3181
        %v3228 = vadd.f32 %v2843, %v3186
        %v3229 = vadd.f32 %v2844, %v3189
        %v3230 = vadd.f32 %v2845, %v3194
        %v3231 = vadd.f32 %v2846, %v3197
        %v3232 = vld [vmem:[%s1203] sm:$0xf]
        %v3233 = vld [vmem:[%s1203 + $0x4] sm:$0xf]
        %v3234 = vld [vmem:[%s1203 + $0x8] sm:$0x1]
        %v3235 = vld [vmem:[%s1203 + $0xc] sm:$0xf]
        %v3236 = vld [vmem:[%s1203 + $0x10] sm:$0xf]
        %v3237 = vld [vmem:[%s1203 + $0x14] sm:$0x1]
        %v3238 = vld [vmem:[%s1203 + $0x18] sm:$0xf]
        %v3239 = vld [vmem:[%s1203 + $0x1c] sm:$0xf]
        %v3240 = vld [vmem:[%s1203 + $0x20] sm:$0x1]
        %v3241 = vld [vmem:[%s1203 + $0x24] sm:$0xf]
        %v3242 = vld [vmem:[%s1203 + $0x28] sm:$0xf]
        %v3243 = vld [vmem:[%s1203 + $0x2c] sm:$0x1]
        %v3244 = vld [vmem:[%s1203 + $0x30] sm:$0xf]
        %v3245 = vld [vmem:[%s1203 + $0x34] sm:$0xf]
        %v3246 = vld [vmem:[%s1203 + $0x38] sm:$0x1]
        %v3247 = vld [vmem:[%s1203 + $0x3c] sm:$0xf]
        %v3248 = vld [vmem:[%s1203 + $0x40] sm:$0xf]
        %v3249 = vld [vmem:[%s1203 + $0x44] sm:$0x1]
        %v3250 = vld [vmem:[%s1203 + $0x48] sm:$0xf]
        %v3251 = vld [vmem:[%s1203 + $0x4c] sm:$0xf]
        %v3252 = vld [vmem:[%s1203 + $0x50] sm:$0x1]
        %v3253 = vld [vmem:[%s1203 + $0x54] sm:$0xf]
        %v3254 = vld [vmem:[%s1203 + $0x58] sm:$0xf]
        %v3255 = vld [vmem:[%s1203 + $0x5c] sm:$0x1]
        %v3256 = vld [vmem:[%s1203 + $0x60] sm:$0xf]
        %v3257 = vld [vmem:[%s1203 + $0x64] sm:$0xf]
        %v3258 = vld [vmem:[%s1203 + $0x68] sm:$0x1]
        %v3259 = vld [vmem:[%s1203 + $0x6c] sm:$0xf]
        %v3260 = vld [vmem:[%s1203 + $0x70] sm:$0xf]
        %v3261 = vld [vmem:[%s1203 + $0x74] sm:$0x1]
        %v3262 = vld [vmem:[%s1203 + $0x78] sm:$0xf]
        %v3263 = vld [vmem:[%s1203 + $0x7c] sm:$0xf]
        %v3264 = vld [vmem:[%s1203 + $0x80] sm:$0x1]
        %v3265 = vld [vmem:[%s1203 + $0x84] sm:$0xf]
        %v3266 = vld [vmem:[%s1203 + $0x88] sm:$0xf]
        %v3267 = vld [vmem:[%s1203 + $0x8c] sm:$0x1]
        %v3268 = vld [vmem:[%s1203 + $0x90] sm:$0xf]
        %v3269 = vld [vmem:[%s1203 + $0x94] sm:$0xf]
        %v3270 = vld [vmem:[%s1203 + $0x98] sm:$0x1]
        %v3271 = vld [vmem:[%s1203 + $0x9c] sm:$0xf]
        %v3272 = vld [vmem:[%s1203 + $0xa0] sm:$0xf]
        %v3273 = vld [vmem:[%s1203 + $0xa4] sm:$0x1]
        %v3274 = vld [vmem:[%s1203 + $0xa8] sm:$0xf]
        %v3275 = vld [vmem:[%s1203 + $0xac] sm:$0xf]
        %v3276 = vld [vmem:[%s1203 + $0xb0] sm:$0x1]
        %v3277 = vld [vmem:[%s1203 + $0xb4] sm:$0xf]
        %v3278 = vld [vmem:[%s1203 + $0xb8] sm:$0xf]
        %v3279 = vld [vmem:[%s1203 + $0xbc] sm:$0x1]
        %v3281 = vshrl.u32 %v3232, 16
        %v3283 = vrot.slane %v3281, 4
        %v3284 = vshll.u32 %v3232, 16
        %v3286 = vrot.slane %v3284, 5
        %v3287 = vor.u32 %v3283, %v3286
        %v3288 = vrot.slane %v3287, 4
        %v3290 = vshll.u32 %v3233, 16
        %v3292 = vrot.slane %v3290, 5
        %v3293 = vsel %vm1384, %v3288, %v3292
        %v3294 = vshrl.u32 %v3233, 16
        %v3296 = vrot.slane %v3294, 4
        %v3297 = vor.u32 %v3296, %v3292
        %v3298 = vrot.slane %v3297, 4
        %v3300 = vshll.u32 %v3234, 16
        %v3302 = vrot.slane %v3300, 5
        %v3303 = vsel %vm1384, %v3298, %v3302
        %v3305 = vshrl.u32 %v3235, 16
        %v3307 = vrot.slane %v3305, 4
        %v3308 = vshll.u32 %v3235, 16
        %v3310 = vrot.slane %v3308, 5
        %v3311 = vor.u32 %v3307, %v3310
        %v3312 = vrot.slane %v3311, 4
        %v3314 = vshll.u32 %v3236, 16
        %v3316 = vrot.slane %v3314, 5
        %v3317 = vsel %vm1384, %v3312, %v3316
        %v3318 = vshrl.u32 %v3236, 16
        %v3320 = vrot.slane %v3318, 4
        %v3321 = vor.u32 %v3320, %v3316
        %v3322 = vrot.slane %v3321, 4
        %v3324 = vshll.u32 %v3237, 16
        %v3326 = vrot.slane %v3324, 5
        %v3327 = vsel %vm1384, %v3322, %v3326
        %v3329 = vshrl.u32 %v3238, 16
        %v3331 = vrot.slane %v3329, 4
        %v3332 = vshll.u32 %v3238, 16
        %v3334 = vrot.slane %v3332, 5
        %v3335 = vor.u32 %v3331, %v3334
        %v3336 = vrot.slane %v3335, 4
        %v3338 = vshll.u32 %v3239, 16
        %v3340 = vrot.slane %v3338, 5
        %v3341 = vsel %vm1384, %v3336, %v3340
        %v3342 = vshrl.u32 %v3239, 16
        %v3344 = vrot.slane %v3342, 4
        %v3345 = vor.u32 %v3344, %v3340
        %v3346 = vrot.slane %v3345, 4
        %v3348 = vshll.u32 %v3240, 16
        %v3350 = vrot.slane %v3348, 5
        %v3351 = vsel %vm1384, %v3346, %v3350
        %v3353 = vshrl.u32 %v3241, 16
        %v3355 = vrot.slane %v3353, 4
        %v3356 = vshll.u32 %v3241, 16
        %v3358 = vrot.slane %v3356, 5
        %v3359 = vor.u32 %v3355, %v3358
        %v3360 = vrot.slane %v3359, 4
        %v3362 = vshll.u32 %v3242, 16
        %v3364 = vrot.slane %v3362, 5
        %v3365 = vsel %vm1384, %v3360, %v3364
        %v3366 = vshrl.u32 %v3242, 16
        %v3368 = vrot.slane %v3366, 4
        %v3369 = vor.u32 %v3368, %v3364
        %v3370 = vrot.slane %v3369, 4
        %v3372 = vshll.u32 %v3243, 16
        %v3374 = vrot.slane %v3372, 5
        %v3375 = vsel %vm1384, %v3370, %v3374
        %v3377 = vshrl.u32 %v3244, 16
        %v3379 = vrot.slane %v3377, 4
        %v3380 = vshll.u32 %v3244, 16
        %v3382 = vrot.slane %v3380, 5
        %v3383 = vor.u32 %v3379, %v3382
        %v3384 = vrot.slane %v3383, 4
        %v3386 = vshll.u32 %v3245, 16
        %v3388 = vrot.slane %v3386, 5
        %v3389 = vsel %vm1384, %v3384, %v3388
        %v3390 = vshrl.u32 %v3245, 16
        %v3392 = vrot.slane %v3390, 4
        %v3393 = vor.u32 %v3392, %v3388
        %v3394 = vrot.slane %v3393, 4
        %v3396 = vshll.u32 %v3246, 16
        %v3398 = vrot.slane %v3396, 5
        %v3399 = vsel %vm1384, %v3394, %v3398
        %v3401 = vshrl.u32 %v3247, 16
        %v3403 = vrot.slane %v3401, 4
        %v3404 = vshll.u32 %v3247, 16
        %v3406 = vrot.slane %v3404, 5
        %v3407 = vor.u32 %v3403, %v3406
        %v3408 = vrot.slane %v3407, 4
        %v3410 = vshll.u32 %v3248, 16
        %v3412 = vrot.slane %v3410, 5
        %v3413 = vsel %vm1384, %v3408, %v3412
        %v3414 = vshrl.u32 %v3248, 16
        %v3416 = vrot.slane %v3414, 4
        %v3417 = vor.u32 %v3416, %v3412
        %v3418 = vrot.slane %v3417, 4
        %v3420 = vshll.u32 %v3249, 16
        %v3422 = vrot.slane %v3420, 5
        %v3423 = vsel %vm1384, %v3418, %v3422
        %v3425 = vshrl.u32 %v3250, 16
        %v3427 = vrot.slane %v3425, 4
        %v3428 = vshll.u32 %v3250, 16
        %v3430 = vrot.slane %v3428, 5
        %v3431 = vor.u32 %v3427, %v3430
        %v3432 = vrot.slane %v3431, 4
        %v3434 = vshll.u32 %v3251, 16
        %v3436 = vrot.slane %v3434, 5
        %v3437 = vsel %vm1384, %v3432, %v3436
        %v3438 = vshrl.u32 %v3251, 16
        %v3440 = vrot.slane %v3438, 4
        %v3441 = vor.u32 %v3440, %v3436
        %v3442 = vrot.slane %v3441, 4
        %v3444 = vshll.u32 %v3252, 16
        %v3446 = vrot.slane %v3444, 5
        %v3447 = vsel %vm1384, %v3442, %v3446
        %v3449 = vshrl.u32 %v3253, 16
        %v3451 = vrot.slane %v3449, 4
        %v3452 = vshll.u32 %v3253, 16
        %v3454 = vrot.slane %v3452, 5
        %v3455 = vor.u32 %v3451, %v3454
        %v3456 = vrot.slane %v3455, 4
        %v3458 = vshll.u32 %v3254, 16
        %v3460 = vrot.slane %v3458, 5
        %v3461 = vsel %vm1384, %v3456, %v3460
        %v3462 = vshrl.u32 %v3254, 16
        %v3464 = vrot.slane %v3462, 4
        %v3465 = vor.u32 %v3464, %v3460
        %v3466 = vrot.slane %v3465, 4
        %v3468 = vshll.u32 %v3255, 16
        %v3470 = vrot.slane %v3468, 5
        %v3471 = vsel %vm1384, %v3466, %v3470
        %v3473 = vshrl.u32 %v3256, 16
        %v3475 = vrot.slane %v3473, 4
        %v3476 = vshll.u32 %v3256, 16
        %v3478 = vrot.slane %v3476, 5
        %v3479 = vor.u32 %v3475, %v3478
        %v3480 = vrot.slane %v3479, 4
        %v3482 = vshll.u32 %v3257, 16
        %v3484 = vrot.slane %v3482, 5
        %v3485 = vsel %vm1384, %v3480, %v3484
        %v3486 = vshrl.u32 %v3257, 16
        %v3488 = vrot.slane %v3486, 4
        %v3489 = vor.u32 %v3488, %v3484
        %v3490 = vrot.slane %v3489, 4
        %v3492 = vshll.u32 %v3258, 16
        %v3494 = vrot.slane %v3492, 5
        %v3495 = vsel %vm1384, %v3490, %v3494
        %v3497 = vshrl.u32 %v3259, 16
        %v3499 = vrot.slane %v3497, 4
        %v3500 = vshll.u32 %v3259, 16
        %v3502 = vrot.slane %v3500, 5
        %v3503 = vor.u32 %v3499, %v3502
        %v3504 = vrot.slane %v3503, 4
        %v3506 = vshll.u32 %v3260, 16
        %v3508 = vrot.slane %v3506, 5
        %v3509 = vsel %vm1384, %v3504, %v3508
        %v3510 = vshrl.u32 %v3260, 16
        %v3512 = vrot.slane %v3510, 4
        %v3513 = vor.u32 %v3512, %v3508
        %v3514 = vrot.slane %v3513, 4
        %v3516 = vshll.u32 %v3261, 16
        %v3518 = vrot.slane %v3516, 5
        %v3519 = vsel %vm1384, %v3514, %v3518
        %v3521 = vshrl.u32 %v3262, 16
        %v3523 = vrot.slane %v3521, 4
        %v3524 = vshll.u32 %v3262, 16
        %v3526 = vrot.slane %v3524, 5
        %v3527 = vor.u32 %v3523, %v3526
        %v3528 = vrot.slane %v3527, 4
        %v3530 = vshll.u32 %v3263, 16
        %v3532 = vrot.slane %v3530, 5
        %v3533 = vsel %vm1384, %v3528, %v3532
        %v3534 = vshrl.u32 %v3263, 16
        %v3536 = vrot.slane %v3534, 4
        %v3537 = vor.u32 %v3536, %v3532
        %v3538 = vrot.slane %v3537, 4
        %v3540 = vshll.u32 %v3264, 16
        %v3542 = vrot.slane %v3540, 5
        %v3543 = vsel %vm1384, %v3538, %v3542
        %v3545 = vshrl.u32 %v3265, 16
        %v3547 = vrot.slane %v3545, 4
        %v3548 = vshll.u32 %v3265, 16
        %v3550 = vrot.slane %v3548, 5
        %v3551 = vor.u32 %v3547, %v3550
        %v3552 = vrot.slane %v3551, 4
        %v3554 = vshll.u32 %v3266, 16
        %v3556 = vrot.slane %v3554, 5
        %v3557 = vsel %vm1384, %v3552, %v3556
        %v3558 = vshrl.u32 %v3266, 16
        %v3560 = vrot.slane %v3558, 4
        %v3561 = vor.u32 %v3560, %v3556
        %v3562 = vrot.slane %v3561, 4
        %v3564 = vshll.u32 %v3267, 16
        %v3566 = vrot.slane %v3564, 5
        %v3567 = vsel %vm1384, %v3562, %v3566
        %v3569 = vshrl.u32 %v3268, 16
        %v3571 = vrot.slane %v3569, 4
        %v3572 = vshll.u32 %v3268, 16
        %v3574 = vrot.slane %v3572, 5
        %v3575 = vor.u32 %v3571, %v3574
        %v3576 = vrot.slane %v3575, 4
        %v3578 = vshll.u32 %v3269, 16
        %v3580 = vrot.slane %v3578, 5
        %v3581 = vsel %vm1384, %v3576, %v3580
        %v3582 = vshrl.u32 %v3269, 16
        %v3584 = vrot.slane %v3582, 4
        %v3585 = vor.u32 %v3584, %v3580
        %v3586 = vrot.slane %v3585, 4
        %v3588 = vshll.u32 %v3270, 16
        %v3590 = vrot.slane %v3588, 5
        %v3591 = vsel %vm1384, %v3586, %v3590
        %v3593 = vshrl.u32 %v3271, 16
        %v3595 = vrot.slane %v3593, 4
        %v3596 = vshll.u32 %v3271, 16
        %v3598 = vrot.slane %v3596, 5
        %v3599 = vor.u32 %v3595, %v3598
        %v3600 = vrot.slane %v3599, 4
        %v3602 = vshll.u32 %v3272, 16
        %v3604 = vrot.slane %v3602, 5
        %v3605 = vsel %vm1384, %v3600, %v3604
        %v3606 = vshrl.u32 %v3272, 16
        %v3608 = vrot.slane %v3606, 4
        %v3609 = vor.u32 %v3608, %v3604
        %v3610 = vrot.slane %v3609, 4
        %v3612 = vshll.u32 %v3273, 16
        %v3614 = vrot.slane %v3612, 5
        %v3615 = vsel %vm1384, %v3610, %v3614
        %v3617 = vshrl.u32 %v3274, 16
        %v3619 = vrot.slane %v3617, 4
        %v3620 = vshll.u32 %v3274, 16
        %v3622 = vrot.slane %v3620, 5
        %v3623 = vor.u32 %v3619, %v3622
        %v3624 = vrot.slane %v3623, 4
        %v3626 = vshll.u32 %v3275, 16
        %v3628 = vrot.slane %v3626, 5
        %v3629 = vsel %vm1384, %v3624, %v3628
        %v3630 = vshrl.u32 %v3275, 16
        %v3632 = vrot.slane %v3630, 4
        %v3633 = vor.u32 %v3632, %v3628
        %v3634 = vrot.slane %v3633, 4
        %v3636 = vshll.u32 %v3276, 16
        %v3638 = vrot.slane %v3636, 5
        %v3639 = vsel %vm1384, %v3634, %v3638
        %v3641 = vshrl.u32 %v3277, 16
        %v3643 = vrot.slane %v3641, 4
        %v3644 = vshll.u32 %v3277, 16
        %v3646 = vrot.slane %v3644, 5
        %v3647 = vor.u32 %v3643, %v3646
        %v3648 = vrot.slane %v3647, 4
        %v3650 = vshll.u32 %v3278, 16
        %v3652 = vrot.slane %v3650, 5
        %v3653 = vsel %vm1384, %v3648, %v3652
        %v3654 = vshrl.u32 %v3278, 16
        %v3656 = vrot.slane %v3654, 4
        %v3657 = vor.u32 %v3656, %v3652
        %v3658 = vrot.slane %v3657, 4
        %v3660 = vshll.u32 %v3279, 16
        %v3662 = vrot.slane %v3660, 5
        %v3663 = vsel %vm1384, %v3658, %v3662
        %v3664 = vld [vmem:[#allocation8 + $0x100] sm:$0xf]
        %v3665 = vld [vmem:[#allocation8 + $0x104] sm:$0xf]
        %v3666 = vld [vmem:[#allocation8 + $0x108] sm:$0xf]
        %v3667 = vld [vmem:[#allocation8 + $0x10c] sm:$0xf]
        %v3668 = vld [vmem:[#allocation8 + $0x110] sm:$0xf]
        %v3669 = vld [vmem:[#allocation8 + $0x114] sm:$0xf]
        %v3670 = vld [vmem:[#allocation8 + $0x118] sm:$0xf]
        %v3671 = vld [vmem:[#allocation8 + $0x11c] sm:$0xf]
        %v3672 = vld [vmem:[#allocation8 + $0x120] sm:$0xf]
        %v3673 = vld [vmem:[#allocation8 + $0x124] sm:$0xf]
        %v3674 = vld [vmem:[#allocation8 + $0x128] sm:$0xf]
        %v3675 = vld [vmem:[#allocation8 + $0x12c] sm:$0xf]
        %v3676 = vld [vmem:[#allocation8 + $0x130] sm:$0xf]
        %v3677 = vld [vmem:[#allocation8 + $0x134] sm:$0xf]
        %v3678 = vld [vmem:[#allocation8 + $0x138] sm:$0xf]
        %v3679 = vld [vmem:[#allocation8 + $0x13c] sm:$0xf]
        %v3680 = vunpack.c.l.b16 %v3293
        %v3681 = vunpack.c.l.b16 %v3303
        %v3682 = vunpack.c.l.b16 %v3317
        %v3683 = vunpack.c.l.b16 %v3327
        %v3684 = vunpack.c.l.b16 %v3341
        %v3685 = vunpack.c.l.b16 %v3351
        %v3686 = vunpack.c.l.b16 %v3365
        %v3687 = vunpack.c.l.b16 %v3375
        %v3688 = vunpack.c.l.b16 %v3389
        %v3689 = vunpack.c.l.b16 %v3399
        %v3690 = vunpack.c.l.b16 %v3413
        %v3691 = vunpack.c.l.b16 %v3423
        %v3692 = vunpack.c.l.b16 %v3437
        %v3693 = vunpack.c.l.b16 %v3447
        %v3694 = vunpack.c.l.b16 %v3461
        %v3695 = vunpack.c.l.b16 %v3471
        %v3696 = vunpack.c.l.b16 %v3485
        %v3697 = vunpack.c.l.b16 %v3495
        %v3698 = vunpack.c.l.b16 %v3509
        %v3699 = vunpack.c.l.b16 %v3519
        %v3700 = vunpack.c.l.b16 %v3533
        %v3701 = vunpack.c.l.b16 %v3543
        %v3702 = vunpack.c.l.b16 %v3557
        %v3703 = vunpack.c.l.b16 %v3567
        %v3704 = vunpack.c.l.b16 %v3581
        %v3705 = vunpack.c.l.b16 %v3591
        %v3706 = vunpack.c.l.b16 %v3605
        %v3707 = vunpack.c.l.b16 %v3615
        %v3708 = vunpack.c.l.b16 %v3629
        %v3709 = vunpack.c.l.b16 %v3639
        %v3710 = vunpack.c.l.b16 %v3653
        %v3711 = vunpack.c.l.b16 %v3663
        %v3712 = vpack.c.b16 %v3681, %v3680
        %v3713 = vpack.c.b16 %v3683, %v3682
        %v3714 = vpack.c.b16 %v3685, %v3684
        %v3715 = vpack.c.b16 %v3687, %v3686
        %v3716 = vpack.c.b16 %v3689, %v3688
        %v3717 = vpack.c.b16 %v3691, %v3690
        %v3718 = vpack.c.b16 %v3693, %v3692
        %v3719 = vpack.c.b16 %v3695, %v3694
        %v3720 = vpack.c.b16 %v3697, %v3696
        %v3721 = vpack.c.b16 %v3699, %v3698
        %v3722 = vpack.c.b16 %v3701, %v3700
        %v3723 = vpack.c.b16 %v3703, %v3702
        %v3724 = vpack.c.b16 %v3705, %v3704
        %v3725 = vpack.c.b16 %v3707, %v3706
        %v3726 = vpack.c.b16 %v3709, %v3708
        %v3727 = vpack.c.b16 %v3711, %v3710
        %v3760 = vunpack.c.l.b16 %v3664
        %v3761 = vunpack.c.l.b16 %v3665
        %v3762 = vunpack.c.l.b16 %v3666
        %v3763 = vunpack.c.l.b16 %v3667
        %v3764 = vunpack.c.l.b16 %v3668
        %v3765 = vunpack.c.l.b16 %v3669
        %v3766 = vunpack.c.l.b16 %v3670
        %v3767 = vunpack.c.l.b16 %v3671
        %v3768 = vunpack.c.l.b16 %v3672
        %v3769 = vunpack.c.l.b16 %v3673
        %v3770 = vunpack.c.l.b16 %v3674
        %v3771 = vunpack.c.l.b16 %v3675
        %v3772 = vunpack.c.l.b16 %v3676
        %v3773 = vunpack.c.l.b16 %v3677
        %v3774 = vunpack.c.l.b16 %v3678
        %v3775 = vunpack.c.l.b16 %v3679
        %v3776 = vpack.c.b16 %v3761, %v3760
        %v3777 = vpack.c.b16 %v3763, %v3762
        %v3778 = vpack.c.b16 %v3765, %v3764
        %v3779 = vpack.c.b16 %v3767, %v3766
        %v3780 = vpack.c.b16 %v3769, %v3768
        %v3781 = vpack.c.b16 %v3771, %v3770
        %v3782 = vpack.c.b16 %v3773, %v3772
        %v3783 = vpack.c.b16 %v3775, %v3774
        %3792 = vmatprep.subr.bf16.mxu0 0
        %3793 = vmatpush1.bf16.msra.mxu0 %v3776
        %3794 = vmatprep.subr.bf16.mxu0 0
        %3795 = vmatpush1.bf16.msra.mxu0 %v3777
        %3796 = vmatprep.subr.bf16.mxu0 0
        %3797 = vmatpush1.bf16.msra.mxu0 %v3778
        %3798 = vmatprep.subr.bf16.mxu0 0
        %3799 = vmatpush1.bf16.msra.mxu0 %v3779
        %3800 = vmatprep.subr.bf16.mxu0 0
        %3801 = vmatpush1.bf16.msra.mxu0 %v3780
        %3802 = vmatprep.subr.bf16.mxu0 0
        %3803 = vmatpush1.bf16.msra.mxu0 %v3781
        %3804 = vmatprep.subr.bf16.mxu0 0
        %3805 = vmatpush1.bf16.msra.mxu0 %v3782
        %3806 = vmatprep.subr.bf16.mxu0 0
        %3807 = vmatpush1.bf16.msra.mxu0 %v3783
        %3808 = vmatprep.subr.bf16.mxu0 0
        %3809 = vmatpush1.bf16.msra.mxu0 0
        %3810 = vmatprep.subr.bf16.mxu0 0
        %3811 = vmatpush1.bf16.msra.mxu0 0
        %3812 = vmatprep.subr.bf16.mxu0 0
        %3813 = vmatpush1.bf16.msra.mxu0 0
        %3814 = vmatprep.subr.bf16.mxu0 0
        %3815 = vmatpush1.bf16.msra.mxu0 0
        %3816 = vmatprep.subr.bf16.mxu0 0
        %3817 = vmatpush1.bf16.msra.mxu0 0
        %3818 = vmatprep.subr.bf16.mxu0 0
        %3819 = vmatpush1.bf16.msra.mxu0 0
        %3820 = vmatprep.subr.bf16.mxu0 0
        %3821 = vmatpush1.bf16.msra.mxu0 0
        %3822 = vmatprep.subr.bf16.mxu0 0
        %3823 = vmatpush1.bf16.msra.mxu0 0
        %3824 = vmatprep.mubr.bf16.mxu0 0
        %3825 = vmatmul.mubr.bf16.gmra.mrb[0].mxu0 %v3712
        %v3826 = vpop.f32.mrb[0].mxu0
        %v3827 = vadd.f32 0.0, %v3826
        %v3828 = vpop.f32.mrb[0].mxu0
        %v3829 = vpop.f32.mrb[0].mxu0
        %v3830 = vadd.f32 0.0, %v3829
        %v3831 = vpop.f32.mrb[0].mxu0
        %3832 = vmatprep.mubr.bf16.mxu0 0
        %3833 = vmatmul.mubr.bf16.gmra.mrb[0].mxu0 %v3713
        %v3834 = vpop.f32.mrb[0].mxu0
        %v3835 = vadd.f32 0.0, %v3834
        %v3836 = vpop.f32.mrb[0].mxu0
        %v3837 = vpop.f32.mrb[0].mxu0
        %v3838 = vadd.f32 0.0, %v3837
        %v3839 = vpop.f32.mrb[0].mxu0
        %3840 = vmatprep.mubr.bf16.mxu0 0
        %3841 = vmatmul.mubr.bf16.gmra.mrb[0].mxu0 %v3714
        %v3842 = vpop.f32.mrb[0].mxu0
        %v3843 = vadd.f32 0.0, %v3842
        %v3844 = vpop.f32.mrb[0].mxu0
        %v3845 = vpop.f32.mrb[0].mxu0
        %v3846 = vadd.f32 0.0, %v3845
        %v3847 = vpop.f32.mrb[0].mxu0
        %3848 = vmatprep.mubr.bf16.mxu0 0
        %3849 = vmatmul.mubr.bf16.gmra.mrb[0].mxu0 %v3715
        %v3850 = vpop.f32.mrb[0].mxu0
        %v3851 = vadd.f32 0.0, %v3850
        %v3852 = vpop.f32.mrb[0].mxu0
        %v3853 = vpop.f32.mrb[0].mxu0
        %v3854 = vadd.f32 0.0, %v3853
        %v3855 = vpop.f32.mrb[0].mxu0
        %3856 = vmatprep.mubr.bf16.mxu0 0
        %3857 = vmatmul.mubr.bf16.gmra.mrb[0].mxu0 %v3716
        %v3858 = vpop.f32.mrb[0].mxu0
        %v3859 = vadd.f32 0.0, %v3858
        %v3860 = vpop.f32.mrb[0].mxu0
        %v3861 = vpop.f32.mrb[0].mxu0
        %v3862 = vadd.f32 0.0, %v3861
        %v3863 = vpop.f32.mrb[0].mxu0
        %3864 = vmatprep.mubr.bf16.mxu0 0
        %3865 = vmatmul.mubr.bf16.gmra.mrb[0].mxu0 %v3717
        %v3866 = vpop.f32.mrb[0].mxu0
        %v3867 = vadd.f32 0.0, %v3866
        %v3868 = vpop.f32.mrb[0].mxu0
        %v3869 = vpop.f32.mrb[0].mxu0
        %v3870 = vadd.f32 0.0, %v3869
        %v3871 = vpop.f32.mrb[0].mxu0
        %3872 = vmatprep.mubr.bf16.mxu0 0
        %3873 = vmatmul.mubr.bf16.gmra.mrb[0].mxu0 %v3718
        %v3874 = vpop.f32.mrb[0].mxu0
        %v3875 = vadd.f32 0.0, %v3874
        %v3876 = vpop.f32.mrb[0].mxu0
        %v3877 = vpop.f32.mrb[0].mxu0
        %v3878 = vadd.f32 0.0, %v3877
        %v3879 = vpop.f32.mrb[0].mxu0
        %3880 = vmatprep.mubr.bf16.mxu0 0
        %3881 = vmatmul.mubr.bf16.gmra.mrb[0].mxu0 %v3719
        %v3882 = vpop.f32.mrb[0].mxu0
        %v3883 = vadd.f32 0.0, %v3882
        %v3884 = vpop.f32.mrb[0].mxu0
        %v3885 = vpop.f32.mrb[0].mxu0
        %v3886 = vadd.f32 0.0, %v3885
        %v3887 = vpop.f32.mrb[0].mxu0
        %3888 = vmatprep.mubr.bf16.mxu0 0
        %3889 = vmatmul.mubr.bf16.gmra.mrb[0].mxu0 %v3720
        %v3890 = vpop.f32.mrb[0].mxu0
        %v3891 = vadd.f32 0.0, %v3890
        %v3892 = vpop.f32.mrb[0].mxu0
        %v3893 = vpop.f32.mrb[0].mxu0
        %v3894 = vadd.f32 0.0, %v3893
        %v3895 = vpop.f32.mrb[0].mxu0
        %3896 = vmatprep.mubr.bf16.mxu0 0
        %3897 = vmatmul.mubr.bf16.gmra.mrb[0].mxu0 %v3721
        %v3898 = vpop.f32.mrb[0].mxu0
        %v3899 = vadd.f32 0.0, %v3898
        %v3900 = vpop.f32.mrb[0].mxu0
        %v3901 = vpop.f32.mrb[0].mxu0
        %v3902 = vadd.f32 0.0, %v3901
        %v3903 = vpop.f32.mrb[0].mxu0
        %3904 = vmatprep.mubr.bf16.mxu0 0
        %3905 = vmatmul.mubr.bf16.gmra.mrb[0].mxu0 %v3722
        %v3906 = vpop.f32.mrb[0].mxu0
        %v3907 = vadd.f32 0.0, %v3906
        %v3908 = vpop.f32.mrb[0].mxu0
        %v3909 = vpop.f32.mrb[0].mxu0
        %v3910 = vadd.f32 0.0, %v3909
        %v3911 = vpop.f32.mrb[0].mxu0
        %3912 = vmatprep.mubr.bf16.mxu0 0
        %3913 = vmatmul.mubr.bf16.gmra.mrb[0].mxu0 %v3723
        %v3914 = vpop.f32.mrb[0].mxu0
        %v3915 = vadd.f32 0.0, %v3914
        %v3916 = vpop.f32.mrb[0].mxu0
        %v3917 = vpop.f32.mrb[0].mxu0
        %v3918 = vadd.f32 0.0, %v3917
        %v3919 = vpop.f32.mrb[0].mxu0
        %3920 = vmatprep.mubr.bf16.mxu0 0
        %3921 = vmatmul.mubr.bf16.gmra.mrb[0].mxu0 %v3724
        %v3922 = vpop.f32.mrb[0].mxu0
        %v3923 = vadd.f32 0.0, %v3922
        %v3924 = vpop.f32.mrb[0].mxu0
        %v3925 = vpop.f32.mrb[0].mxu0
        %v3926 = vadd.f32 0.0, %v3925
        %v3927 = vpop.f32.mrb[0].mxu0
        %3928 = vmatprep.mubr.bf16.mxu0 0
        %3929 = vmatmul.mubr.bf16.gmra.mrb[0].mxu0 %v3725
        %v3930 = vpop.f32.mrb[0].mxu0
        %v3931 = vadd.f32 0.0, %v3930
        %v3932 = vpop.f32.mrb[0].mxu0
        %v3933 = vpop.f32.mrb[0].mxu0
        %v3934 = vadd.f32 0.0, %v3933
        %v3935 = vpop.f32.mrb[0].mxu0
        %3936 = vmatprep.mubr.bf16.mxu0 0
        %3937 = vmatmul.mubr.bf16.gmra.mrb[0].mxu0 %v3726
        %v3938 = vpop.f32.mrb[0].mxu0
        %v3939 = vadd.f32 0.0, %v3938
        %v3940 = vpop.f32.mrb[0].mxu0
        %v3941 = vpop.f32.mrb[0].mxu0
        %v3942 = vadd.f32 0.0, %v3941
        %v3943 = vpop.f32.mrb[0].mxu0
        %3944 = vmatprep.mubr.bf16.mxu0 0
        %3945 = vmatmul.mubr.bf16.gmra.mrb[0].mxu0 %v3727
        %v3946 = vpop.f32.mrb[0].mxu0
        %v3947 = vadd.f32 0.0, %v3946
        %v3948 = vpop.f32.mrb[0].mxu0
        %v3949 = vpop.f32.mrb[0].mxu0
        %v3950 = vadd.f32 0.0, %v3949
        %v3951 = vpop.f32.mrb[0].mxu0
        %3952 = vdwg.mxu0
        %v3953 = vadd.f32 %v3200, %v3827
        %v3954 = vadd.f32 %v3201, %v3830
        %v3955 = vadd.f32 %v3202, %v3835
        %v3956 = vadd.f32 %v3203, %v3838
        %v3957 = vadd.f32 %v3204, %v3843
        %v3958 = vadd.f32 %v3205, %v3846
        %v3959 = vadd.f32 %v3206, %v3851
        %v3960 = vadd.f32 %v3207, %v3854
        %v3961 = vadd.f32 %v3208, %v3859
        %v3962 = vadd.f32 %v3209, %v3862
        %v3963 = vadd.f32 %v3210, %v3867
        %v3964 = vadd.f32 %v3211, %v3870
        %v3965 = vadd.f32 %v3212, %v3875
        %v3966 = vadd.f32 %v3213, %v3878
        %v3967 = vadd.f32 %v3214, %v3883
        %v3968 = vadd.f32 %v3215, %v3886
        %v3969 = vadd.f32 %v3216, %v3891
        %v3970 = vadd.f32 %v3217, %v3894
        %v3971 = vadd.f32 %v3218, %v3899
        %v3972 = vadd.f32 %v3219, %v3902
        %v3973 = vadd.f32 %v3220, %v3907
        %v3974 = vadd.f32 %v3221, %v3910
        %v3975 = vadd.f32 %v3222, %v3915
        %v3976 = vadd.f32 %v3223, %v3918
        %v3977 = vadd.f32 %v3224, %v3923
        %v3978 = vadd.f32 %v3225, %v3926
        %v3979 = vadd.f32 %v3226, %v3931
        %v3980 = vadd.f32 %v3227, %v3934
        %v3981 = vadd.f32 %v3228, %v3939
        %v3982 = vadd.f32 %v3229, %v3942
        %v3983 = vadd.f32 %v3230, %v3947
        %v3984 = vadd.f32 %v3231, %v3950
        %v3985 = vld [vmem:[%s1203] sm:$0xe]
        %v3986 = vld [vmem:[%s1203 + $0xc] sm:$0xe]
        %v3987 = vld [vmem:[%s1203 + $0x18] sm:$0xe]
        %v3988 = vld [vmem:[%s1203 + $0x24] sm:$0xe]
        %v3989 = vld [vmem:[%s1203 + $0x30] sm:$0xe]
        %v3990 = vld [vmem:[%s1203 + $0x3c] sm:$0xe]
        %v3991 = vld [vmem:[%s1203 + $0x48] sm:$0xe]
        %v3992 = vld [vmem:[%s1203 + $0x54] sm:$0xe]
        %v3993 = vld [vmem:[%s1203 + $0x60] sm:$0xe]
        %v3994 = vld [vmem:[%s1203 + $0x6c] sm:$0xe]
        %v3995 = vld [vmem:[%s1203 + $0x78] sm:$0xe]
        %v3996 = vld [vmem:[%s1203 + $0x84] sm:$0xe]
        %v3997 = vld [vmem:[%s1203 + $0x90] sm:$0xe]
        %v3998 = vld [vmem:[%s1203 + $0x9c] sm:$0xe]
        %v3999 = vld [vmem:[%s1203 + $0xa8] sm:$0xe]
        %v4000 = vld [vmem:[%s1203 + $0xb4] sm:$0xe]
        %v4049 = vrot.slane %v3985, 5
        %v4050 = vrot.slane %v4049, 4
        %v4051 = vrot.slane %v3233, 5
        %v4052 = vsel %vm2413, %v4050, %v4051
        %v4053 = vrot.slane %v4051, 4
        %v4054 = vrot.slane %v3234, 5
        %v4055 = vsel %vm2413, %v4053, %v4054
        %v4056 = vrot.slane %v3986, 5
        %v4057 = vrot.slane %v4056, 4
        %v4058 = vrot.slane %v3236, 5
        %v4059 = vsel %vm2413, %v4057, %v4058
        %v4060 = vrot.slane %v4058, 4
        %v4061 = vrot.slane %v3237, 5
        %v4062 = vsel %vm2413, %v4060, %v4061
        %v4063 = vrot.slane %v3987, 5
        %v4064 = vrot.slane %v4063, 4
        %v4065 = vrot.slane %v3239, 5
        %v4066 = vsel %vm2413, %v4064, %v4065
        %v4067 = vrot.slane %v4065, 4
        %v4068 = vrot.slane %v3240, 5
        %v4069 = vsel %vm2413, %v4067, %v4068
        %v4070 = vrot.slane %v3988, 5
        %v4071 = vrot.slane %v4070, 4
        %v4072 = vrot.slane %v3242, 5
        %v4073 = vsel %vm2413, %v4071, %v4072
        %v4074 = vrot.slane %v4072, 4
        %v4075 = vrot.slane %v3243, 5
        %v4076 = vsel %vm2413, %v4074, %v4075
        %v4077 = vrot.slane %v3989, 5
        %v4078 = vrot.slane %v4077, 4
        %v4079 = vrot.slane %v3245, 5
        %v4080 = vsel %vm2413, %v4078, %v4079
        %v4081 = vrot.slane %v4079, 4
        %v4082 = vrot.slane %v3246, 5
        %v4083 = vsel %vm2413, %v4081, %v4082
        %v4084 = vrot.slane %v3990, 5
        %v4085 = vrot.slane %v4084, 4
        %v4086 = vrot.slane %v3248, 5
        %v4087 = vsel %vm2413, %v4085, %v4086
        %v4088 = vrot.slane %v4086, 4
        %v4089 = vrot.slane %v3249, 5
        %v4090 = vsel %vm2413, %v4088, %v4089
        %v4091 = vrot.slane %v3991, 5
        %v4092 = vrot.slane %v4091, 4
        %v4093 = vrot.slane %v3251, 5
        %v4094 = vsel %vm2413, %v4092, %v4093
        %v4095 = vrot.slane %v4093, 4
        %v4096 = vrot.slane %v3252, 5
        %v4097 = vsel %vm2413, %v4095, %v4096
        %v4098 = vrot.slane %v3992, 5
        %v4099 = vrot.slane %v4098, 4
        %v4100 = vrot.slane %v3254, 5
        %v4101 = vsel %vm2413, %v4099, %v4100
        %v4102 = vrot.slane %v4100, 4
        %v4103 = vrot.slane %v3255, 5
        %v4104 = vsel %vm2413, %v4102, %v4103
        %v4105 = vrot.slane %v3993, 5
        %v4106 = vrot.slane %v4105, 4
        %v4107 = vrot.slane %v3257, 5
        %v4108 = vsel %vm2413, %v4106, %v4107
        %v4109 = vrot.slane %v4107, 4
        %v4110 = vrot.slane %v3258, 5
        %v4111 = vsel %vm2413, %v4109, %v4110
        %v4112 = vrot.slane %v3994, 5
        %v4113 = vrot.slane %v4112, 4
        %v4114 = vrot.slane %v3260, 5
        %v4115 = vsel %vm2413, %v4113, %v4114
        %v4116 = vrot.slane %v4114, 4
        %v4117 = vrot.slane %v3261, 5
        %v4118 = vsel %vm2413, %v4116, %v4117
        %v4119 = vrot.slane %v3995, 5
        %v4120 = vrot.slane %v4119, 4
        %v4121 = vrot.slane %v3263, 5
        %v4122 = vsel %vm2413, %v4120, %v4121
        %v4123 = vrot.slane %v4121, 4
        %v4124 = vrot.slane %v3264, 5
        %v4125 = vsel %vm2413, %v4123, %v4124
        %v4126 = vrot.slane %v3996, 5
        %v4127 = vrot.slane %v4126, 4
        %v4128 = vrot.slane %v3266, 5
        %v4129 = vsel %vm2413, %v4127, %v4128
        %v4130 = vrot.slane %v4128, 4
        %v4131 = vrot.slane %v3267, 5
        %v4132 = vsel %vm2413, %v4130, %v4131
        %v4133 = vrot.slane %v3997, 5
        %v4134 = vrot.slane %v4133, 4
        %v4135 = vrot.slane %v3269, 5
        %v4136 = vsel %vm2413, %v4134, %v4135
        %v4137 = vrot.slane %v4135, 4
        %v4138 = vrot.slane %v3270, 5
        %v4139 = vsel %vm2413, %v4137, %v4138
        %v4140 = vrot.slane %v3998, 5
        %v4141 = vrot.slane %v4140, 4
        %v4142 = vrot.slane %v3272, 5
        %v4143 = vsel %vm2413, %v4141, %v4142
        %v4144 = vrot.slane %v4142, 4
        %v4145 = vrot.slane %v3273, 5
        %v4146 = vsel %vm2413, %v4144, %v4145
        %v4147 = vrot.slane %v3999, 5
        %v4148 = vrot.slane %v4147, 4
        %v4149 = vrot.slane %v3275, 5
        %v4150 = vsel %vm2413, %v4148, %v4149
        %v4151 = vrot.slane %v4149, 4
        %v4152 = vrot.slane %v3276, 5
        %v4153 = vsel %vm2413, %v4151, %v4152
        %v4154 = vrot.slane %v4000, 5
        %v4155 = vrot.slane %v4154, 4
        %v4156 = vrot.slane %v3278, 5
        %v4157 = vsel %vm2413, %v4155, %v4156
        %v4158 = vrot.slane %v4156, 4
        %v4159 = vrot.slane %v3279, 5
        %v4160 = vsel %vm2413, %v4158, %v4159
        %v4161 = vld [vmem:[#allocation8 + $0x140] sm:$0xf]
        %v4162 = vld [vmem:[#allocation8 + $0x144] sm:$0xf]
        %v4163 = vld [vmem:[#allocation8 + $0x148] sm:$0xf]
        %v4164 = vld [vmem:[#allocation8 + $0x14c] sm:$0xf]
        %v4165 = vld [vmem:[#allocation8 + $0x150] sm:$0xf]
        %v4166 = vld [vmem:[#allocation8 + $0x154] sm:$0xf]
        %v4167 = vld [vmem:[#allocation8 + $0x158] sm:$0xf]
        %v4168 = vld [vmem:[#allocation8 + $0x15c] sm:$0xf]
        %v4169 = vld [vmem:[#allocation8 + $0x160] sm:$0xf]
        %v4170 = vld [vmem:[#allocation8 + $0x164] sm:$0xf]
        %v4171 = vld [vmem:[#allocation8 + $0x168] sm:$0xf]
        %v4172 = vld [vmem:[#allocation8 + $0x16c] sm:$0xf]
        %v4173 = vld [vmem:[#allocation8 + $0x170] sm:$0xf]
        %v4174 = vld [vmem:[#allocation8 + $0x174] sm:$0xf]
        %v4175 = vld [vmem:[#allocation8 + $0x178] sm:$0xf]
        %v4176 = vld [vmem:[#allocation8 + $0x17c] sm:$0xf]
        %v4177 = vunpack.c.l.b16 %v4052
        %v4178 = vunpack.c.l.b16 %v4055
        %v4179 = vunpack.c.l.b16 %v4059
        %v4180 = vunpack.c.l.b16 %v4062
        %v4181 = vunpack.c.l.b16 %v4066
        %v4182 = vunpack.c.l.b16 %v4069
        %v4183 = vunpack.c.l.b16 %v4073
        %v4184 = vunpack.c.l.b16 %v4076
        %v4185 = vunpack.c.l.b16 %v4080
        %v4186 = vunpack.c.l.b16 %v4083
        %v4187 = vunpack.c.l.b16 %v4087
        %v4188 = vunpack.c.l.b16 %v4090
        %v4189 = vunpack.c.l.b16 %v4094
        %v4190 = vunpack.c.l.b16 %v4097
        %v4191 = vunpack.c.l.b16 %v4101
        %v4192 = vunpack.c.l.b16 %v4104
        %v4193 = vunpack.c.l.b16 %v4108
        %v4194 = vunpack.c.l.b16 %v4111
        %v4195 = vunpack.c.l.b16 %v4115
        %v4196 = vunpack.c.l.b16 %v4118
        %v4197 = vunpack.c.l.b16 %v4122
        %v4198 = vunpack.c.l.b16 %v4125
        %v4199 = vunpack.c.l.b16 %v4129
        %v4200 = vunpack.c.l.b16 %v4132
        %v4201 = vunpack.c.l.b16 %v4136
        %v4202 = vunpack.c.l.b16 %v4139
        %v4203 = vunpack.c.l.b16 %v4143
        %v4204 = vunpack.c.l.b16 %v4146
        %v4205 = vunpack.c.l.b16 %v4150
        %v4206 = vunpack.c.l.b16 %v4153
        %v4207 = vunpack.c.l.b16 %v4157
        %v4208 = vunpack.c.l.b16 %v4160
        %v4209 = vpack.c.b16 %v4178, %v4177
        %v4210 = vpack.c.b16 %v4180, %v4179
        %v4211 = vpack.c.b16 %v4182, %v4181
        %v4212 = vpack.c.b16 %v4184, %v4183
        %v4213 = vpack.c.b16 %v4186, %v4185
        %v4214 = vpack.c.b16 %v4188, %v4187
        %v4215 = vpack.c.b16 %v4190, %v4189
        %v4216 = vpack.c.b16 %v4192, %v4191
        %v4217 = vpack.c.b16 %v4194, %v4193
        %v4218 = vpack.c.b16 %v4196, %v4195
        %v4219 = vpack.c.b16 %v4198, %v4197
        %v4220 = vpack.c.b16 %v4200, %v4199
        %v4221 = vpack.c.b16 %v4202, %v4201
        %v4222 = vpack.c.b16 %v4204, %v4203
        %v4223 = vpack.c.b16 %v4206, %v4205
        %v4224 = vpack.c.b16 %v4208, %v4207
        %v4257 = vunpack.c.l.b16 %v4161
        %v4258 = vunpack.c.l.b16 %v4162
        %v4259 = vunpack.c.l.b16 %v4163
        %v4260 = vunpack.c.l.b16 %v4164
        %v4261 = vunpack.c.l.b16 %v4165
        %v4262 = vunpack.c.l.b16 %v4166
        %v4263 = vunpack.c.l.b16 %v4167
        %v4264 = vunpack.c.l.b16 %v4168
        %v4265 = vunpack.c.l.b16 %v4169
        %v4266 = vunpack.c.l.b16 %v4170
        %v4267 = vunpack.c.l.b16 %v4171
        %v4268 = vunpack.c.l.b16 %v4172
        %v4269 = vunpack.c.l.b16 %v4173
        %v4270 = vunpack.c.l.b16 %v4174
        %v4271 = vunpack.c.l.b16 %v4175
        %v4272 = vunpack.c.l.b16 %v4176
        %v4273 = vpack.c.b16 %v4258, %v4257
        %v4274 = vpack.c.b16 %v4260, %v4259
        %v4275 = vpack.c.b16 %v4262, %v4261
        %v4276 = vpack.c.b16 %v4264, %v4263
        %v4277 = vpack.c.b16 %v4266, %v4265
        %v4278 = vpack.c.b16 %v4268, %v4267
        %v4279 = vpack.c.b16 %v4270, %v4269
        %v4280 = vpack.c.b16 %v4272, %v4271
        %4289 = vmatprep.subr.bf16.mxu0 0
        %4290 = vmatpush1.bf16.msra.mxu0 %v4273
        %4291 = vmatprep.subr.bf16.mxu0 0
        %4292 = vmatpush1.bf16.msra.mxu0 %v4274
        %4293 = vmatprep.subr.bf16.mxu0 0
        %4294 = vmatpush1.bf16.msra.mxu0 %v4275
        %4295 = vmatprep.subr.bf16.mxu0 0
        %4296 = vmatpush1.bf16.msra.mxu0 %v4276
        %4297 = vmatprep.subr.bf16.mxu0 0
        %4298 = vmatpush1.bf16.msra.mxu0 %v4277
        %4299 = vmatprep.subr.bf16.mxu0 0
        %4300 = vmatpush1.bf16.msra.mxu0 %v4278
        %4301 = vmatprep.subr.bf16.mxu0 0
        %4302 = vmatpush1.bf16.msra.mxu0 %v4279
        %4303 = vmatprep.subr.bf16.mxu0 0
        %4304 = vmatpush1.bf16.msra.mxu0 %v4280
        %4305 = vmatprep.subr.bf16.mxu0 0
        %4306 = vmatpush1.bf16.msra.mxu0 0
        %4307 = vmatprep.subr.bf16.mxu0 0
        %4308 = vmatpush1.bf16.msra.mxu0 0
        %4309 = vmatprep.subr.bf16.mxu0 0
        %4310 = vmatpush1.bf16.msra.mxu0 0
        %4311 = vmatprep.subr.bf16.mxu0 0
        %4312 = vmatpush1.bf16.msra.mxu0 0
        %4313 = vmatprep.subr.bf16.mxu0 0
        %4314 = vmatpush1.bf16.msra.mxu0 0
        %4315 = vmatprep.subr.bf16.mxu0 0
        %4316 = vmatpush1.bf16.msra.mxu0 0
        %4317 = vmatprep.subr.bf16.mxu0 0
        %4318 = vmatpush1.bf16.msra.mxu0 0
        %4319 = vmatprep.subr.bf16.mxu0 0
        %4320 = vmatpush1.bf16.msra.mxu0 0
        %4321 = vmatprep.mubr.bf16.mxu0 0
        %4322 = vmatmul.mubr.bf16.gmra.mrb[0].mxu0 %v4209
        %v4323 = vpop.f32.mrb[0].mxu0
        %v4324 = vadd.f32 0.0, %v4323
        %v4325 = vpop.f32.mrb[0].mxu0
        %v4326 = vpop.f32.mrb[0].mxu0
        %v4327 = vadd.f32 0.0, %v4326
        %v4328 = vpop.f32.mrb[0].mxu0
        %4329 = vmatprep.mubr.bf16.mxu0 0
        %4330 = vmatmul.mubr.bf16.gmra.mrb[0].mxu0 %v4210
        %v4331 = vpop.f32.mrb[0].mxu0
        %v4332 = vadd.f32 0.0, %v4331
        %v4333 = vpop.f32.mrb[0].mxu0
        %v4334 = vpop.f32.mrb[0].mxu0
        %v4335 = vadd.f32 0.0, %v4334
        %v4336 = vpop.f32.mrb[0].mxu0
        %4337 = vmatprep.mubr.bf16.mxu0 0
        %4338 = vmatmul.mubr.bf16.gmra.mrb[0].mxu0 %v4211
        %v4339 = vpop.f32.mrb[0].mxu0
        %v4340 = vadd.f32 0.0, %v4339
        %v4341 = vpop.f32.mrb[0].mxu0
        %v4342 = vpop.f32.mrb[0].mxu0
        %v4343 = vadd.f32 0.0, %v4342
        %v4344 = vpop.f32.mrb[0].mxu0
        %4345 = vmatprep.mubr.bf16.mxu0 0
        %4346 = vmatmul.mubr.bf16.gmra.mrb[0].mxu0 %v4212
        %v4347 = vpop.f32.mrb[0].mxu0
        %v4348 = vadd.f32 0.0, %v4347
        %v4349 = vpop.f32.mrb[0].mxu0
        %v4350 = vpop.f32.mrb[0].mxu0
        %v4351 = vadd.f32 0.0, %v4350
        %v4352 = vpop.f32.mrb[0].mxu0
        %4353 = vmatprep.mubr.bf16.mxu0 0
        %4354 = vmatmul.mubr.bf16.gmra.mrb[0].mxu0 %v4213
        %v4355 = vpop.f32.mrb[0].mxu0
        %v4356 = vadd.f32 0.0, %v4355
        %v4357 = vpop.f32.mrb[0].mxu0
        %v4358 = vpop.f32.mrb[0].mxu0
        %v4359 = vadd.f32 0.0, %v4358
        %v4360 = vpop.f32.mrb[0].mxu0
        %4361 = vmatprep.mubr.bf16.mxu0 0
        %4362 = vmatmul.mubr.bf16.gmra.mrb[0].mxu0 %v4214
        %v4363 = vpop.f32.mrb[0].mxu0
        %v4364 = vadd.f32 0.0, %v4363
        %v4365 = vpop.f32.mrb[0].mxu0
        %v4366 = vpop.f32.mrb[0].mxu0
        %v4367 = vadd.f32 0.0, %v4366
        %v4368 = vpop.f32.mrb[0].mxu0
        %4369 = vmatprep.mubr.bf16.mxu0 0
        %4370 = vmatmul.mubr.bf16.gmra.mrb[0].mxu0 %v4215
        %v4371 = vpop.f32.mrb[0].mxu0
        %v4372 = vadd.f32 0.0, %v4371
        %v4373 = vpop.f32.mrb[0].mxu0
        %v4374 = vpop.f32.mrb[0].mxu0
        %v4375 = vadd.f32 0.0, %v4374
        %v4376 = vpop.f32.mrb[0].mxu0
        %4377 = vmatprep.mubr.bf16.mxu0 0
        %4378 = vmatmul.mubr.bf16.gmra.mrb[0].mxu0 %v4216
        %v4379 = vpop.f32.mrb[0].mxu0
        %v4380 = vadd.f32 0.0, %v4379
        %v4381 = vpop.f32.mrb[0].mxu0
        %v4382 = vpop.f32.mrb[0].mxu0
        %v4383 = vadd.f32 0.0, %v4382
        %v4384 = vpop.f32.mrb[0].mxu0
        %4385 = vmatprep.mubr.bf16.mxu0 0
        %4386 = vmatmul.mubr.bf16.gmra.mrb[0].mxu0 %v4217
        %v4387 = vpop.f32.mrb[0].mxu0
        %v4388 = vadd.f32 0.0, %v4387
        %v4389 = vpop.f32.mrb[0].mxu0
        %v4390 = vpop.f32.mrb[0].mxu0
        %v4391 = vadd.f32 0.0, %v4390
        %v4392 = vpop.f32.mrb[0].mxu0
        %4393 = vmatprep.mubr.bf16.mxu0 0
        %4394 = vmatmul.mubr.bf16.gmra.mrb[0].mxu0 %v4218
        %v4395 = vpop.f32.mrb[0].mxu0
        %v4396 = vadd.f32 0.0, %v4395
        %v4397 = vpop.f32.mrb[0].mxu0
        %v4398 = vpop.f32.mrb[0].mxu0
        %v4399 = vadd.f32 0.0, %v4398
        %v4400 = vpop.f32.mrb[0].mxu0
        %4401 = vmatprep.mubr.bf16.mxu0 0
        %4402 = vmatmul.mubr.bf16.gmra.mrb[0].mxu0 %v4219
        %v4403 = vpop.f32.mrb[0].mxu0
        %v4404 = vadd.f32 0.0, %v4403
        %v4405 = vpop.f32.mrb[0].mxu0
        %v4406 = vpop.f32.mrb[0].mxu0
        %v4407 = vadd.f32 0.0, %v4406
        %v4408 = vpop.f32.mrb[0].mxu0
        %4409 = vmatprep.mubr.bf16.mxu0 0
        %4410 = vmatmul.mubr.bf16.gmra.mrb[0].mxu0 %v4220
        %v4411 = vpop.f32.mrb[0].mxu0
        %v4412 = vadd.f32 0.0, %v4411
        %v4413 = vpop.f32.mrb[0].mxu0
        %v4414 = vpop.f32.mrb[0].mxu0
        %v4415 = vadd.f32 0.0, %v4414
        %v4416 = vpop.f32.mrb[0].mxu0
        %4417 = vmatprep.mubr.bf16.mxu0 0
        %4418 = vmatmul.mubr.bf16.gmra.mrb[0].mxu0 %v4221
        %v4419 = vpop.f32.mrb[0].mxu0
        %v4420 = vadd.f32 0.0, %v4419
        %v4421 = vpop.f32.mrb[0].mxu0
        %v4422 = vpop.f32.mrb[0].mxu0
        %v4423 = vadd.f32 0.0, %v4422
        %v4424 = vpop.f32.mrb[0].mxu0
        %4425 = vmatprep.mubr.bf16.mxu0 0
        %4426 = vmatmul.mubr.bf16.gmra.mrb[0].mxu0 %v4222
        %v4427 = vpop.f32.mrb[0].mxu0
        %v4428 = vadd.f32 0.0, %v4427
        %v4429 = vpop.f32.mrb[0].mxu0
        %v4430 = vpop.f32.mrb[0].mxu0
        %v4431 = vadd.f32 0.0, %v4430
        %v4432 = vpop.f32.mrb[0].mxu0
        %4433 = vmatprep.mubr.bf16.mxu0 0
        %4434 = vmatmul.mubr.bf16.gmra.mrb[0].mxu0 %v4223
        %v4435 = vpop.f32.mrb[0].mxu0
        %v4436 = vadd.f32 0.0, %v4435
        %v4437 = vpop.f32.mrb[0].mxu0
        %v4438 = vpop.f32.mrb[0].mxu0
        %v4439 = vadd.f32 0.0, %v4438
        %v4440 = vpop.f32.mrb[0].mxu0
        %4441 = vmatprep.mubr.bf16.mxu0 0
        %4442 = vmatmul.mubr.bf16.gmra.mrb[0].mxu0 %v4224
        %v4443 = vpop.f32.mrb[0].mxu0
        %v4444 = vadd.f32 0.0, %v4443
        %v4445 = vpop.f32.mrb[0].mxu0
        %v4446 = vpop.f32.mrb[0].mxu0
        %v4447 = vadd.f32 0.0, %v4446
        %v4448 = vpop.f32.mrb[0].mxu0
        %4449 = vdwg.mxu0
        %v4450 = vadd.f32 %v3953, %v4324
        %v4451 = vadd.f32 %v3954, %v4327
        %v4452 = vadd.f32 %v3955, %v4332
        %v4453 = vadd.f32 %v3956, %v4335
        %v4454 = vadd.f32 %v3957, %v4340
        %v4455 = vadd.f32 %v3958, %v4343
        %v4456 = vadd.f32 %v3959, %v4348
        %v4457 = vadd.f32 %v3960, %v4351
        %v4458 = vadd.f32 %v3961, %v4356
        %v4459 = vadd.f32 %v3962, %v4359
        %v4460 = vadd.f32 %v3963, %v4364
        %v4461 = vadd.f32 %v3964, %v4367
        %v4462 = vadd.f32 %v3965, %v4372
        %v4463 = vadd.f32 %v3966, %v4375
        %v4464 = vadd.f32 %v3967, %v4380
        %v4465 = vadd.f32 %v3968, %v4383
        %v4466 = vadd.f32 %v3969, %v4388
        %v4467 = vadd.f32 %v3970, %v4391
        %v4468 = vadd.f32 %v3971, %v4396
        %v4469 = vadd.f32 %v3972, %v4399
        %v4470 = vadd.f32 %v3973, %v4404
        %v4471 = vadd.f32 %v3974, %v4407
        %v4472 = vadd.f32 %v3975, %v4412
        %v4473 = vadd.f32 %v3976, %v4415
        %v4474 = vadd.f32 %v3977, %v4420
        %v4475 = vadd.f32 %v3978, %v4423
        %v4476 = vadd.f32 %v3979, %v4428
        %v4477 = vadd.f32 %v3980, %v4431
        %v4478 = vadd.f32 %v3981, %v4436
        %v4479 = vadd.f32 %v3982, %v4439
        %v4480 = vadd.f32 %v3983, %v4444
        %v4481 = vadd.f32 %v3984, %v4447
        %s4482 = scalar_lea.vmem [#allocation2], 24
        %v4483 = vld [vmem:[%s4482] sm:$0xf]
        %v4484 = vld [vmem:[%s4482 + $0x4] sm:$0xf]
        %v4485 = vld [vmem:[%s4482 + $0xc] sm:$0xf]
        %v4486 = vld [vmem:[%s4482 + $0x10] sm:$0xf]
        %v4487 = vld [vmem:[%s4482 + $0x18] sm:$0xf]
        %v4488 = vld [vmem:[%s4482 + $0x1c] sm:$0xf]
        %v4489 = vld [vmem:[%s4482 + $0x24] sm:$0xf]
        %v4490 = vld [vmem:[%s4482 + $0x28] sm:$0xf]
        %v4491 = vld [vmem:[%s4482 + $0x30] sm:$0xf]
        %v4492 = vld [vmem:[%s4482 + $0x34] sm:$0xf]
        %v4493 = vld [vmem:[%s4482 + $0x3c] sm:$0xf]
        %v4494 = vld [vmem:[%s4482 + $0x40] sm:$0xf]
        %v4495 = vld [vmem:[%s4482 + $0x48] sm:$0xf]
        %v4496 = vld [vmem:[%s4482 + $0x4c] sm:$0xf]
        %v4497 = vld [vmem:[%s4482 + $0x54] sm:$0xf]
        %v4498 = vld [vmem:[%s4482 + $0x58] sm:$0xf]
        %v4499 = vld [vmem:[%s4482 + $0x60] sm:$0xf]
        %v4500 = vld [vmem:[%s4482 + $0x64] sm:$0xf]
        %v4501 = vld [vmem:[%s4482 + $0x6c] sm:$0xf]
        %v4502 = vld [vmem:[%s4482 + $0x70] sm:$0xf]
        %v4503 = vld [vmem:[%s4482 + $0x78] sm:$0xf]
        %v4504 = vld [vmem:[%s4482 + $0x7c] sm:$0xf]
        %v4505 = vld [vmem:[%s4482 + $0x84] sm:$0xf]
        %v4506 = vld [vmem:[%s4482 + $0x88] sm:$0xf]
        %v4507 = vld [vmem:[%s4482 + $0x90] sm:$0xf]
        %v4508 = vld [vmem:[%s4482 + $0x94] sm:$0xf]
        %v4509 = vld [vmem:[%s4482 + $0x9c] sm:$0xf]
        %v4510 = vld [vmem:[%s4482 + $0xa0] sm:$0xf]
        %v4511 = vld [vmem:[%s4482 + $0xa8] sm:$0xf]
        %v4512 = vld [vmem:[%s4482 + $0xac] sm:$0xf]
        %v4513 = vld [vmem:[%s4482 + $0xb4] sm:$0xf]
        %v4514 = vld [vmem:[%s4482 + $0xb8] sm:$0xf]
        %v4515 = vld [vmem:[#allocation8 + $0x180] sm:$0xf]
        %v4516 = vld [vmem:[#allocation8 + $0x184] sm:$0xf]
        %v4517 = vld [vmem:[#allocation8 + $0x188] sm:$0xf]
        %v4518 = vld [vmem:[#allocation8 + $0x18c] sm:$0xf]
        %v4519 = vld [vmem:[#allocation8 + $0x190] sm:$0xf]
        %v4520 = vld [vmem:[#allocation8 + $0x194] sm:$0xf]
        %v4521 = vld [vmem:[#allocation8 + $0x198] sm:$0xf]
        %v4522 = vld [vmem:[#allocation8 + $0x19c] sm:$0xf]
        %v4523 = vld [vmem:[#allocation8 + $0x1a0] sm:$0xf]
        %v4524 = vld [vmem:[#allocation8 + $0x1a4] sm:$0xf]
        %v4525 = vld [vmem:[#allocation8 + $0x1a8] sm:$0xf]
        %v4526 = vld [vmem:[#allocation8 + $0x1ac] sm:$0xf]
        %v4527 = vld [vmem:[#allocation8 + $0x1b0] sm:$0xf]
        %v4528 = vld [vmem:[#allocation8 + $0x1b4] sm:$0xf]
        %v4529 = vld [vmem:[#allocation8 + $0x1b8] sm:$0xf]
        %v4530 = vld [vmem:[#allocation8 + $0x1bc] sm:$0xf]
        %v4563 = vunpack.c.l.b16 %v4483
        %v4564 = vunpack.c.l.b16 %v4484
        %v4565 = vunpack.c.l.b16 %v4485
        %v4566 = vunpack.c.l.b16 %v4486
        %v4567 = vunpack.c.l.b16 %v4487
        %v4568 = vunpack.c.l.b16 %v4488
        %v4569 = vunpack.c.l.b16 %v4489
        %v4570 = vunpack.c.l.b16 %v4490
        %v4571 = vunpack.c.l.b16 %v4491
        %v4572 = vunpack.c.l.b16 %v4492
        %v4573 = vunpack.c.l.b16 %v4493
        %v4574 = vunpack.c.l.b16 %v4494
        %v4575 = vunpack.c.l.b16 %v4495
        %v4576 = vunpack.c.l.b16 %v4496
        %v4577 = vunpack.c.l.b16 %v4497
        %v4578 = vunpack.c.l.b16 %v4498
        %v4579 = vunpack.c.l.b16 %v4499
        %v4580 = vunpack.c.l.b16 %v4500
        %v4581 = vunpack.c.l.b16 %v4501
        %v4582 = vunpack.c.l.b16 %v4502
        %v4583 = vunpack.c.l.b16 %v4503
        %v4584 = vunpack.c.l.b16 %v4504
        %v4585 = vunpack.c.l.b16 %v4505
        %v4586 = vunpack.c.l.b16 %v4506
        %v4587 = vunpack.c.l.b16 %v4507
        %v4588 = vunpack.c.l.b16 %v4508
        %v4589 = vunpack.c.l.b16 %v4509
        %v4590 = vunpack.c.l.b16 %v4510
        %v4591 = vunpack.c.l.b16 %v4511
        %v4592 = vunpack.c.l.b16 %v4512
        %v4593 = vunpack.c.l.b16 %v4513
        %v4594 = vunpack.c.l.b16 %v4514
        %v4595 = vpack.c.b16 %v4564, %v4563
        %v4596 = vpack.c.b16 %v4566, %v4565
        %v4597 = vpack.c.b16 %v4568, %v4567
        %v4598 = vpack.c.b16 %v4570, %v4569
        %v4599 = vpack.c.b16 %v4572, %v4571
        %v4600 = vpack.c.b16 %v4574, %v4573
        %v4601 = vpack.c.b16 %v4576, %v4575
        %v4602 = vpack.c.b16 %v4578, %v4577
        %v4603 = vpack.c.b16 %v4580, %v4579
        %v4604 = vpack.c.b16 %v4582, %v4581
        %v4605 = vpack.c.b16 %v4584, %v4583
        %v4606 = vpack.c.b16 %v4586, %v4585
        %v4607 = vpack.c.b16 %v4588, %v4587
        %v4608 = vpack.c.b16 %v4590, %v4589
        %v4609 = vpack.c.b16 %v4592, %v4591
        %v4610 = vpack.c.b16 %v4594, %v4593
        %v4643 = vunpack.c.l.b16 %v4515
        %v4644 = vunpack.c.l.b16 %v4516
        %v4645 = vunpack.c.l.b16 %v4517
        %v4646 = vunpack.c.l.b16 %v4518
        %v4647 = vunpack.c.l.b16 %v4519
        %v4648 = vunpack.c.l.b16 %v4520
        %v4649 = vunpack.c.l.b16 %v4521
        %v4650 = vunpack.c.l.b16 %v4522
        %v4651 = vunpack.c.l.b16 %v4523
        %v4652 = vunpack.c.l.b16 %v4524
        %v4653 = vunpack.c.l.b16 %v4525
        %v4654 = vunpack.c.l.b16 %v4526
        %v4655 = vunpack.c.l.b16 %v4527
        %v4656 = vunpack.c.l.b16 %v4528
        %v4657 = vunpack.c.l.b16 %v4529
        %v4658 = vunpack.c.l.b16 %v4530
        %v4659 = vpack.c.b16 %v4644, %v4643
        %v4660 = vpack.c.b16 %v4646, %v4645
        %v4661 = vpack.c.b16 %v4648, %v4647
        %v4662 = vpack.c.b16 %v4650, %v4649
        %v4663 = vpack.c.b16 %v4652, %v4651
        %v4664 = vpack.c.b16 %v4654, %v4653
        %v4665 = vpack.c.b16 %v4656, %v4655
        %v4666 = vpack.c.b16 %v4658, %v4657
        %4675 = vmatprep.subr.bf16.mxu0 0
        %4676 = vmatpush1.bf16.msra.mxu0 %v4659
        %4677 = vmatprep.subr.bf16.mxu0 0
        %4678 = vmatpush1.bf16.msra.mxu0 %v4660
        %4679 = vmatprep.subr.bf16.mxu0 0
        %4680 = vmatpush1.bf16.msra.mxu0 %v4661
        %4681 = vmatprep.subr.bf16.mxu0 0
        %4682 = vmatpush1.bf16.msra.mxu0 %v4662
        %4683 = vmatprep.subr.bf16.mxu0 0
        %4684 = vmatpush1.bf16.msra.mxu0 %v4663
        %4685 = vmatprep.subr.bf16.mxu0 0
        %4686 = vmatpush1.bf16.msra.mxu0 %v4664
        %4687 = vmatprep.subr.bf16.mxu0 0
        %4688 = vmatpush1.bf16.msra.mxu0 %v4665
        %4689 = vmatprep.subr.bf16.mxu0 0
        %4690 = vmatpush1.bf16.msra.mxu0 %v4666
        %4691 = vmatprep.subr.bf16.mxu0 0
        %4692 = vmatpush1.bf16.msra.mxu0 0
        %4693 = vmatprep.subr.bf16.mxu0 0
        %4694 = vmatpush1.bf16.msra.mxu0 0
        %4695 = vmatprep.subr.bf16.mxu0 0
        %4696 = vmatpush1.bf16.msra.mxu0 0
        %4697 = vmatprep.subr.bf16.mxu0 0
        %4698 = vmatpush1.bf16.msra.mxu0 0
        %4699 = vmatprep.subr.bf16.mxu0 0
        %4700 = vmatpush1.bf16.msra.mxu0 0
        %4701 = vmatprep.subr.bf16.mxu0 0
        %4702 = vmatpush1.bf16.msra.mxu0 0
        %4703 = vmatprep.subr.bf16.mxu0 0
        %4704 = vmatpush1.bf16.msra.mxu0 0
        %4705 = vmatprep.subr.bf16.mxu0 0
        %4706 = vmatpush1.bf16.msra.mxu0 0
        %4707 = vmatprep.mubr.bf16.mxu0 0
        %4708 = vmatmul.mubr.bf16.gmra.mrb[0].mxu0 %v4595
        %v4709 = vpop.f32.mrb[0].mxu0
        %v4710 = vadd.f32 0.0, %v4709
        %v4711 = vpop.f32.mrb[0].mxu0
        %v4712 = vpop.f32.mrb[0].mxu0
        %v4713 = vadd.f32 0.0, %v4712
        %v4714 = vpop.f32.mrb[0].mxu0
        %4715 = vmatprep.mubr.bf16.mxu0 0
        %4716 = vmatmul.mubr.bf16.gmra.mrb[0].mxu0 %v4596
        %v4717 = vpop.f32.mrb[0].mxu0
        %v4718 = vadd.f32 0.0, %v4717
        %v4719 = vpop.f32.mrb[0].mxu0
        %v4720 = vpop.f32.mrb[0].mxu0
        %v4721 = vadd.f32 0.0, %v4720
        %v4722 = vpop.f32.mrb[0].mxu0
        %4723 = vmatprep.mubr.bf16.mxu0 0
        %4724 = vmatmul.mubr.bf16.gmra.mrb[0].mxu0 %v4597
        %v4725 = vpop.f32.mrb[0].mxu0
        %v4726 = vadd.f32 0.0, %v4725
        %v4727 = vpop.f32.mrb[0].mxu0
        %v4728 = vpop.f32.mrb[0].mxu0
        %v4729 = vadd.f32 0.0, %v4728
        %v4730 = vpop.f32.mrb[0].mxu0
        %4731 = vmatprep.mubr.bf16.mxu0 0
        %4732 = vmatmul.mubr.bf16.gmra.mrb[0].mxu0 %v4598
        %v4733 = vpop.f32.mrb[0].mxu0
        %v4734 = vadd.f32 0.0, %v4733
        %v4735 = vpop.f32.mrb[0].mxu0
        %v4736 = vpop.f32.mrb[0].mxu0
        %v4737 = vadd.f32 0.0, %v4736
        %v4738 = vpop.f32.mrb[0].mxu0
        %4739 = vmatprep.mubr.bf16.mxu0 0
        %4740 = vmatmul.mubr.bf16.gmra.mrb[0].mxu0 %v4599
        %v4741 = vpop.f32.mrb[0].mxu0
        %v4742 = vadd.f32 0.0, %v4741
        %v4743 = vpop.f32.mrb[0].mxu0
        %v4744 = vpop.f32.mrb[0].mxu0
        %v4745 = vadd.f32 0.0, %v4744
        %v4746 = vpop.f32.mrb[0].mxu0
        %4747 = vmatprep.mubr.bf16.mxu0 0
        %4748 = vmatmul.mubr.bf16.gmra.mrb[0].mxu0 %v4600
        %v4749 = vpop.f32.mrb[0].mxu0
        %v4750 = vadd.f32 0.0, %v4749
        %v4751 = vpop.f32.mrb[0].mxu0
        %v4752 = vpop.f32.mrb[0].mxu0
        %v4753 = vadd.f32 0.0, %v4752
        %v4754 = vpop.f32.mrb[0].mxu0
        %4755 = vmatprep.mubr.bf16.mxu0 0
        %4756 = vmatmul.mubr.bf16.gmra.mrb[0].mxu0 %v4601
        %v4757 = vpop.f32.mrb[0].mxu0
        %v4758 = vadd.f32 0.0, %v4757
        %v4759 = vpop.f32.mrb[0].mxu0
        %v4760 = vpop.f32.mrb[0].mxu0
        %v4761 = vadd.f32 0.0, %v4760
        %v4762 = vpop.f32.mrb[0].mxu0
        %4763 = vmatprep.mubr.bf16.mxu0 0
        %4764 = vmatmul.mubr.bf16.gmra.mrb[0].mxu0 %v4602
        %v4765 = vpop.f32.mrb[0].mxu0
        %v4766 = vadd.f32 0.0, %v4765
        %v4767 = vpop.f32.mrb[0].mxu0
        %v4768 = vpop.f32.mrb[0].mxu0
        %v4769 = vadd.f32 0.0, %v4768
        %v4770 = vpop.f32.mrb[0].mxu0
        %4771 = vmatprep.mubr.bf16.mxu0 0
        %4772 = vmatmul.mubr.bf16.gmra.mrb[0].mxu0 %v4603
        %v4773 = vpop.f32.mrb[0].mxu0
        %v4774 = vadd.f32 0.0, %v4773
        %v4775 = vpop.f32.mrb[0].mxu0
        %v4776 = vpop.f32.mrb[0].mxu0
        %v4777 = vadd.f32 0.0, %v4776
        %v4778 = vpop.f32.mrb[0].mxu0
        %4779 = vmatprep.mubr.bf16.mxu0 0
        %4780 = vmatmul.mubr.bf16.gmra.mrb[0].mxu0 %v4604
        %v4781 = vpop.f32.mrb[0].mxu0
        %v4782 = vadd.f32 0.0, %v4781
        %v4783 = vpop.f32.mrb[0].mxu0
        %v4784 = vpop.f32.mrb[0].mxu0
        %v4785 = vadd.f32 0.0, %v4784
        %v4786 = vpop.f32.mrb[0].mxu0
        %4787 = vmatprep.mubr.bf16.mxu0 0
        %4788 = vmatmul.mubr.bf16.gmra.mrb[0].mxu0 %v4605
        %v4789 = vpop.f32.mrb[0].mxu0
        %v4790 = vadd.f32 0.0, %v4789
        %v4791 = vpop.f32.mrb[0].mxu0
        %v4792 = vpop.f32.mrb[0].mxu0
        %v4793 = vadd.f32 0.0, %v4792
        %v4794 = vpop.f32.mrb[0].mxu0
        %4795 = vmatprep.mubr.bf16.mxu0 0
        %4796 = vmatmul.mubr.bf16.gmra.mrb[0].mxu0 %v4606
        %v4797 = vpop.f32.mrb[0].mxu0
        %v4798 = vadd.f32 0.0, %v4797
        %v4799 = vpop.f32.mrb[0].mxu0
        %v4800 = vpop.f32.mrb[0].mxu0
        %v4801 = vadd.f32 0.0, %v4800
        %v4802 = vpop.f32.mrb[0].mxu0
        %4803 = vmatprep.mubr.bf16.mxu0 0
        %4804 = vmatmul.mubr.bf16.gmra.mrb[0].mxu0 %v4607
        %v4805 = vpop.f32.mrb[0].mxu0
        %v4806 = vadd.f32 0.0, %v4805
        %v4807 = vpop.f32.mrb[0].mxu0
        %v4808 = vpop.f32.mrb[0].mxu0
        %v4809 = vadd.f32 0.0, %v4808
        %v4810 = vpop.f32.mrb[0].mxu0
        %4811 = vmatprep.mubr.bf16.mxu0 0
        %4812 = vmatmul.mubr.bf16.gmra.mrb[0].mxu0 %v4608
        %v4813 = vpop.f32.mrb[0].mxu0
        %v4814 = vadd.f32 0.0, %v4813
        %v4815 = vpop.f32.mrb[0].mxu0
        %v4816 = vpop.f32.mrb[0].mxu0
        %v4817 = vadd.f32 0.0, %v4816
        %v4818 = vpop.f32.mrb[0].mxu0
        %4819 = vmatprep.mubr.bf16.mxu0 0
        %4820 = vmatmul.mubr.bf16.gmra.mrb[0].mxu0 %v4609
        %v4821 = vpop.f32.mrb[0].mxu0
        %v4822 = vadd.f32 0.0, %v4821
        %v4823 = vpop.f32.mrb[0].mxu0
        %v4824 = vpop.f32.mrb[0].mxu0
        %v4825 = vadd.f32 0.0, %v4824
        %v4826 = vpop.f32.mrb[0].mxu0
        %4827 = vmatprep.mubr.bf16.mxu0 0
        %4828 = vmatmul.mubr.bf16.gmra.mrb[0].mxu0 %v4610
        %v4829 = vpop.f32.mrb[0].mxu0
        %v4830 = vadd.f32 0.0, %v4829
        %v4831 = vpop.f32.mrb[0].mxu0
        %v4832 = vpop.f32.mrb[0].mxu0
        %v4833 = vadd.f32 0.0, %v4832
        %v4834 = vpop.f32.mrb[0].mxu0
        %4835 = vdwg.mxu0
        %v4836 = vadd.f32 %v4450, %v4710
        %v4837 = vadd.f32 %v4451, %v4713
        %v4838 = vadd.f32 %v4452, %v4718
        %v4839 = vadd.f32 %v4453, %v4721
        %v4840 = vadd.f32 %v4454, %v4726
        %v4841 = vadd.f32 %v4455, %v4729
        %v4842 = vadd.f32 %v4456, %v4734
        %v4843 = vadd.f32 %v4457, %v4737
        %v4844 = vadd.f32 %v4458, %v4742
        %v4845 = vadd.f32 %v4459, %v4745
        %v4846 = vadd.f32 %v4460, %v4750
        %v4847 = vadd.f32 %v4461, %v4753
        %v4848 = vadd.f32 %v4462, %v4758
        %v4849 = vadd.f32 %v4463, %v4761
        %v4850 = vadd.f32 %v4464, %v4766
        %v4851 = vadd.f32 %v4465, %v4769
        %v4852 = vadd.f32 %v4466, %v4774
        %v4853 = vadd.f32 %v4467, %v4777
        %v4854 = vadd.f32 %v4468, %v4782
        %v4855 = vadd.f32 %v4469, %v4785
        %v4856 = vadd.f32 %v4470, %v4790
        %v4857 = vadd.f32 %v4471, %v4793
        %v4858 = vadd.f32 %v4472, %v4798
        %v4859 = vadd.f32 %v4473, %v4801
        %v4860 = vadd.f32 %v4474, %v4806
        %v4861 = vadd.f32 %v4475, %v4809
        %v4862 = vadd.f32 %v4476, %v4814
        %v4863 = vadd.f32 %v4477, %v4817
        %v4864 = vadd.f32 %v4478, %v4822
        %v4865 = vadd.f32 %v4479, %v4825
        %v4866 = vadd.f32 %v4480, %v4830
        %v4867 = vadd.f32 %v4481, %v4833
        %v4868 = vld [vmem:[%s4482] sm:$0xf]
        %v4869 = vld [vmem:[%s4482 + $0x4] sm:$0xf]
        %v4870 = vld [vmem:[%s4482 + $0x8] sm:$0x1]
        %v4871 = vld [vmem:[%s4482 + $0xc] sm:$0xf]
        %v4872 = vld [vmem:[%s4482 + $0x10] sm:$0xf]
        %v4873 = vld [vmem:[%s4482 + $0x14] sm:$0x1]
        %v4874 = vld [vmem:[%s4482 + $0x18] sm:$0xf]
        %v4875 = vld [vmem:[%s4482 + $0x1c] sm:$0xf]
        %v4876 = vld [vmem:[%s4482 + $0x20] sm:$0x1]
        %v4877 = vld [vmem:[%s4482 + $0x24] sm:$0xf]
        %v4878 = vld [vmem:[%s4482 + $0x28] sm:$0xf]
        %v4879 = vld [vmem:[%s4482 + $0x2c] sm:$0x1]
        %v4880 = vld [vmem:[%s4482 + $0x30] sm:$0xf]
        %v4881 = vld [vmem:[%s4482 + $0x34] sm:$0xf]
        %v4882 = vld [vmem:[%s4482 + $0x38] sm:$0x1]
        %v4883 = vld [vmem:[%s4482 + $0x3c] sm:$0xf]
        %v4884 = vld [vmem:[%s4482 + $0x40] sm:$0xf]
        %v4885 = vld [vmem:[%s4482 + $0x44] sm:$0x1]
        %v4886 = vld [vmem:[%s4482 + $0x48] sm:$0xf]
        %v4887 = vld [vmem:[%s4482 + $0x4c] sm:$0xf]
        %v4888 = vld [vmem:[%s4482 + $0x50] sm:$0x1]
        %v4889 = vld [vmem:[%s4482 + $0x54] sm:$0xf]
        %v4890 = vld [vmem:[%s4482 + $0x58] sm:$0xf]
        %v4891 = vld [vmem:[%s4482 + $0x5c] sm:$0x1]
        %v4892 = vld [vmem:[%s4482 + $0x60] sm:$0xf]
        %v4893 = vld [vmem:[%s4482 + $0x64] sm:$0xf]
        %v4894 = vld [vmem:[%s4482 + $0x68] sm:$0x1]
        %v4895 = vld [vmem:[%s4482 + $0x6c] sm:$0xf]
        %v4896 = vld [vmem:[%s4482 + $0x70] sm:$0xf]
        %v4897 = vld [vmem:[%s4482 + $0x74] sm:$0x1]
        %v4898 = vld [vmem:[%s4482 + $0x78] sm:$0xf]
        %v4899 = vld [vmem:[%s4482 + $0x7c] sm:$0xf]
        %v4900 = vld [vmem:[%s4482 + $0x80] sm:$0x1]
        %v4901 = vld [vmem:[%s4482 + $0x84] sm:$0xf]
        %v4902 = vld [vmem:[%s4482 + $0x88] sm:$0xf]
        %v4903 = vld [vmem:[%s4482 + $0x8c] sm:$0x1]
        %v4904 = vld [vmem:[%s4482 + $0x90] sm:$0xf]
        %v4905 = vld [vmem:[%s4482 + $0x94] sm:$0xf]
        %v4906 = vld [vmem:[%s4482 + $0x98] sm:$0x1]
        %v4907 = vld [vmem:[%s4482 + $0x9c] sm:$0xf]
        %v4908 = vld [vmem:[%s4482 + $0xa0] sm:$0xf]
        %v4909 = vld [vmem:[%s4482 + $0xa4] sm:$0x1]
        %v4910 = vld [vmem:[%s4482 + $0xa8] sm:$0xf]
        %v4911 = vld [vmem:[%s4482 + $0xac] sm:$0xf]
        %v4912 = vld [vmem:[%s4482 + $0xb0] sm:$0x1]
        %v4913 = vld [vmem:[%s4482 + $0xb4] sm:$0xf]
        %v4914 = vld [vmem:[%s4482 + $0xb8] sm:$0xf]
        %v4915 = vld [vmem:[%s4482 + $0xbc] sm:$0x1]
        %v4917 = vshrl.u32 %v4868, 16
        %v4919 = vrot.slane %v4917, 4
        %v4920 = vshll.u32 %v4868, 16
        %v4922 = vrot.slane %v4920, 5
        %v4923 = vor.u32 %v4919, %v4922
        %v4924 = vrot.slane %v4923, 4
        %v4926 = vshll.u32 %v4869, 16
        %v4928 = vrot.slane %v4926, 5
        %v4929 = vsel %vm1384, %v4924, %v4928
        %v4930 = vshrl.u32 %v4869, 16
        %v4932 = vrot.slane %v4930, 4
        %v4933 = vor.u32 %v4932, %v4928
        %v4934 = vrot.slane %v4933, 4
        %v4936 = vshll.u32 %v4870, 16
        %v4938 = vrot.slane %v4936, 5
        %v4939 = vsel %vm1384, %v4934, %v4938
        %v4941 = vshrl.u32 %v4871, 16
        %v4943 = vrot.slane %v4941, 4
        %v4944 = vshll.u32 %v4871, 16
        %v4946 = vrot.slane %v4944, 5
        %v4947 = vor.u32 %v4943, %v4946
        %v4948 = vrot.slane %v4947, 4
        %v4950 = vshll.u32 %v4872, 16
        %v4952 = vrot.slane %v4950, 5
        %v4953 = vsel %vm1384, %v4948, %v4952
        %v4954 = vshrl.u32 %v4872, 16
        %v4956 = vrot.slane %v4954, 4
        %v4957 = vor.u32 %v4956, %v4952
        %v4958 = vrot.slane %v4957, 4
        %v4960 = vshll.u32 %v4873, 16
        %v4962 = vrot.slane %v4960, 5
        %v4963 = vsel %vm1384, %v4958, %v4962
        %v4965 = vshrl.u32 %v4874, 16
        %v4967 = vrot.slane %v4965, 4
        %v4968 = vshll.u32 %v4874, 16
        %v4970 = vrot.slane %v4968, 5
        %v4971 = vor.u32 %v4967, %v4970
        %v4972 = vrot.slane %v4971, 4
        %v4974 = vshll.u32 %v4875, 16
        %v4976 = vrot.slane %v4974, 5
        %v4977 = vsel %vm1384, %v4972, %v4976
        %v4978 = vshrl.u32 %v4875, 16
        %v4980 = vrot.slane %v4978, 4
        %v4981 = vor.u32 %v4980, %v4976
        %v4982 = vrot.slane %v4981, 4
        %v4984 = vshll.u32 %v4876, 16
        %v4986 = vrot.slane %v4984, 5
        %v4987 = vsel %vm1384, %v4982, %v4986
        %v4989 = vshrl.u32 %v4877, 16
        %v4991 = vrot.slane %v4989, 4
        %v4992 = vshll.u32 %v4877, 16
        %v4994 = vrot.slane %v4992, 5
        %v4995 = vor.u32 %v4991, %v4994
        %v4996 = vrot.slane %v4995, 4
        %v4998 = vshll.u32 %v4878, 16
        %v5000 = vrot.slane %v4998, 5
        %v5001 = vsel %vm1384, %v4996, %v5000
        %v5002 = vshrl.u32 %v4878, 16
        %v5004 = vrot.slane %v5002, 4
        %v5005 = vor.u32 %v5004, %v5000
        %v5006 = vrot.slane %v5005, 4
        %v5008 = vshll.u32 %v4879, 16
        %v5010 = vrot.slane %v5008, 5
        %v5011 = vsel %vm1384, %v5006, %v5010
        %v5013 = vshrl.u32 %v4880, 16
        %v5015 = vrot.slane %v5013, 4
        %v5016 = vshll.u32 %v4880, 16
        %v5018 = vrot.slane %v5016, 5
        %v5019 = vor.u32 %v5015, %v5018
        %v5020 = vrot.slane %v5019, 4
        %v5022 = vshll.u32 %v4881, 16
        %v5024 = vrot.slane %v5022, 5
        %v5025 = vsel %vm1384, %v5020, %v5024
        %v5026 = vshrl.u32 %v4881, 16
        %v5028 = vrot.slane %v5026, 4
        %v5029 = vor.u32 %v5028, %v5024
        %v5030 = vrot.slane %v5029, 4
        %v5032 = vshll.u32 %v4882, 16
        %v5034 = vrot.slane %v5032, 5
        %v5035 = vsel %vm1384, %v5030, %v5034
        %v5037 = vshrl.u32 %v4883, 16
        %v5039 = vrot.slane %v5037, 4
        %v5040 = vshll.u32 %v4883, 16
        %v5042 = vrot.slane %v5040, 5
        %v5043 = vor.u32 %v5039, %v5042
        %v5044 = vrot.slane %v5043, 4
        %v5046 = vshll.u32 %v4884, 16
        %v5048 = vrot.slane %v5046, 5
        %v5049 = vsel %vm1384, %v5044, %v5048
        %v5050 = vshrl.u32 %v4884, 16
        %v5052 = vrot.slane %v5050, 4
        %v5053 = vor.u32 %v5052, %v5048
        %v5054 = vrot.slane %v5053, 4
        %v5056 = vshll.u32 %v4885, 16
        %v5058 = vrot.slane %v5056, 5
        %v5059 = vsel %vm1384, %v5054, %v5058
        %v5061 = vshrl.u32 %v4886, 16
        %v5063 = vrot.slane %v5061, 4
        %v5064 = vshll.u32 %v4886, 16
        %v5066 = vrot.slane %v5064, 5
        %v5067 = vor.u32 %v5063, %v5066
        %v5068 = vrot.slane %v5067, 4
        %v5070 = vshll.u32 %v4887, 16
        %v5072 = vrot.slane %v5070, 5
        %v5073 = vsel %vm1384, %v5068, %v5072
        %v5074 = vshrl.u32 %v4887, 16
        %v5076 = vrot.slane %v5074, 4
        %v5077 = vor.u32 %v5076, %v5072
        %v5078 = vrot.slane %v5077, 4
        %v5080 = vshll.u32 %v4888, 16
        %v5082 = vrot.slane %v5080, 5
        %v5083 = vsel %vm1384, %v5078, %v5082
        %v5085 = vshrl.u32 %v4889, 16
        %v5087 = vrot.slane %v5085, 4
        %v5088 = vshll.u32 %v4889, 16
        %v5090 = vrot.slane %v5088, 5
        %v5091 = vor.u32 %v5087, %v5090
        %v5092 = vrot.slane %v5091, 4
        %v5094 = vshll.u32 %v4890, 16
        %v5096 = vrot.slane %v5094, 5
        %v5097 = vsel %vm1384, %v5092, %v5096
        %v5098 = vshrl.u32 %v4890, 16
        %v5100 = vrot.slane %v5098, 4
        %v5101 = vor.u32 %v5100, %v5096
        %v5102 = vrot.slane %v5101, 4
        %v5104 = vshll.u32 %v4891, 16
        %v5106 = vrot.slane %v5104, 5
        %v5107 = vsel %vm1384, %v5102, %v5106
        %v5109 = vshrl.u32 %v4892, 16
        %v5111 = vrot.slane %v5109, 4
        %v5112 = vshll.u32 %v4892, 16
        %v5114 = vrot.slane %v5112, 5
        %v5115 = vor.u32 %v5111, %v5114
        %v5116 = vrot.slane %v5115, 4
        %v5118 = vshll.u32 %v4893, 16
        %v5120 = vrot.slane %v5118, 5
        %v5121 = vsel %vm1384, %v5116, %v5120
        %v5122 = vshrl.u32 %v4893, 16
        %v5124 = vrot.slane %v5122, 4
        %v5125 = vor.u32 %v5124, %v5120
        %v5126 = vrot.slane %v5125, 4
        %v5128 = vshll.u32 %v4894, 16
        %v5130 = vrot.slane %v5128, 5
        %v5131 = vsel %vm1384, %v5126, %v5130
        %v5133 = vshrl.u32 %v4895, 16
        %v5135 = vrot.slane %v5133, 4
        %v5136 = vshll.u32 %v4895, 16
        %v5138 = vrot.slane %v5136, 5
        %v5139 = vor.u32 %v5135, %v5138
        %v5140 = vrot.slane %v5139, 4
        %v5142 = vshll.u32 %v4896, 16
        %v5144 = vrot.slane %v5142, 5
        %v5145 = vsel %vm1384, %v5140, %v5144
        %v5146 = vshrl.u32 %v4896, 16
        %v5148 = vrot.slane %v5146, 4
        %v5149 = vor.u32 %v5148, %v5144
        %v5150 = vrot.slane %v5149, 4
        %v5152 = vshll.u32 %v4897, 16
        %v5154 = vrot.slane %v5152, 5
        %v5155 = vsel %vm1384, %v5150, %v5154
        %v5157 = vshrl.u32 %v4898, 16
        %v5159 = vrot.slane %v5157, 4
        %v5160 = vshll.u32 %v4898, 16
        %v5162 = vrot.slane %v5160, 5
        %v5163 = vor.u32 %v5159, %v5162
        %v5164 = vrot.slane %v5163, 4
        %v5166 = vshll.u32 %v4899, 16
        %v5168 = vrot.slane %v5166, 5
        %v5169 = vsel %vm1384, %v5164, %v5168
        %v5170 = vshrl.u32 %v4899, 16
        %v5172 = vrot.slane %v5170, 4
        %v5173 = vor.u32 %v5172, %v5168
        %v5174 = vrot.slane %v5173, 4
        %v5176 = vshll.u32 %v4900, 16
        %v5178 = vrot.slane %v5176, 5
        %v5179 = vsel %vm1384, %v5174, %v5178
        %v5181 = vshrl.u32 %v4901, 16
        %v5183 = vrot.slane %v5181, 4
        %v5184 = vshll.u32 %v4901, 16
        %v5186 = vrot.slane %v5184, 5
        %v5187 = vor.u32 %v5183, %v5186
        %v5188 = vrot.slane %v5187, 4
        %v5190 = vshll.u32 %v4902, 16
        %v5192 = vrot.slane %v5190, 5
        %v5193 = vsel %vm1384, %v5188, %v5192
        %v5194 = vshrl.u32 %v4902, 16
        %v5196 = vrot.slane %v5194, 4
        %v5197 = vor.u32 %v5196, %v5192
        %v5198 = vrot.slane %v5197, 4
        %v5200 = vshll.u32 %v4903, 16
        %v5202 = vrot.slane %v5200, 5
        %v5203 = vsel %vm1384, %v5198, %v5202
        %v5205 = vshrl.u32 %v4904, 16
        %v5207 = vrot.slane %v5205, 4
        %v5208 = vshll.u32 %v4904, 16
        %v5210 = vrot.slane %v5208, 5
        %v5211 = vor.u32 %v5207, %v5210
        %v5212 = vrot.slane %v5211, 4
        %v5214 = vshll.u32 %v4905, 16
        %v5216 = vrot.slane %v5214, 5
        %v5217 = vsel %vm1384, %v5212, %v5216
        %v5218 = vshrl.u32 %v4905, 16
        %v5220 = vrot.slane %v5218, 4
        %v5221 = vor.u32 %v5220, %v5216
        %v5222 = vrot.slane %v5221, 4
        %v5224 = vshll.u32 %v4906, 16
        %v5226 = vrot.slane %v5224, 5
        %v5227 = vsel %vm1384, %v5222, %v5226
        %v5229 = vshrl.u32 %v4907, 16
        %v5231 = vrot.slane %v5229, 4
        %v5232 = vshll.u32 %v4907, 16
        %v5234 = vrot.slane %v5232, 5
        %v5235 = vor.u32 %v5231, %v5234
        %v5236 = vrot.slane %v5235, 4
        %v5238 = vshll.u32 %v4908, 16
        %v5240 = vrot.slane %v5238, 5
        %v5241 = vsel %vm1384, %v5236, %v5240
        %v5242 = vshrl.u32 %v4908, 16
        %v5244 = vrot.slane %v5242, 4
        %v5245 = vor.u32 %v5244, %v5240
        %v5246 = vrot.slane %v5245, 4
        %v5248 = vshll.u32 %v4909, 16
        %v5250 = vrot.slane %v5248, 5
        %v5251 = vsel %vm1384, %v5246, %v5250
        %v5253 = vshrl.u32 %v4910, 16
        %v5255 = vrot.slane %v5253, 4
        %v5256 = vshll.u32 %v4910, 16
        %v5258 = vrot.slane %v5256, 5
        %v5259 = vor.u32 %v5255, %v5258
        %v5260 = vrot.slane %v5259, 4
        %v5262 = vshll.u32 %v4911, 16
        %v5264 = vrot.slane %v5262, 5
        %v5265 = vsel %vm1384, %v5260, %v5264
        %v5266 = vshrl.u32 %v4911, 16
        %v5268 = vrot.slane %v5266, 4
        %v5269 = vor.u32 %v5268, %v5264
        %v5270 = vrot.slane %v5269, 4
        %v5272 = vshll.u32 %v4912, 16
        %v5274 = vrot.slane %v5272, 5
        %v5275 = vsel %vm1384, %v5270, %v5274
        %v5277 = vshrl.u32 %v4913, 16
        %v5279 = vrot.slane %v5277, 4
        %v5280 = vshll.u32 %v4913, 16
        %v5282 = vrot.slane %v5280, 5
        %v5283 = vor.u32 %v5279, %v5282
        %v5284 = vrot.slane %v5283, 4
        %v5286 = vshll.u32 %v4914, 16
        %v5288 = vrot.slane %v5286, 5
        %v5289 = vsel %vm1384, %v5284, %v5288
        %v5290 = vshrl.u32 %v4914, 16
        %v5292 = vrot.slane %v5290, 4
        %v5293 = vor.u32 %v5292, %v5288
        %v5294 = vrot.slane %v5293, 4
        %v5296 = vshll.u32 %v4915, 16
        %v5298 = vrot.slane %v5296, 5
        %v5299 = vsel %vm1384, %v5294, %v5298
        %v5300 = vld [vmem:[#allocation8 + $0x1c0] sm:$0xf]
        %v5301 = vld [vmem:[#allocation8 + $0x1c4] sm:$0xf]
        %v5302 = vld [vmem:[#allocation8 + $0x1c8] sm:$0xf]
        %v5303 = vld [vmem:[#allocation8 + $0x1cc] sm:$0xf]
        %v5304 = vld [vmem:[#allocation8 + $0x1d0] sm:$0xf]
        %v5305 = vld [vmem:[#allocation8 + $0x1d4] sm:$0xf]
        %v5306 = vld [vmem:[#allocation8 + $0x1d8] sm:$0xf]
        %v5307 = vld [vmem:[#allocation8 + $0x1dc] sm:$0xf]
        %v5308 = vld [vmem:[#allocation8 + $0x1e0] sm:$0xf]
        %v5309 = vld [vmem:[#allocation8 + $0x1e4] sm:$0xf]
        %v5310 = vld [vmem:[#allocation8 + $0x1e8] sm:$0xf]
        %v5311 = vld [vmem:[#allocation8 + $0x1ec] sm:$0xf]
        %v5312 = vld [vmem:[#allocation8 + $0x1f0] sm:$0xf]
        %v5313 = vld [vmem:[#allocation8 + $0x1f4] sm:$0xf]
        %v5314 = vld [vmem:[#allocation8 + $0x1f8] sm:$0xf]
        %v5315 = vld [vmem:[#allocation8 + $0x1fc] sm:$0xf]
        %v5316 = vunpack.c.l.b16 %v4929
        %v5317 = vunpack.c.l.b16 %v4939
        %v5318 = vunpack.c.l.b16 %v4953
        %v5319 = vunpack.c.l.b16 %v4963
        %v5320 = vunpack.c.l.b16 %v4977
        %v5321 = vunpack.c.l.b16 %v4987
        %v5322 = vunpack.c.l.b16 %v5001
        %v5323 = vunpack.c.l.b16 %v5011
        %v5324 = vunpack.c.l.b16 %v5025
        %v5325 = vunpack.c.l.b16 %v5035
        %v5326 = vunpack.c.l.b16 %v5049
        %v5327 = vunpack.c.l.b16 %v5059
        %v5328 = vunpack.c.l.b16 %v5073
        %v5329 = vunpack.c.l.b16 %v5083
        %v5330 = vunpack.c.l.b16 %v5097
        %v5331 = vunpack.c.l.b16 %v5107
        %v5332 = vunpack.c.l.b16 %v5121
        %v5333 = vunpack.c.l.b16 %v5131
        %v5334 = vunpack.c.l.b16 %v5145
        %v5335 = vunpack.c.l.b16 %v5155
        %v5336 = vunpack.c.l.b16 %v5169
        %v5337 = vunpack.c.l.b16 %v5179
        %v5338 = vunpack.c.l.b16 %v5193
        %v5339 = vunpack.c.l.b16 %v5203
        %v5340 = vunpack.c.l.b16 %v5217
        %v5341 = vunpack.c.l.b16 %v5227
        %v5342 = vunpack.c.l.b16 %v5241
        %v5343 = vunpack.c.l.b16 %v5251
        %v5344 = vunpack.c.l.b16 %v5265
        %v5345 = vunpack.c.l.b16 %v5275
        %v5346 = vunpack.c.l.b16 %v5289
        %v5347 = vunpack.c.l.b16 %v5299
        %v5348 = vpack.c.b16 %v5317, %v5316
        %v5349 = vpack.c.b16 %v5319, %v5318
        %v5350 = vpack.c.b16 %v5321, %v5320
        %v5351 = vpack.c.b16 %v5323, %v5322
        %v5352 = vpack.c.b16 %v5325, %v5324
        %v5353 = vpack.c.b16 %v5327, %v5326
        %v5354 = vpack.c.b16 %v5329, %v5328
        %v5355 = vpack.c.b16 %v5331, %v5330
        %v5356 = vpack.c.b16 %v5333, %v5332
        %v5357 = vpack.c.b16 %v5335, %v5334
        %v5358 = vpack.c.b16 %v5337, %v5336
        %v5359 = vpack.c.b16 %v5339, %v5338
        %v5360 = vpack.c.b16 %v5341, %v5340
        %v5361 = vpack.c.b16 %v5343, %v5342
        %v5362 = vpack.c.b16 %v5345, %v5344
        %v5363 = vpack.c.b16 %v5347, %v5346
        %v5396 = vunpack.c.l.b16 %v5300
        %v5397 = vunpack.c.l.b16 %v5301
        %v5398 = vunpack.c.l.b16 %v5302
        %v5399 = vunpack.c.l.b16 %v5303
        %v5400 = vunpack.c.l.b16 %v5304
        %v5401 = vunpack.c.l.b16 %v5305
        %v5402 = vunpack.c.l.b16 %v5306
        %v5403 = vunpack.c.l.b16 %v5307
        %v5404 = vunpack.c.l.b16 %v5308
        %v5405 = vunpack.c.l.b16 %v5309
        %v5406 = vunpack.c.l.b16 %v5310
        %v5407 = vunpack.c.l.b16 %v5311
        %v5408 = vunpack.c.l.b16 %v5312
        %v5409 = vunpack.c.l.b16 %v5313
        %v5410 = vunpack.c.l.b16 %v5314
        %v5411 = vunpack.c.l.b16 %v5315
        %v5412 = vpack.c.b16 %v5397, %v5396
        %v5413 = vpack.c.b16 %v5399, %v5398
        %v5414 = vpack.c.b16 %v5401, %v5400
        %v5415 = vpack.c.b16 %v5403, %v5402
        %v5416 = vpack.c.b16 %v5405, %v5404
        %v5417 = vpack.c.b16 %v5407, %v5406
        %v5418 = vpack.c.b16 %v5409, %v5408
        %v5419 = vpack.c.b16 %v5411, %v5410
        %5428 = vmatprep.subr.bf16.mxu0 0
        %5429 = vmatpush1.bf16.msra.mxu0 %v5412
        %5430 = vmatprep.subr.bf16.mxu0 0
        %5431 = vmatpush1.bf16.msra.mxu0 %v5413
        %5432 = vmatprep.subr.bf16.mxu0 0
        %5433 = vmatpush1.bf16.msra.mxu0 %v5414
        %5434 = vmatprep.subr.bf16.mxu0 0
        %5435 = vmatpush1.bf16.msra.mxu0 %v5415
        %5436 = vmatprep.subr.bf16.mxu0 0
        %5437 = vmatpush1.bf16.msra.mxu0 %v5416
        %5438 = vmatprep.subr.bf16.mxu0 0
        %5439 = vmatpush1.bf16.msra.mxu0 %v5417
        %5440 = vmatprep.subr.bf16.mxu0 0
        %5441 = vmatpush1.bf16.msra.mxu0 %v5418
        %5442 = vmatprep.subr.bf16.mxu0 0
        %5443 = vmatpush1.bf16.msra.mxu0 %v5419
        %5444 = vmatprep.subr.bf16.mxu0 0
        %5445 = vmatpush1.bf16.msra.mxu0 0
        %5446 = vmatprep.subr.bf16.mxu0 0
        %5447 = vmatpush1.bf16.msra.mxu0 0
        %5448 = vmatprep.subr.bf16.mxu0 0
        %5449 = vmatpush1.bf16.msra.mxu0 0
        %5450 = vmatprep.subr.bf16.mxu0 0
        %5451 = vmatpush1.bf16.msra.mxu0 0
        %5452 = vmatprep.subr.bf16.mxu0 0
        %5453 = vmatpush1.bf16.msra.mxu0 0
        %5454 = vmatprep.subr.bf16.mxu0 0
        %5455 = vmatpush1.bf16.msra.mxu0 0
        %5456 = vmatprep.subr.bf16.mxu0 0
        %5457 = vmatpush1.bf16.msra.mxu0 0
        %5458 = vmatprep.subr.bf16.mxu0 0
        %5459 = vmatpush1.bf16.msra.mxu0 0
        %5460 = vmatprep.mubr.bf16.mxu0 0
        %5461 = vmatmul.mubr.bf16.gmra.mrb[0].mxu0 %v5348
        %v5462 = vpop.f32.mrb[0].mxu0
        %v5463 = vadd.f32 0.0, %v5462
        %v5464 = vpop.f32.mrb[0].mxu0
        %v5465 = vpop.f32.mrb[0].mxu0
        %v5466 = vadd.f32 0.0, %v5465
        %v5467 = vpop.f32.mrb[0].mxu0
        %5468 = vmatprep.mubr.bf16.mxu0 0
        %5469 = vmatmul.mubr.bf16.gmra.mrb[0].mxu0 %v5349
        %v5470 = vpop.f32.mrb[0].mxu0
        %v5471 = vadd.f32 0.0, %v5470
        %v5472 = vpop.f32.mrb[0].mxu0
        %v5473 = vpop.f32.mrb[0].mxu0
        %v5474 = vadd.f32 0.0, %v5473
        %v5475 = vpop.f32.mrb[0].mxu0
        %5476 = vmatprep.mubr.bf16.mxu0 0
        %5477 = vmatmul.mubr.bf16.gmra.mrb[0].mxu0 %v5350
        %v5478 = vpop.f32.mrb[0].mxu0
        %v5479 = vadd.f32 0.0, %v5478
        %v5480 = vpop.f32.mrb[0].mxu0
        %v5481 = vpop.f32.mrb[0].mxu0
        %v5482 = vadd.f32 0.0, %v5481
        %v5483 = vpop.f32.mrb[0].mxu0
        %5484 = vmatprep.mubr.bf16.mxu0 0
        %5485 = vmatmul.mubr.bf16.gmra.mrb[0].mxu0 %v5351
        %v5486 = vpop.f32.mrb[0].mxu0
        %v5487 = vadd.f32 0.0, %v5486
        %v5488 = vpop.f32.mrb[0].mxu0
        %v5489 = vpop.f32.mrb[0].mxu0
        %v5490 = vadd.f32 0.0, %v5489
        %v5491 = vpop.f32.mrb[0].mxu0
        %5492 = vmatprep.mubr.bf16.mxu0 0
        %5493 = vmatmul.mubr.bf16.gmra.mrb[0].mxu0 %v5352
        %v5494 = vpop.f32.mrb[0].mxu0
        %v5495 = vadd.f32 0.0, %v5494
        %v5496 = vpop.f32.mrb[0].mxu0
        %v5497 = vpop.f32.mrb[0].mxu0
        %v5498 = vadd.f32 0.0, %v5497
        %v5499 = vpop.f32.mrb[0].mxu0
        %5500 = vmatprep.mubr.bf16.mxu0 0
        %5501 = vmatmul.mubr.bf16.gmra.mrb[0].mxu0 %v5353
        %v5502 = vpop.f32.mrb[0].mxu0
        %v5503 = vadd.f32 0.0, %v5502
        %v5504 = vpop.f32.mrb[0].mxu0
        %v5505 = vpop.f32.mrb[0].mxu0
        %v5506 = vadd.f32 0.0, %v5505
        %v5507 = vpop.f32.mrb[0].mxu0
        %5508 = vmatprep.mubr.bf16.mxu0 0
        %5509 = vmatmul.mubr.bf16.gmra.mrb[0].mxu0 %v5354
        %v5510 = vpop.f32.mrb[0].mxu0
        %v5511 = vadd.f32 0.0, %v5510
        %v5512 = vpop.f32.mrb[0].mxu0
        %v5513 = vpop.f32.mrb[0].mxu0
        %v5514 = vadd.f32 0.0, %v5513
        %v5515 = vpop.f32.mrb[0].mxu0
        %5516 = vmatprep.mubr.bf16.mxu0 0
        %5517 = vmatmul.mubr.bf16.gmra.mrb[0].mxu0 %v5355
        %v5518 = vpop.f32.mrb[0].mxu0
        %v5519 = vadd.f32 0.0, %v5518
        %v5520 = vpop.f32.mrb[0].mxu0
        %v5521 = vpop.f32.mrb[0].mxu0
        %v5522 = vadd.f32 0.0, %v5521
        %v5523 = vpop.f32.mrb[0].mxu0
        %5524 = vmatprep.mubr.bf16.mxu0 0
        %5525 = vmatmul.mubr.bf16.gmra.mrb[0].mxu0 %v5356
        %v5526 = vpop.f32.mrb[0].mxu0
        %v5527 = vadd.f32 0.0, %v5526
        %v5528 = vpop.f32.mrb[0].mxu0
        %v5529 = vpop.f32.mrb[0].mxu0
        %v5530 = vadd.f32 0.0, %v5529
        %v5531 = vpop.f32.mrb[0].mxu0
        %5532 = vmatprep.mubr.bf16.mxu0 0
        %5533 = vmatmul.mubr.bf16.gmra.mrb[0].mxu0 %v5357
        %v5534 = vpop.f32.mrb[0].mxu0
        %v5535 = vadd.f32 0.0, %v5534
        %v5536 = vpop.f32.mrb[0].mxu0
        %v5537 = vpop.f32.mrb[0].mxu0
        %v5538 = vadd.f32 0.0, %v5537
        %v5539 = vpop.f32.mrb[0].mxu0
        %5540 = vmatprep.mubr.bf16.mxu0 0
        %5541 = vmatmul.mubr.bf16.gmra.mrb[0].mxu0 %v5358
        %v5542 = vpop.f32.mrb[0].mxu0
        %v5543 = vadd.f32 0.0, %v5542
        %v5544 = vpop.f32.mrb[0].mxu0
        %v5545 = vpop.f32.mrb[0].mxu0
        %v5546 = vadd.f32 0.0, %v5545
        %v5547 = vpop.f32.mrb[0].mxu0
        %5548 = vmatprep.mubr.bf16.mxu0 0
        %5549 = vmatmul.mubr.bf16.gmra.mrb[0].mxu0 %v5359
        %v5550 = vpop.f32.mrb[0].mxu0
        %v5551 = vadd.f32 0.0, %v5550
        %v5552 = vpop.f32.mrb[0].mxu0
        %v5553 = vpop.f32.mrb[0].mxu0
        %v5554 = vadd.f32 0.0, %v5553
        %v5555 = vpop.f32.mrb[0].mxu0
        %5556 = vmatprep.mubr.bf16.mxu0 0
        %5557 = vmatmul.mubr.bf16.gmra.mrb[0].mxu0 %v5360
        %v5558 = vpop.f32.mrb[0].mxu0
        %v5559 = vadd.f32 0.0, %v5558
        %v5560 = vpop.f32.mrb[0].mxu0
        %v5561 = vpop.f32.mrb[0].mxu0
        %v5562 = vadd.f32 0.0, %v5561
        %v5563 = vpop.f32.mrb[0].mxu0
        %5564 = vmatprep.mubr.bf16.mxu0 0
        %5565 = vmatmul.mubr.bf16.gmra.mrb[0].mxu0 %v5361
        %v5566 = vpop.f32.mrb[0].mxu0
        %v5567 = vadd.f32 0.0, %v5566
        %v5568 = vpop.f32.mrb[0].mxu0
        %v5569 = vpop.f32.mrb[0].mxu0
        %v5570 = vadd.f32 0.0, %v5569
        %v5571 = vpop.f32.mrb[0].mxu0
        %5572 = vmatprep.mubr.bf16.mxu0 0
        %5573 = vmatmul.mubr.bf16.gmra.mrb[0].mxu0 %v5362
        %v5574 = vpop.f32.mrb[0].mxu0
        %v5575 = vadd.f32 0.0, %v5574
        %v5576 = vpop.f32.mrb[0].mxu0
        %v5577 = vpop.f32.mrb[0].mxu0
        %v5578 = vadd.f32 0.0, %v5577
        %v5579 = vpop.f32.mrb[0].mxu0
        %5580 = vmatprep.mubr.bf16.mxu0 0
        %5581 = vmatmul.mubr.bf16.gmra.mrb[0].mxu0 %v5363
        %v5582 = vpop.f32.mrb[0].mxu0
        %v5583 = vadd.f32 0.0, %v5582
        %v5584 = vpop.f32.mrb[0].mxu0
        %v5585 = vpop.f32.mrb[0].mxu0
        %v5586 = vadd.f32 0.0, %v5585
        %v5587 = vpop.f32.mrb[0].mxu0
        %5588 = vdwg.mxu0
        %v5589 = vadd.f32 %v4836, %v5463
        %v5590 = vadd.f32 %v4837, %v5466
        %v5591 = vadd.f32 %v4838, %v5471
        %v5592 = vadd.f32 %v4839, %v5474
        %v5593 = vadd.f32 %v4840, %v5479
        %v5594 = vadd.f32 %v4841, %v5482
        %v5595 = vadd.f32 %v4842, %v5487
        %v5596 = vadd.f32 %v4843, %v5490
        %v5597 = vadd.f32 %v4844, %v5495
        %v5598 = vadd.f32 %v4845, %v5498
        %v5599 = vadd.f32 %v4846, %v5503
        %v5600 = vadd.f32 %v4847, %v5506
        %v5601 = vadd.f32 %v4848, %v5511
        %v5602 = vadd.f32 %v4849, %v5514
        %v5603 = vadd.f32 %v4850, %v5519
        %v5604 = vadd.f32 %v4851, %v5522
        %v5605 = vadd.f32 %v4852, %v5527
        %v5606 = vadd.f32 %v4853, %v5530
        %v5607 = vadd.f32 %v4854, %v5535
        %v5608 = vadd.f32 %v4855, %v5538
        %v5609 = vadd.f32 %v4856, %v5543
        %v5610 = vadd.f32 %v4857, %v5546
        %v5611 = vadd.f32 %v4858, %v5551
        %v5612 = vadd.f32 %v4859, %v5554
        %v5613 = vadd.f32 %v4860, %v5559
        %v5614 = vadd.f32 %v4861, %v5562
        %v5615 = vadd.f32 %v4862, %v5567
        %v5616 = vadd.f32 %v4863, %v5570
        %v5617 = vadd.f32 %v4864, %v5575
        %v5618 = vadd.f32 %v4865, %v5578
        %v5619 = vadd.f32 %v4866, %v5583
        %v5620 = vadd.f32 %v4867, %v5586
        %v5621 = vld [vmem:[%s4482] sm:$0xe]
        %v5622 = vld [vmem:[%s4482 + $0xc] sm:$0xe]
        %v5623 = vld [vmem:[%s4482 + $0x18] sm:$0xe]
        %v5624 = vld [vmem:[%s4482 + $0x24] sm:$0xe]
        %v5625 = vld [vmem:[%s4482 + $0x30] sm:$0xe]
        %v5626 = vld [vmem:[%s4482 + $0x3c] sm:$0xe]
        %v5627 = vld [vmem:[%s4482 + $0x48] sm:$0xe]
        %v5628 = vld [vmem:[%s4482 + $0x54] sm:$0xe]
        %v5629 = vld [vmem:[%s4482 + $0x60] sm:$0xe]
        %v5630 = vld [vmem:[%s4482 + $0x6c] sm:$0xe]
        %v5631 = vld [vmem:[%s4482 + $0x78] sm:$0xe]
        %v5632 = vld [vmem:[%s4482 + $0x84] sm:$0xe]
        %v5633 = vld [vmem:[%s4482 + $0x90] sm:$0xe]
        %v5634 = vld [vmem:[%s4482 + $0x9c] sm:$0xe]
        %v5635 = vld [vmem:[%s4482 + $0xa8] sm:$0xe]
        %v5636 = vld [vmem:[%s4482 + $0xb4] sm:$0xe]
        %v5685 = vrot.slane %v5621, 5
        %v5686 = vrot.slane %v5685, 4
        %v5687 = vrot.slane %v4869, 5
        %v5688 = vsel %vm2413, %v5686, %v5687
        %v5689 = vrot.slane %v5687, 4
        %v5690 = vrot.slane %v4870, 5
        %v5691 = vsel %vm2413, %v5689, %v5690
        %v5692 = vrot.slane %v5622, 5
        %v5693 = vrot.slane %v5692, 4
        %v5694 = vrot.slane %v4872, 5
        %v5695 = vsel %vm2413, %v5693, %v5694
        %v5696 = vrot.slane %v5694, 4
        %v5697 = vrot.slane %v4873, 5
        %v5698 = vsel %vm2413, %v5696, %v5697
        %v5699 = vrot.slane %v5623, 5
        %v5700 = vrot.slane %v5699, 4
        %v5701 = vrot.slane %v4875, 5
        %v5702 = vsel %vm2413, %v5700, %v5701
        %v5703 = vrot.slane %v5701, 4
        %v5704 = vrot.slane %v4876, 5
        %v5705 = vsel %vm2413, %v5703, %v5704
        %v5706 = vrot.slane %v5624, 5
        %v5707 = vrot.slane %v5706, 4
        %v5708 = vrot.slane %v4878, 5
        %v5709 = vsel %vm2413, %v5707, %v5708
        %v5710 = vrot.slane %v5708, 4
        %v5711 = vrot.slane %v4879, 5
        %v5712 = vsel %vm2413, %v5710, %v5711
        %v5713 = vrot.slane %v5625, 5
        %v5714 = vrot.slane %v5713, 4
        %v5715 = vrot.slane %v4881, 5
        %v5716 = vsel %vm2413, %v5714, %v5715
        %v5717 = vrot.slane %v5715, 4
        %v5718 = vrot.slane %v4882, 5
        %v5719 = vsel %vm2413, %v5717, %v5718
        %v5720 = vrot.slane %v5626, 5
        %v5721 = vrot.slane %v5720, 4
        %v5722 = vrot.slane %v4884, 5
        %v5723 = vsel %vm2413, %v5721, %v5722
        %v5724 = vrot.slane %v5722, 4
        %v5725 = vrot.slane %v4885, 5
        %v5726 = vsel %vm2413, %v5724, %v5725
        %v5727 = vrot.slane %v5627, 5
        %v5728 = vrot.slane %v5727, 4
        %v5729 = vrot.slane %v4887, 5
        %v5730 = vsel %vm2413, %v5728, %v5729
        %v5731 = vrot.slane %v5729, 4
        %v5732 = vrot.slane %v4888, 5
        %v5733 = vsel %vm2413, %v5731, %v5732
        %v5734 = vrot.slane %v5628, 5
        %v5735 = vrot.slane %v5734, 4
        %v5736 = vrot.slane %v4890, 5
        %v5737 = vsel %vm2413, %v5735, %v5736
        %v5738 = vrot.slane %v5736, 4
        %v5739 = vrot.slane %v4891, 5
        %v5740 = vsel %vm2413, %v5738, %v5739
        %v5741 = vrot.slane %v5629, 5
        %v5742 = vrot.slane %v5741, 4
        %v5743 = vrot.slane %v4893, 5
        %v5744 = vsel %vm2413, %v5742, %v5743
        %v5745 = vrot.slane %v5743, 4
        %v5746 = vrot.slane %v4894, 5
        %v5747 = vsel %vm2413, %v5745, %v5746
        %v5748 = vrot.slane %v5630, 5
        %v5749 = vrot.slane %v5748, 4
        %v5750 = vrot.slane %v4896, 5
        %v5751 = vsel %vm2413, %v5749, %v5750
        %v5752 = vrot.slane %v5750, 4
        %v5753 = vrot.slane %v4897, 5
        %v5754 = vsel %vm2413, %v5752, %v5753
        %v5755 = vrot.slane %v5631, 5
        %v5756 = vrot.slane %v5755, 4
        %v5757 = vrot.slane %v4899, 5
        %v5758 = vsel %vm2413, %v5756, %v5757
        %v5759 = vrot.slane %v5757, 4
        %v5760 = vrot.slane %v4900, 5
        %v5761 = vsel %vm2413, %v5759, %v5760
        %v5762 = vrot.slane %v5632, 5
        %v5763 = vrot.slane %v5762, 4
        %v5764 = vrot.slane %v4902, 5
        %v5765 = vsel %vm2413, %v5763, %v5764
        %v5766 = vrot.slane %v5764, 4
        %v5767 = vrot.slane %v4903, 5
        %v5768 = vsel %vm2413, %v5766, %v5767
        %v5769 = vrot.slane %v5633, 5
        %v5770 = vrot.slane %v5769, 4
        %v5771 = vrot.slane %v4905, 5
        %v5772 = vsel %vm2413, %v5770, %v5771
        %v5773 = vrot.slane %v5771, 4
        %v5774 = vrot.slane %v4906, 5
        %v5775 = vsel %vm2413, %v5773, %v5774
        %v5776 = vrot.slane %v5634, 5
        %v5777 = vrot.slane %v5776, 4
        %v5778 = vrot.slane %v4908, 5
        %v5779 = vsel %vm2413, %v5777, %v5778
        %v5780 = vrot.slane %v5778, 4
        %v5781 = vrot.slane %v4909, 5
        %v5782 = vsel %vm2413, %v5780, %v5781
        %v5783 = vrot.slane %v5635, 5
        %v5784 = vrot.slane %v5783, 4
        %v5785 = vrot.slane %v4911, 5
        %v5786 = vsel %vm2413, %v5784, %v5785
        %v5787 = vrot.slane %v5785, 4
        %v5788 = vrot.slane %v4912, 5
        %v5789 = vsel %vm2413, %v5787, %v5788
        %v5790 = vrot.slane %v5636, 5
        %v5791 = vrot.slane %v5790, 4
        %v5792 = vrot.slane %v4914, 5
        %v5793 = vsel %vm2413, %v5791, %v5792
        %v5794 = vrot.slane %v5792, 4
        %v5795 = vrot.slane %v4915, 5
        %v5796 = vsel %vm2413, %v5794, %v5795
        %v5797 = vld [vmem:[#allocation8 + $0x200] sm:$0xf]
        %v5798 = vld [vmem:[#allocation8 + $0x204] sm:$0xf]
        %v5799 = vld [vmem:[#allocation8 + $0x208] sm:$0xf]
        %v5800 = vld [vmem:[#allocation8 + $0x20c] sm:$0xf]
        %v5801 = vld [vmem:[#allocation8 + $0x210] sm:$0xf]
        %v5802 = vld [vmem:[#allocation8 + $0x214] sm:$0xf]
        %v5803 = vld [vmem:[#allocation8 + $0x218] sm:$0xf]
        %v5804 = vld [vmem:[#allocation8 + $0x21c] sm:$0xf]
        %v5805 = vld [vmem:[#allocation8 + $0x220] sm:$0xf]
        %v5806 = vld [vmem:[#allocation8 + $0x224] sm:$0xf]
        %v5807 = vld [vmem:[#allocation8 + $0x228] sm:$0xf]
        %v5808 = vld [vmem:[#allocation8 + $0x22c] sm:$0xf]
        %v5809 = vld [vmem:[#allocation8 + $0x230] sm:$0xf]
        %v5810 = vld [vmem:[#allocation8 + $0x234] sm:$0xf]
        %v5811 = vld [vmem:[#allocation8 + $0x238] sm:$0xf]
        %v5812 = vld [vmem:[#allocation8 + $0x23c] sm:$0xf]
        %v5813 = vunpack.c.l.b16 %v5688
        %v5814 = vunpack.c.l.b16 %v5691
        %v5815 = vunpack.c.l.b16 %v5695
        %v5816 = vunpack.c.l.b16 %v5698
        %v5817 = vunpack.c.l.b16 %v5702
        %v5818 = vunpack.c.l.b16 %v5705
        %v5819 = vunpack.c.l.b16 %v5709
        %v5820 = vunpack.c.l.b16 %v5712
        %v5821 = vunpack.c.l.b16 %v5716
        %v5822 = vunpack.c.l.b16 %v5719
        %v5823 = vunpack.c.l.b16 %v5723
        %v5824 = vunpack.c.l.b16 %v5726
        %v5825 = vunpack.c.l.b16 %v5730
        %v5826 = vunpack.c.l.b16 %v5733
        %v5827 = vunpack.c.l.b16 %v5737
        %v5828 = vunpack.c.l.b16 %v5740
        %v5829 = vunpack.c.l.b16 %v5744
        %v5830 = vunpack.c.l.b16 %v5747
        %v5831 = vunpack.c.l.b16 %v5751
        %v5832 = vunpack.c.l.b16 %v5754
        %v5833 = vunpack.c.l.b16 %v5758
        %v5834 = vunpack.c.l.b16 %v5761
        %v5835 = vunpack.c.l.b16 %v5765
        %v5836 = vunpack.c.l.b16 %v5768
        %v5837 = vunpack.c.l.b16 %v5772
        %v5838 = vunpack.c.l.b16 %v5775
        %v5839 = vunpack.c.l.b16 %v5779
        %v5840 = vunpack.c.l.b16 %v5782
        %v5841 = vunpack.c.l.b16 %v5786
        %v5842 = vunpack.c.l.b16 %v5789
        %v5843 = vunpack.c.l.b16 %v5793
        %v5844 = vunpack.c.l.b16 %v5796
        %v5845 = vpack.c.b16 %v5814, %v5813
        %v5846 = vpack.c.b16 %v5816, %v5815
        %v5847 = vpack.c.b16 %v5818, %v5817
        %v5848 = vpack.c.b16 %v5820, %v5819
        %v5849 = vpack.c.b16 %v5822, %v5821
        %v5850 = vpack.c.b16 %v5824, %v5823
        %v5851 = vpack.c.b16 %v5826, %v5825
        %v5852 = vpack.c.b16 %v5828, %v5827
        %v5853 = vpack.c.b16 %v5830, %v5829
        %v5854 = vpack.c.b16 %v5832, %v5831
        %v5855 = vpack.c.b16 %v5834, %v5833
        %v5856 = vpack.c.b16 %v5836, %v5835
        %v5857 = vpack.c.b16 %v5838, %v5837
        %v5858 = vpack.c.b16 %v5840, %v5839
        %v5859 = vpack.c.b16 %v5842, %v5841
        %v5860 = vpack.c.b16 %v5844, %v5843
        %v5893 = vunpack.c.l.b16 %v5797
        %v5894 = vunpack.c.l.b16 %v5798
        %v5895 = vunpack.c.l.b16 %v5799
        %v5896 = vunpack.c.l.b16 %v5800
        %v5897 = vunpack.c.l.b16 %v5801
        %v5898 = vunpack.c.l.b16 %v5802
        %v5899 = vunpack.c.l.b16 %v5803
        %v5900 = vunpack.c.l.b16 %v5804
        %v5901 = vunpack.c.l.b16 %v5805
        %v5902 = vunpack.c.l.b16 %v5806
        %v5903 = vunpack.c.l.b16 %v5807
        %v5904 = vunpack.c.l.b16 %v5808
        %v5905 = vunpack.c.l.b16 %v5809
        %v5906 = vunpack.c.l.b16 %v5810
        %v5907 = vunpack.c.l.b16 %v5811
        %v5908 = vunpack.c.l.b16 %v5812
        %v5909 = vpack.c.b16 %v5894, %v5893
        %v5910 = vpack.c.b16 %v5896, %v5895
        %v5911 = vpack.c.b16 %v5898, %v5897
        %v5912 = vpack.c.b16 %v5900, %v5899
        %v5913 = vpack.c.b16 %v5902, %v5901
        %v5914 = vpack.c.b16 %v5904, %v5903
        %v5915 = vpack.c.b16 %v5906, %v5905
        %v5916 = vpack.c.b16 %v5908, %v5907
        %5925 = vmatprep.subr.bf16.mxu0 0
        %5926 = vmatpush1.bf16.msra.mxu0 %v5909
        %5927 = vmatprep.subr.bf16.mxu0 0
        %5928 = vmatpush1.bf16.msra.mxu0 %v5910
        %5929 = vmatprep.subr.bf16.mxu0 0
        %5930 = vmatpush1.bf16.msra.mxu0 %v5911
        %5931 = vmatprep.subr.bf16.mxu0 0
        %5932 = vmatpush1.bf16.msra.mxu0 %v5912
        %5933 = vmatprep.subr.bf16.mxu0 0
        %5934 = vmatpush1.bf16.msra.mxu0 %v5913
        %5935 = vmatprep.subr.bf16.mxu0 0
        %5936 = vmatpush1.bf16.msra.mxu0 %v5914
        %5937 = vmatprep.subr.bf16.mxu0 0
        %5938 = vmatpush1.bf16.msra.mxu0 %v5915
        %5939 = vmatprep.subr.bf16.mxu0 0
        %5940 = vmatpush1.bf16.msra.mxu0 %v5916
        %5941 = vmatprep.subr.bf16.mxu0 0
        %5942 = vmatpush1.bf16.msra.mxu0 0
        %5943 = vmatprep.subr.bf16.mxu0 0
        %5944 = vmatpush1.bf16.msra.mxu0 0
        %5945 = vmatprep.subr.bf16.mxu0 0
        %5946 = vmatpush1.bf16.msra.mxu0 0
        %5947 = vmatprep.subr.bf16.mxu0 0
        %5948 = vmatpush1.bf16.msra.mxu0 0
        %5949 = vmatprep.subr.bf16.mxu0 0
        %5950 = vmatpush1.bf16.msra.mxu0 0
        %5951 = vmatprep.subr.bf16.mxu0 0
        %5952 = vmatpush1.bf16.msra.mxu0 0
        %5953 = vmatprep.subr.bf16.mxu0 0
        %5954 = vmatpush1.bf16.msra.mxu0 0
        %5955 = vmatprep.subr.bf16.mxu0 0
        %5956 = vmatpush1.bf16.msra.mxu0 0
        %5957 = vmatprep.mubr.bf16.mxu0 0
        %5958 = vmatmul.mubr.bf16.gmra.mrb[0].mxu0 %v5845
        %v5959 = vpop.f32.mrb[0].mxu0
        %v5960 = vadd.f32 0.0, %v5959
        %v5961 = vpop.f32.mrb[0].mxu0
        %v5962 = vpop.f32.mrb[0].mxu0
        %v5963 = vadd.f32 0.0, %v5962
        %v5964 = vpop.f32.mrb[0].mxu0
        %5965 = vmatprep.mubr.bf16.mxu0 0
        %5966 = vmatmul.mubr.bf16.gmra.mrb[0].mxu0 %v5846
        %v5967 = vpop.f32.mrb[0].mxu0
        %v5968 = vadd.f32 0.0, %v5967
        %v5969 = vpop.f32.mrb[0].mxu0
        %v5970 = vpop.f32.mrb[0].mxu0
        %v5971 = vadd.f32 0.0, %v5970
        %v5972 = vpop.f32.mrb[0].mxu0
        %5973 = vmatprep.mubr.bf16.mxu0 0
        %5974 = vmatmul.mubr.bf16.gmra.mrb[0].mxu0 %v5847
        %v5975 = vpop.f32.mrb[0].mxu0
        %v5976 = vadd.f32 0.0, %v5975
        %v5977 = vpop.f32.mrb[0].mxu0
        %v5978 = vpop.f32.mrb[0].mxu0
        %v5979 = vadd.f32 0.0, %v5978
        %v5980 = vpop.f32.mrb[0].mxu0
        %5981 = vmatprep.mubr.bf16.mxu0 0
        %5982 = vmatmul.mubr.bf16.gmra.mrb[0].mxu0 %v5848
        %v5983 = vpop.f32.mrb[0].mxu0
        %v5984 = vadd.f32 0.0, %v5983
        %v5985 = vpop.f32.mrb[0].mxu0
        %v5986 = vpop.f32.mrb[0].mxu0
        %v5987 = vadd.f32 0.0, %v5986
        %v5988 = vpop.f32.mrb[0].mxu0
        %5989 = vmatprep.mubr.bf16.mxu0 0
        %5990 = vmatmul.mubr.bf16.gmra.mrb[0].mxu0 %v5849
        %v5991 = vpop.f32.mrb[0].mxu0
        %v5992 = vadd.f32 0.0, %v5991
        %v5993 = vpop.f32.mrb[0].mxu0
        %v5994 = vpop.f32.mrb[0].mxu0
        %v5995 = vadd.f32 0.0, %v5994
        %v5996 = vpop.f32.mrb[0].mxu0
        %5997 = vmatprep.mubr.bf16.mxu0 0
        %5998 = vmatmul.mubr.bf16.gmra.mrb[0].mxu0 %v5850
        %v5999 = vpop.f32.mrb[0].mxu0
        %v6000 = vadd.f32 0.0, %v5999
        %v6001 = vpop.f32.mrb[0].mxu0
        %v6002 = vpop.f32.mrb[0].mxu0
        %v6003 = vadd.f32 0.0, %v6002
        %v6004 = vpop.f32.mrb[0].mxu0
        %6005 = vmatprep.mubr.bf16.mxu0 0
        %6006 = vmatmul.mubr.bf16.gmra.mrb[0].mxu0 %v5851
        %v6007 = vpop.f32.mrb[0].mxu0
        %v6008 = vadd.f32 0.0, %v6007
        %v6009 = vpop.f32.mrb[0].mxu0
        %v6010 = vpop.f32.mrb[0].mxu0
        %v6011 = vadd.f32 0.0, %v6010
        %v6012 = vpop.f32.mrb[0].mxu0
        %6013 = vmatprep.mubr.bf16.mxu0 0
        %6014 = vmatmul.mubr.bf16.gmra.mrb[0].mxu0 %v5852
        %v6015 = vpop.f32.mrb[0].mxu0
        %v6016 = vadd.f32 0.0, %v6015
        %v6017 = vpop.f32.mrb[0].mxu0
        %v6018 = vpop.f32.mrb[0].mxu0
        %v6019 = vadd.f32 0.0, %v6018
        %v6020 = vpop.f32.mrb[0].mxu0
        %6021 = vmatprep.mubr.bf16.mxu0 0
        %6022 = vmatmul.mubr.bf16.gmra.mrb[0].mxu0 %v5853
        %v6023 = vpop.f32.mrb[0].mxu0
        %v6024 = vadd.f32 0.0, %v6023
        %v6025 = vpop.f32.mrb[0].mxu0
        %v6026 = vpop.f32.mrb[0].mxu0
        %v6027 = vadd.f32 0.0, %v6026
        %v6028 = vpop.f32.mrb[0].mxu0
        %6029 = vmatprep.mubr.bf16.mxu0 0
        %6030 = vmatmul.mubr.bf16.gmra.mrb[0].mxu0 %v5854
        %v6031 = vpop.f32.mrb[0].mxu0
        %v6032 = vadd.f32 0.0, %v6031
        %v6033 = vpop.f32.mrb[0].mxu0
        %v6034 = vpop.f32.mrb[0].mxu0
        %v6035 = vadd.f32 0.0, %v6034
        %v6036 = vpop.f32.mrb[0].mxu0
        %6037 = vmatprep.mubr.bf16.mxu0 0
        %6038 = vmatmul.mubr.bf16.gmra.mrb[0].mxu0 %v5855
        %v6039 = vpop.f32.mrb[0].mxu0
        %v6040 = vadd.f32 0.0, %v6039
        %v6041 = vpop.f32.mrb[0].mxu0
        %v6042 = vpop.f32.mrb[0].mxu0
        %v6043 = vadd.f32 0.0, %v6042
        %v6044 = vpop.f32.mrb[0].mxu0
        %6045 = vmatprep.mubr.bf16.mxu0 0
        %6046 = vmatmul.mubr.bf16.gmra.mrb[0].mxu0 %v5856
        %v6047 = vpop.f32.mrb[0].mxu0
        %v6048 = vadd.f32 0.0, %v6047
        %v6049 = vpop.f32.mrb[0].mxu0
        %v6050 = vpop.f32.mrb[0].mxu0
        %v6051 = vadd.f32 0.0, %v6050
        %v6052 = vpop.f32.mrb[0].mxu0
        %6053 = vmatprep.mubr.bf16.mxu0 0
        %6054 = vmatmul.mubr.bf16.gmra.mrb[0].mxu0 %v5857
        %v6055 = vpop.f32.mrb[0].mxu0
        %v6056 = vadd.f32 0.0, %v6055
        %v6057 = vpop.f32.mrb[0].mxu0
        %v6058 = vpop.f32.mrb[0].mxu0
        %v6059 = vadd.f32 0.0, %v6058
        %v6060 = vpop.f32.mrb[0].mxu0
        %6061 = vmatprep.mubr.bf16.mxu0 0
        %6062 = vmatmul.mubr.bf16.gmra.mrb[0].mxu0 %v5858
        %v6063 = vpop.f32.mrb[0].mxu0
        %v6064 = vadd.f32 0.0, %v6063
        %v6065 = vpop.f32.mrb[0].mxu0
        %v6066 = vpop.f32.mrb[0].mxu0
        %v6067 = vadd.f32 0.0, %v6066
        %v6068 = vpop.f32.mrb[0].mxu0
        %6069 = vmatprep.mubr.bf16.mxu0 0
        %6070 = vmatmul.mubr.bf16.gmra.mrb[0].mxu0 %v5859
        %v6071 = vpop.f32.mrb[0].mxu0
        %v6072 = vadd.f32 0.0, %v6071
        %v6073 = vpop.f32.mrb[0].mxu0
        %v6074 = vpop.f32.mrb[0].mxu0
        %v6075 = vadd.f32 0.0, %v6074
        %v6076 = vpop.f32.mrb[0].mxu0
        %6077 = vmatprep.mubr.bf16.mxu0 0
        %6078 = vmatmul.mubr.bf16.gmra.mrb[0].mxu0 %v5860
        %v6079 = vpop.f32.mrb[0].mxu0
        %v6080 = vadd.f32 0.0, %v6079
        %v6081 = vpop.f32.mrb[0].mxu0
        %v6082 = vpop.f32.mrb[0].mxu0
        %v6083 = vadd.f32 0.0, %v6082
        %v6084 = vpop.f32.mrb[0].mxu0
        %6085 = vdwg.mxu0
        %v6086 = vadd.f32 %v5589, %v5960
        %v6087 = vadd.f32 %v5590, %v5963
        %v6088 = vadd.f32 %v5591, %v5968
        %v6089 = vadd.f32 %v5592, %v5971
        %v6090 = vadd.f32 %v5593, %v5976
        %v6091 = vadd.f32 %v5594, %v5979
        %v6092 = vadd.f32 %v5595, %v5984
        %v6093 = vadd.f32 %v5596, %v5987
        %v6094 = vadd.f32 %v5597, %v5992
        %v6095 = vadd.f32 %v5598, %v5995
        %v6096 = vadd.f32 %v5599, %v6000
        %v6097 = vadd.f32 %v5600, %v6003
        %v6098 = vadd.f32 %v5601, %v6008
        %v6099 = vadd.f32 %v5602, %v6011
        %v6100 = vadd.f32 %v5603, %v6016
        %v6101 = vadd.f32 %v5604, %v6019
        %v6102 = vadd.f32 %v5605, %v6024
        %v6103 = vadd.f32 %v5606, %v6027
        %v6104 = vadd.f32 %v5607, %v6032
        %v6105 = vadd.f32 %v5608, %v6035
        %v6106 = vadd.f32 %v5609, %v6040
        %v6107 = vadd.f32 %v5610, %v6043
        %v6108 = vadd.f32 %v5611, %v6048
        %v6109 = vadd.f32 %v5612, %v6051
        %v6110 = vadd.f32 %v5613, %v6056
        %v6111 = vadd.f32 %v5614, %v6059
        %v6112 = vadd.f32 %v5615, %v6064
        %v6113 = vadd.f32 %v5616, %v6067
        %v6114 = vadd.f32 %v5617, %v6072
        %v6115 = vadd.f32 %v5618, %v6075
        %v6116 = vadd.f32 %v5619, %v6080
        %v6117 = vadd.f32 %v5620, %v6083
        %v6118 = vld [vmem:[%s4] sm:$0x1]
        %v6120 = vlaneseq
        %v6121 = vshrl.u32 %v6120, 7
        %v6122 = vsub.s32 0, %v6121
        %v6123 = vrot.slane %v6118, %v6122
        %v6125 = vadd.f32 %v6086, %v6123
        %v6126 = vadd.f32 %v6087, %v6123
        %v6127 = vadd.f32 %v6088, %v6123
        %v6128 = vadd.f32 %v6089, %v6123
        %v6129 = vadd.f32 %v6090, %v6123
        %v6130 = vadd.f32 %v6091, %v6123
        %v6131 = vadd.f32 %v6092, %v6123
        %v6132 = vadd.f32 %v6093, %v6123
        %v6133 = vadd.f32 %v6094, %v6123
        %v6134 = vadd.f32 %v6095, %v6123
        %v6135 = vadd.f32 %v6096, %v6123
        %v6136 = vadd.f32 %v6097, %v6123
        %v6137 = vadd.f32 %v6098, %v6123
        %v6138 = vadd.f32 %v6099, %v6123
        %v6139 = vadd.f32 %v6100, %v6123
        %v6140 = vadd.f32 %v6101, %v6123
        %v6141 = vadd.f32 %v6102, %v6123
        %v6142 = vadd.f32 %v6103, %v6123
        %v6143 = vadd.f32 %v6104, %v6123
        %v6144 = vadd.f32 %v6105, %v6123
        %v6145 = vadd.f32 %v6106, %v6123
        %v6146 = vadd.f32 %v6107, %v6123
        %v6147 = vadd.f32 %v6108, %v6123
        %v6148 = vadd.f32 %v6109, %v6123
        %v6149 = vadd.f32 %v6110, %v6123
        %v6150 = vadd.f32 %v6111, %v6123
        %v6151 = vadd.f32 %v6112, %v6123
        %v6152 = vadd.f32 %v6113, %v6123
        %v6153 = vadd.f32 %v6114, %v6123
        %v6154 = vadd.f32 %v6115, %v6123
        %v6155 = vadd.f32 %v6116, %v6123
        %v6156 = vadd.f32 %v6117, %v6123
        %v6157 = vmax.f32 %v6125, 0.0
        %v6158 = vmax.f32 %v6126, 0.0
        %v6159 = vmax.f32 %v6127, 0.0
        %v6160 = vmax.f32 %v6128, 0.0
        %v6161 = vmax.f32 %v6129, 0.0
        %v6162 = vmax.f32 %v6130, 0.0
        %v6163 = vmax.f32 %v6131, 0.0
        %v6164 = vmax.f32 %v6132, 0.0
        %v6165 = vmax.f32 %v6133, 0.0
        %v6166 = vmax.f32 %v6134, 0.0
        %v6167 = vmax.f32 %v6135, 0.0
        %v6168 = vmax.f32 %v6136, 0.0
        %v6169 = vmax.f32 %v6137, 0.0
        %v6170 = vmax.f32 %v6138, 0.0
        %v6171 = vmax.f32 %v6139, 0.0
        %v6172 = vmax.f32 %v6140, 0.0
        %v6173 = vmax.f32 %v6141, 0.0
        %v6174 = vmax.f32 %v6142, 0.0
        %v6175 = vmax.f32 %v6143, 0.0
        %v6176 = vmax.f32 %v6144, 0.0
        %v6177 = vmax.f32 %v6145, 0.0
        %v6178 = vmax.f32 %v6146, 0.0
        %v6179 = vmax.f32 %v6147, 0.0
        %v6180 = vmax.f32 %v6148, 0.0
        %v6181 = vmax.f32 %v6149, 0.0
        %v6182 = vmax.f32 %v6150, 0.0
        %v6183 = vmax.f32 %v6151, 0.0
        %v6184 = vmax.f32 %v6152, 0.0
        %v6185 = vmax.f32 %v6153, 0.0
        %v6186 = vmax.f32 %v6154, 0.0
        %v6187 = vmax.f32 %v6155, 0.0
        %v6188 = vmax.f32 %v6156, 0.0
        %6189 = vst [vmem:[%s271] sm:$0xff] %v6157
        %6190 = vst [vmem:[%s271 + $0x8] sm:$0xff] %v6158
        %6191 = vst [vmem:[%s271 + $0x10] sm:$0xff] %v6159
        %6192 = vst [vmem:[%s271 + $0x18] sm:$0xff] %v6160
        %6193 = vst [vmem:[%s271 + $0x20] sm:$0xff] %v6161
        %6194 = vst [vmem:[%s271 + $0x28] sm:$0xff] %v6162
        %6195 = vst [vmem:[%s271 + $0x30] sm:$0xff] %v6163
        %6196 = vst [vmem:[%s271 + $0x38] sm:$0xff] %v6164
        %6197 = vst [vmem:[%s271 + $0x40] sm:$0xff] %v6165
        %6198 = vst [vmem:[%s271 + $0x48] sm:$0xff] %v6166
        %6199 = vst [vmem:[%s271 + $0x50] sm:$0xff] %v6167
        %6200 = vst [vmem:[%s271 + $0x58] sm:$0xff] %v6168
        %6201 = vst [vmem:[%s271 + $0x60] sm:$0xff] %v6169
        %6202 = vst [vmem:[%s271 + $0x68] sm:$0xff] %v6170
        %6203 = vst [vmem:[%s271 + $0x70] sm:$0xff] %v6171
        %6204 = vst [vmem:[%s271 + $0x78] sm:$0xff] %v6172
        %6205 = vst [vmem:[%s271 + $0x80] sm:$0xff] %v6173
        %6206 = vst [vmem:[%s271 + $0x88] sm:$0xff] %v6174
        %6207 = vst [vmem:[%s271 + $0x90] sm:$0xff] %v6175
        %6208 = vst [vmem:[%s271 + $0x98] sm:$0xff] %v6176
        %6209 = vst [vmem:[%s271 + $0xa0] sm:$0xff] %v6177
        %6210 = vst [vmem:[%s271 + $0xa8] sm:$0xff] %v6178
        %6211 = vst [vmem:[%s271 + $0xb0] sm:$0xff] %v6179
        %6212 = vst [vmem:[%s271 + $0xb8] sm:$0xff] %v6180
        %6213 = vst [vmem:[%s271 + $0xc0] sm:$0xff] %v6181
        %6214 = vst [vmem:[%s271 + $0xc8] sm:$0xff] %v6182
        %6215 = vst [vmem:[%s271 + $0xd0] sm:$0xff] %v6183
        %6216 = vst [vmem:[%s271 + $0xd8] sm:$0xff] %v6184
        %6217 = vst [vmem:[%s271 + $0xe0] sm:$0xff] %v6185
        %6218 = vst [vmem:[%s271 + $0xe8] sm:$0xff] %v6186
        %6219 = vst [vmem:[%s271 + $0xf0] sm:$0xff] %v6187
        %6220 = vst [vmem:[%s271 + $0xf8] sm:$0xff] %v6188
        %s6221 = sand.u32 %s141, 1
        %s6222 = scalar_lea.sflag [#allocation5], %s6221
        %s6223 = sand.u32 %s141, 1
        %s6224 = smul.addr %s6223, 256
        %s6225 = scalar_lea.vmem [#allocation9], %s6224
        // Predicated region
        $region53: #{tpu_custom_call.1} parent=39 // pred_check
          %p6226 = pneg %p151
        $region54: #{tpu_custom_call.1} parent=39 // pred_check_branch
          %6228 = sbr.rel (%p6226) target = $region56
        $region55: #{tpu_custom_call.1} parent=39 // pred_region
          %s6230 = ssub.s32 4096, 4096
          %6231 = vsyncadd %s6222, %s6230
          %s6232 = smul.addr %s23, 32
          %s6233 = smul.addr %s6232, 128
          %s6234 = scalar_lea.hbm %s5, %s6233
          %s6235 = sshll.u32 %s6225, 4
          %s6236 = int_to_ptr.vmem [resolvable:$true] %s6235
          %6241 = dma.vmem_to_hbm [thread:$0]  %s6236, 4096, %s6234, %s6222, 128, 128, 8
        $region56: #{tpu_custom_call.1} parent=39 // pred_fallthru
          _
      $region40: #{tpu_custom_call.1} parent=5 // pred_fallthru
        _
      %p6242 = scmp.le.s32.totalorder 2, %s18
      // Predicated region
      $region57: #{tpu_custom_call.1} parent=5 // pred_check
        %p6243 = pneg %p6242
      $region58: #{tpu_custom_call.1} parent=5 // pred_check_branch
        %6245 = sbr.rel (%p6243) target = $region60
      $region59: #{tpu_custom_call.1} parent=5 // pred_region
        %s6246 = ssub.s32 %s18, 2
        // Predicated region
        $region61: #{tpu_custom_call.1} parent=59 // pred_check
          %p6247 = pneg %p157
        $region62: #{tpu_custom_call.1} parent=59 // pred_check_branch
          %6249 = sbr.rel (%p6247) target = $region64
        $region63: #{tpu_custom_call.1} parent=59 // pred_region
          %s6250 = sand.u32 %s142, 1
          %s6251 = scalar_lea.sflag [#allocation5], %s6250
          %s6252 = sand.u32 %s142, 1
          %s6253 = smul.addr %s6252, 256
          %s6254 = scalar_lea.vmem [#allocation9], %s6253
          %6255 = dma.done %s6251, 4096
        $region64: #{tpu_custom_call.1} parent=59 // pred_fallthru
          _
      $region60: #{tpu_custom_call.1} parent=5 // pred_fallthru
        _
    $region6: #{tpu_custom_call.1} parent=1 // loop_footer
      %s22 = sadd.s32 1, %s18
    $region7: #{tpu_custom_call.1} parent=1 // loop_footer_branch
      %17 = sbr.rel target = $region3
    $region8: #{tpu_custom_call.1} parent=1 // loop_exit
      _
    %6256 = vsyncpa [#allocation4], 1
    %s6257 = scalar_lea.sflag [#allocation4], 1
    %6258 = vsyncpa %s6257, 1
    %6259 = vsyncpa [#allocation7], 1
    %6260 = vsyncpa [#allocation5], 1
    %s6261 = scalar_lea.sflag [#allocation5], 1
    %6262 = vsyncpa %s6261, 1

</llo_original>
